<compile_context>
chip_gen: v7x
topology: tpu7x:2x2x1
jax: 0.10.0
libtpu: 0.0.40
codegen_flags: <defaults>
</compile_context>

<pallas_src>
import functools

import jax
import jax.numpy as jnp
from jax.experimental import pallas as pl
from jax.experimental.pallas import tpu as pltpu


def _round_up(x, m):
    return (x + m - 1) // m * m


# ------------------------------ Pallas kernel ------------------------------ #

def _bottleneck_kernel(xa_ref, xb1_ref, xb2_ref, mask_ref,
                       w1_ref, b1_ref, w2_ref, b2_ref, w3_ref, b3_ref,
                       out_ref):
    """One (image, row-block) step of the fused bottleneck.

    Flat row-major layout over padded (row, col) spatial positions; channels on
    the lane (last) dim.
      xa_ref   : (th*Wp, Cin)  f32   padded rows [i*th, (i+1)*th)
      xb1_ref  : (Wp, Cin)     f32   halo row (i+1)*th
      xb2_ref  : (Wp, Cin)     f32   halo row (i+1)*th + 1
      mask_ref : (th*Wp, 1)    f32   1.0 at in-image positions, 0.0 at padding
      w1/w2/w3 : bf16 weights with BN scale folded in (w2 is (9, P, P), k=3*dh+dw)
      b1/b2/b3 : (1, C) f32 folded BN biases
      out_ref  : (th*Wp, Cout) f32
    """
    rows = xa_ref.shape[0]            # th * Wp
    wp = xb1_ref.shape[0]             # padded width (multiple of 8)
    planes = w1_ref.shape[1]

    i = pl.program_id(1)
    last = pl.num_programs(1) - 1

    # (th+2) padded rows of the input: main block + 2-row bottom halo.
    x_full = jnp.concatenate([xa_ref[...], xb1_ref[...], xb2_ref[...]], axis=0)

    # conv2's zero padding must live on y1 (post bn1+relu), so build the
    # validity mask for the same (th+2) rows.  The last row of the main block
    # is always a real image row, so its mask is the pure column pattern ->
    # reuse it for the halo rows (2nd halo row only valid if a later row-block
    # exists; otherwise it is the bottom zero-pad row).
    m_a = mask_ref[...]
    m_col = m_a[rows - wp:rows, :]
    m_h2 = m_col * jnp.where(i < last, 1.0, 0.0).astype(jnp.float32)
    m_full = jnp.concatenate([m_a, m_col, m_h2], axis=0)

    # ---- conv1 (1x1) + bn1 + relu (scale folded into w1) --------------------
    y1 = jnp.dot(x_full.astype(jnp.bfloat16), w1_ref[...],
                 preferred_element_type=jnp.float32)
    y1 = jnp.maximum(y1 + b1_ref[...], 0.0) * m_full

    # ---- conv2 (3x3, pad=1) + bn2 + relu: 9 shifted matmuls in VMEM ---------
    # The +/-1 column shifts make the corner taps poke one element past y1, so
    # pad 8 zero rows on each side (those positions only feed cropped outputs).
    zpad = jnp.zeros((8, planes), jnp.float32)
    y1e = jnp.concatenate([zpad, y1, zpad], axis=0)
    acc = jnp.zeros((rows, planes), jnp.float32)
    for dh in range(3):
        for dw in range(3):
            off = 8 + dh * wp + dw - 1
            tap = y1e[off:off + rows, :].astype(jnp.bfloat16)
            acc = acc + jnp.dot(tap, w2_ref[3 * dh + dw],
                                preferred_element_type=jnp.float32)
    y2 = jnp.maximum(acc + b2_ref[...], 0.0).astype(jnp.bfloat16)

    # ---- conv3 (1x1) + bn3 + residual + relu --------------------------------
    acc3 = jnp.dot(y2, w3_ref[...], preferred_element_type=jnp.float32)
    resid = x_full[wp:wp + rows, :]            # exact f32 identity residual
    out_ref[...] = jnp.maximum(acc3 + b3_ref[...] + resid, 0.0).astype(out_ref.dtype)


# ------------------------------ host wrapper ------------------------------- #

def fold_bn(gamma, beta, mean, var, eps=1e-5):
    scale = gamma / jnp.sqrt(var + eps)
    bias = beta - mean * scale
    return scale, bias


def _pick_row_block(H, wp, max_rows=2048):
    best = 1
    for d in range(1, H + 1):
        if H % d == 0 and d * wp <= max_rows:
            best = d
    return best


@functools.partial(jax.jit, static_argnames=("row_block",))
def bottleneck_forward(x_nchw, params, row_block=None):
    """Bottleneck.forward (eval-mode BN, stride=1, downsample=None)."""
    x = jnp.transpose(x_nchw, (0, 2, 3, 1)).astype(jnp.float32)     # NHWC
    N, H, W, Cin = x.shape
    planes = params["conv1_w"].shape[0]
    cout = params["conv3_w"].shape[0]
    assert cout == Cin, "identity residual requires inplanes == planes*4"

    wp = _round_up(W + 2, 8)      # padded width: 1 left, >=1 right, 8-aligned
    th = row_block if row_block is not None else _pick_row_block(H, wp)
    assert H % th == 0, "row_block must divide H"
    nb = H // th

    # spatially padded input, flattened over (padded row, padded col)
    xp = jnp.pad(x, ((0, 0), (1, 1), (1, wp - W - 1), (0, 0)))
    xpf = xp.reshape(N, (H + 2) * wp, Cin)

    # validity mask over padded positions (1.0 inside the original image)
    g = jnp.arange(H + 2)
    c = jnp.arange(wp)
    mask = ((g[:, None] >= 1) & (g[:, None] <= H)
            & (c[None, :] >= 1) & (c[None, :] <= W)).astype(jnp.float32)
    maskf = mask.reshape((H + 2) * wp, 1)

    # fold BN (eval mode): scale -> weight columns, bias kept separate (f32)
    s1, b1 = fold_bn(*params["bn1"])
    s2, b2 = fold_bn(*params["bn2"])
    s3, b3 = fold_bn(*params["bn3"])
    w1 = (params["conv1_w"][:, :, 0, 0].T * s1[None, :]).astype(jnp.bfloat16)
    w2 = jnp.transpose(params["conv2_w"], (2, 3, 1, 0)).reshape(9, planes, planes)
    w2 = (w2 * s2[None, None, :]).astype(jnp.bfloat16)
    w3 = (params["conv3_w"][:, :, 0, 0].T * s3[None, :]).astype(jnp.bfloat16)
    b1 = b1.reshape(1, planes).astype(jnp.float32)
    b2 = b2.reshape(1, planes).astype(jnp.float32)
    b3 = b3.reshape(1, cout).astype(jnp.float32)

    rows = th * wp
    in_specs = [
        pl.BlockSpec((None, rows, Cin), lambda n, i: (n, i, 0)),               # main rows
        pl.BlockSpec((None, wp, Cin), lambda n, i: (n, (i + 1) * th, 0)),      # halo row 1
        pl.BlockSpec((None, wp, Cin), lambda n, i: (n, (i + 1) * th + 1, 0)),  # halo row 2
        pl.BlockSpec((rows, 1), lambda n, i: (i, 0)),                          # mask
        # grid-invariant operands (constant index maps -> no re-DMA per step)
        pl.BlockSpec((Cin, planes), lambda n, i: (0, 0)),                      # w1
        pl.BlockSpec((1, planes), lambda n, i: (0, 0)),                        # b1
        pl.BlockSpec((9, planes, planes), lambda n, i: (0, 0, 0)),             # w2
        pl.BlockSpec((1, planes), lambda n, i: (0, 0)),                        # b2
        pl.BlockSpec((planes, cout), lambda n, i: (0, 0)),                     # w3
        pl.BlockSpec((1, cout), lambda n, i: (0, 0)),                          # b3
    ]
    out_spec = pl.BlockSpec((None, rows, cout), lambda n, i: (n, i, 0))

    out_flat = pl.pallas_call(
        _bottleneck_kernel,
        out_shape=jax.ShapeDtypeStruct((N, H * wp, cout), jnp.float32),
        grid=(N, nb),
        in_specs=in_specs,
        out_specs=out_spec,
        compiler_params=pltpu.CompilerParams(
            dimension_semantics=("parallel", "parallel"),
            vmem_limit_bytes=48 * 1024 * 1024,
        ),
    )(xpf, xpf, xpf, maskf, w1, b1, w2, b2, w3, b3)

    # crop the padded-width columns and return NCHW
    out = out_flat.reshape(N, H, wp, cout)[:, :, 1:W + 1, :]
    return jnp.transpose(out, (0, 3, 1, 2))


# --------------------------- pure-JAX reference ----------------------------- #

def bottleneck_reference(x, p):
    def conv(x, w, stride=1, pad=0):
        return jax.lax.conv_general_dilated(
            x, w, (stride, stride), [(pad, pad), (pad, pad)],
            dimension_numbers=("NCHW", "OIHW", "NCHW"))

    def bn(x, stats):
        s, b = fold_bn(*stats)
        return x * s[None, :, None, None] + b[None, :, None, None]

    out = jax.nn.relu(bn(conv(x, p["conv1_w"]), p["bn1"]))
    out = jax.nn.relu(bn(conv(out, p["conv2_w"], pad=1), p["bn2"]))
    out = bn(conv(out, p["conv3_w"]), p["bn3"])
    return jax.nn.relu(out + x)


# --------------------------------- params ----------------------------------- #

def make_params(key, inplanes, planes):
    """Deterministic weights / eval-mode BN stats (PyTorch OIHW conv layout)."""
    exp = planes * 4
    ks = jax.random.split(key, 15)

    def rnd(k, shape, s=0.1):
        return s * jax.random.normal(k, shape, dtype=jnp.float32)

    p = {
        "conv1_w": rnd(ks[0], (planes, inplanes, 1, 1)),
        "conv2_w": rnd(ks[1], (planes, planes, 3, 3)),
        "conv3_w": rnd(ks[2], (exp, planes, 1, 1)),
    }
    idx = 3
    for i, ch in zip((1, 2, 3), (planes, planes, exp)):
        gamma = 1.0 + rnd(ks[idx], (ch,)); idx += 1
        beta = rnd(ks[idx], (ch,)); idx += 1
        mean = rnd(ks[idx], (ch,)); idx += 1
        var = jnp.abs(rnd(ks[idx], (ch,))) + 0.5; idx += 1
        p[f"bn{i}"] = (gamma, beta, mean, var)
    return p


# ----------------------------------- main ------------------------------------ #

if __name__ == "__main__":
    key = jax.random.PRNGKey(0)
    k_x, k_p = jax.random.split(key)

    planes = 4
    inplanes = planes * 4              # downsample=None => residual shapes match
    batch, spatial = 2, 16

    x = jax.random.normal(k_x, (batch, inplanes, spatial, spatial), dtype=jnp.float32)
    params = make_params(k_p, inplanes, planes)

    ref = jax.block_until_ready(bottleneck_reference(x, params))

    # default tiling (auto-picked row block)
    out = jax.block_until_ready(bottleneck_forward(x, params))
    assert out.shape == (batch, planes * 4, spatial, spatial)
    assert jnp.allclose(out, ref, atol=2e-2, rtol=2e-2), "mismatch (default tiling)"

    # multi-row-block tiling to exercise the in-kernel row-halo path as well
    out2 = jax.block_until_ready(bottleneck_forward(x, params, row_block=8))
    assert jnp.allclose(out2, ref, atol=2e-2, rtol=2e-2), "mismatch (row_block=8)"

    print("KERNEL_OK")
</pallas_src>

<mosaic_0001>
module attributes {stable_mosaic.version = 11 : i64} {
  func.func @_bottleneck_kernel(%arg0: i32, %arg1: i32, %arg2: memref<1x384x16xf32, #tpu.memory_space<vmem>>, %arg3: memref<1x24x16xf32, #tpu.memory_space<vmem>>, %arg4: memref<1x24x16xf32, #tpu.memory_space<vmem>>, %arg5: memref<384x1xf32, #tpu.memory_space<vmem>>, %arg6: memref<16x4xbf16, #tpu.memory_space<vmem>>, %arg7: memref<1x4xf32, #tpu.memory_space<vmem>>, %arg8: memref<9x4x4xbf16, #tpu.memory_space<vmem>>, %arg9: memref<1x4xf32, #tpu.memory_space<vmem>>, %arg10: memref<4x16xbf16, #tpu.memory_space<vmem>>, %arg11: memref<1x16xf32, #tpu.memory_space<vmem>>, %arg12: memref<1x384x16xf32, #tpu.memory_space<vmem>>) attributes {dimension_semantics = [#tpu.dimension_semantics<parallel>, #tpu.dimension_semantics<parallel>], iteration_bounds = array<i64: 2, 1>, scalar_prefetch = 0 : i64, scratch_operands = 0 : i64, tpu.core_type = #tpu.core_type<tc>, window_params = [{transform_indices = @transform_0, window_bounds = array<i64: 1, 384, 16>}, {transform_indices = @transform_1, window_bounds = array<i64: 1, 24, 16>}, {transform_indices = @transform_2, window_bounds = array<i64: 1, 24, 16>}, {transform_indices = @transform_3, window_bounds = array<i64: 384, 1>}, {pipeline_mode = #tpu.pipeline_mode<synchronous>, transform_indices = @transform_4, window_bounds = array<i64: 16, 4>}, {pipeline_mode = #tpu.pipeline_mode<synchronous>, transform_indices = @transform_5, window_bounds = array<i64: 1, 4>}, {pipeline_mode = #tpu.pipeline_mode<synchronous>, transform_indices = @transform_6, window_bounds = array<i64: 9, 4, 4>}, {pipeline_mode = #tpu.pipeline_mode<synchronous>, transform_indices = @transform_7, window_bounds = array<i64: 1, 4>}, {pipeline_mode = #tpu.pipeline_mode<synchronous>, transform_indices = @transform_8, window_bounds = array<i64: 4, 16>}, {pipeline_mode = #tpu.pipeline_mode<synchronous>, transform_indices = @transform_9, window_bounds = array<i64: 1, 16>}, {transform_indices = @transform_10, window_bounds = array<i64: 1, 384, 16>}]} {
    %c0 = arith.constant 0 : index
    %c0_0 = arith.constant 0 : index
    %c0_1 = arith.constant 0 : index
    %0 = vector.load %arg2[%c0, %c0_0, %c0_1] : memref<1x384x16xf32, #tpu.memory_space<vmem>>, vector<1x384x16xf32>
    %1 = vector.shape_cast %0 : vector<1x384x16xf32> to vector<384x16xf32>
    %c0_2 = arith.constant 0 : index
    %c0_3 = arith.constant 0 : index
    %c0_4 = arith.constant 0 : index
    %2 = vector.load %arg3[%c0_2, %c0_3, %c0_4] : memref<1x24x16xf32, #tpu.memory_space<vmem>>, vector<1x24x16xf32>
    %3 = vector.shape_cast %2 : vector<1x24x16xf32> to vector<24x16xf32>
    %c0_5 = arith.constant 0 : index
    %c0_6 = arith.constant 0 : index
    %c0_7 = arith.constant 0 : index
    %4 = vector.load %arg4[%c0_5, %c0_6, %c0_7] : memref<1x24x16xf32, #tpu.memory_space<vmem>>, vector<1x24x16xf32>
    %5 = vector.shape_cast %4 : vector<1x24x16xf32> to vector<24x16xf32>
    %6 = tpu.concatenate %1, %3, %5 in 0 : vector<384x16xf32>, vector<24x16xf32>, vector<24x16xf32> -> vector<432x16xf32>
    %c0_8 = arith.constant 0 : index
    %c0_9 = arith.constant 0 : index
    %7 = vector.load %arg5[%c0_8, %c0_9] : memref<384x1xf32, #tpu.memory_space<vmem>>, vector<384x1xf32>
    %8 = vector.extract_strided_slice %7 {offsets = [360, 0], sizes = [24, 1], strides = [1, 1]} : vector<384x1xf32> to vector<24x1xf32>
    %c0_i32 = arith.constant 0 : i32
    %9 = arith.cmpi slt, %arg1, %c0_i32 : i32
    %cst = arith.constant 1.000000e+00 : f32
    %cst_10 = arith.constant 0.000000e+00 : f32
    %10 = arith.select %9, %cst, %cst_10 : f32
    %11 = vector.broadcast %10 : f32 to vector<24x1xf32>
    %12 = arith.mulf %8, %11 : vector<24x1xf32>
    %13 = tpu.concatenate %7, %8, %12 in 0 : vector<384x1xf32>, vector<24x1xf32>, vector<24x1xf32> -> vector<432x1xf32>
    %14 = arith.truncf %6 : vector<432x16xf32> to vector<432x16xbf16>
    %c0_11 = arith.constant 0 : index
    %c0_12 = arith.constant 0 : index
    %15 = vector.load %arg6[%c0_11, %c0_12] : memref<16x4xbf16, #tpu.memory_space<vmem>>, vector<16x4xbf16>
    %cst_13 = arith.constant dense<0.000000e+00> : vector<432x4xf32>
    %16 = tpu.matmul %14, %15, %cst_13 {dimension_numbers = #tpu.dot_dimension_numbers<[1], [0], [0], [1], [0, 0, 1, 1], [], []>} : vector<432x16xbf16>, vector<16x4xbf16>, vector<432x4xf32> -> vector<432x4xf32>
    %c0_14 = arith.constant 0 : index
    %c0_15 = arith.constant 0 : index
    %17 = vector.load %arg7[%c0_14, %c0_15] : memref<1x4xf32, #tpu.memory_space<vmem>>, vector<1x4xf32>
    %18 = vector.broadcast %17 : vector<1x4xf32> to vector<432x4xf32>
    %19 = arith.addf %16, %18 : vector<432x4xf32>
    %cst_16 = arith.constant 0.000000e+00 : f32
    %20 = vector.broadcast %cst_16 : f32 to vector<432x4xf32>
    %21 = arith.maximumf %19, %20 : vector<432x4xf32>
    %22 = vector.broadcast %13 : vector<432x1xf32> to vector<432x4xf32>
    %23 = arith.mulf %21, %22 : vector<432x4xf32>
    %cst_17 = arith.constant 0.000000e+00 : f32
    %24 = vector.broadcast %cst_17 : f32 to vector<8x4xf32>
    %25 = tpu.concatenate %24, %23, %24 in 0 : vector<8x4xf32>, vector<432x4xf32>, vector<8x4xf32> -> vector<448x4xf32>
    %cst_18 = arith.constant 0.000000e+00 : f32
    %26 = vector.broadcast %cst_18 : f32 to vector<384x4xf32>
    %27 = vector.extract_strided_slice %25 {offsets = [7, 0], sizes = [384, 4], strides = [1, 1]} : vector<448x4xf32> to vector<384x4xf32>
    %28 = arith.truncf %27 : vector<384x4xf32> to vector<384x4xbf16>
    %c0_19 = arith.constant 0 : index
    %c0_20 = arith.constant 0 : index
    %c0_21 = arith.constant 0 : index
    %29 = vector.load %arg8[%c0_19, %c0_20, %c0_21] : memref<9x4x4xbf16, #tpu.memory_space<vmem>>, vector<1x4x4xbf16>
    %30 = vector.shape_cast %29 : vector<1x4x4xbf16> to vector<4x4xbf16>
    %cst_22 = arith.constant dense<0.000000e+00> : vector<384x4xf32>
    %31 = tpu.matmul %28, %30, %cst_22 {dimension_numbers = #tpu.dot_dimension_numbers<[1], [0], [0], [1], [0, 0, 1, 1], [], []>} : vector<384x4xbf16>, vector<4x4xbf16>, vector<384x4xf32> -> vector<384x4xf32>
    %32 = arith.addf %26, %31 : vector<384x4xf32>
    %33 = vector.extract_strided_slice %25 {offsets = [8, 0], sizes = [384, 4], strides = [1, 1]} : vector<448x4xf32> to vector<384x4xf32>
    %34 = arith.truncf %33 : vector<384x4xf32> to vector<384x4xbf16>
    %c1 = arith.constant 1 : index
    %c0_23 = arith.constant 0 : index
    %c0_24 = arith.constant 0 : index
    %35 = vector.load %arg8[%c1, %c0_23, %c0_24] : memref<9x4x4xbf16, #tpu.memory_space<vmem>>, vector<1x4x4xbf16>
    %36 = vector.shape_cast %35 : vector<1x4x4xbf16> to vector<4x4xbf16>
    %cst_25 = arith.constant dense<0.000000e+00> : vector<384x4xf32>
    %37 = tpu.matmul %34, %36, %cst_25 {dimension_numbers = #tpu.dot_dimension_numbers<[1], [0], [0], [1], [0, 0, 1, 1], [], []>} : vector<384x4xbf16>, vector<4x4xbf16>, vector<384x4xf32> -> vector<384x4xf32>
    %38 = arith.addf %32, %37 : vector<384x4xf32>
    %39 = vector.extract_strided_slice %25 {offsets = [9, 0], sizes = [384, 4], strides = [1, 1]} : vector<448x4xf32> to vector<384x4xf32>
    %40 = arith.truncf %39 : vector<384x4xf32> to vector<384x4xbf16>
    %c2 = arith.constant 2 : index
    %c0_26 = arith.constant 0 : index
    %c0_27 = arith.constant 0 : index
    %41 = vector.load %arg8[%c2, %c0_26, %c0_27] : memref<9x4x4xbf16, #tpu.memory_space<vmem>>, vector<1x4x4xbf16>
    %42 = vector.shape_cast %41 : vector<1x4x4xbf16> to vector<4x4xbf16>
    %cst_28 = arith.constant dense<0.000000e+00> : vector<384x4xf32>
    %43 = tpu.matmul %40, %42, %cst_28 {dimension_numbers = #tpu.dot_dimension_numbers<[1], [0], [0], [1], [0, 0, 1, 1], [], []>} : vector<384x4xbf16>, vector<4x4xbf16>, vector<384x4xf32> -> vector<384x4xf32>
    %44 = arith.addf %38, %43 : vector<384x4xf32>
    %45 = vector.extract_strided_slice %25 {offsets = [31, 0], sizes = [384, 4], strides = [1, 1]} : vector<448x4xf32> to vector<384x4xf32>
    %46 = arith.truncf %45 : vector<384x4xf32> to vector<384x4xbf16>
    %c3 = arith.constant 3 : index
    %c0_29 = arith.constant 0 : index
    %c0_30 = arith.constant 0 : index
    %47 = vector.load %arg8[%c3, %c0_29, %c0_30] : memref<9x4x4xbf16, #tpu.memory_space<vmem>>, vector<1x4x4xbf16>
    %48 = vector.shape_cast %47 : vector<1x4x4xbf16> to vector<4x4xbf16>
    %cst_31 = arith.constant dense<0.000000e+00> : vector<384x4xf32>
    %49 = tpu.matmul %46, %48, %cst_31 {dimension_numbers = #tpu.dot_dimension_numbers<[1], [0], [0], [1], [0, 0, 1, 1], [], []>} : vector<384x4xbf16>, vector<4x4xbf16>, vector<384x4xf32> -> vector<384x4xf32>
    %50 = arith.addf %44, %49 : vector<384x4xf32>
    %51 = vector.extract_strided_slice %25 {offsets = [32, 0], sizes = [384, 4], strides = [1, 1]} : vector<448x4xf32> to vector<384x4xf32>
    %52 = arith.truncf %51 : vector<384x4xf32> to vector<384x4xbf16>
    %c4 = arith.constant 4 : index
    %c0_32 = arith.constant 0 : index
    %c0_33 = arith.constant 0 : index
    %53 = vector.load %arg8[%c4, %c0_32, %c0_33] : memref<9x4x4xbf16, #tpu.memory_space<vmem>>, vector<1x4x4xbf16>
    %54 = vector.shape_cast %53 : vector<1x4x4xbf16> to vector<4x4xbf16>
    %cst_34 = arith.constant dense<0.000000e+00> : vector<384x4xf32>
    %55 = tpu.matmul %52, %54, %cst_34 {dimension_numbers = #tpu.dot_dimension_numbers<[1], [0], [0], [1], [0, 0, 1, 1], [], []>} : vector<384x4xbf16>, vector<4x4xbf16>, vector<384x4xf32> -> vector<384x4xf32>
    %56 = arith.addf %50, %55 : vector<384x4xf32>
    %57 = vector.extract_strided_slice %25 {offsets = [33, 0], sizes = [384, 4], strides = [1, 1]} : vector<448x4xf32> to vector<384x4xf32>
    %58 = arith.truncf %57 : vector<384x4xf32> to vector<384x4xbf16>
    %c5 = arith.constant 5 : index
    %c0_35 = arith.constant 0 : index
    %c0_36 = arith.constant 0 : index
    %59 = vector.load %arg8[%c5, %c0_35, %c0_36] : memref<9x4x4xbf16, #tpu.memory_space<vmem>>, vector<1x4x4xbf16>
    %60 = vector.shape_cast %59 : vector<1x4x4xbf16> to vector<4x4xbf16>
    %cst_37 = arith.constant dense<0.000000e+00> : vector<384x4xf32>
    %61 = tpu.matmul %58, %60, %cst_37 {dimension_numbers = #tpu.dot_dimension_numbers<[1], [0], [0], [1], [0, 0, 1, 1], [], []>} : vector<384x4xbf16>, vector<4x4xbf16>, vector<384x4xf32> -> vector<384x4xf32>
    %62 = arith.addf %56, %61 : vector<384x4xf32>
    %63 = vector.extract_strided_slice %25 {offsets = [55, 0], sizes = [384, 4], strides = [1, 1]} : vector<448x4xf32> to vector<384x4xf32>
    %64 = arith.truncf %63 : vector<384x4xf32> to vector<384x4xbf16>
    %c6 = arith.constant 6 : index
    %c0_38 = arith.constant 0 : index
    %c0_39 = arith.constant 0 : index
    %65 = vector.load %arg8[%c6, %c0_38, %c0_39] : memref<9x4x4xbf16, #tpu.memory_space<vmem>>, vector<1x4x4xbf16>
    %66 = vector.shape_cast %65 : vector<1x4x4xbf16> to vector<4x4xbf16>
    %cst_40 = arith.constant dense<0.000000e+00> : vector<384x4xf32>
    %67 = tpu.matmul %64, %66, %cst_40 {dimension_numbers = #tpu.dot_dimension_numbers<[1], [0], [0], [1], [0, 0, 1, 1], [], []>} : vector<384x4xbf16>, vector<4x4xbf16>, vector<384x4xf32> -> vector<384x4xf32>
    %68 = arith.addf %62, %67 : vector<384x4xf32>
    %69 = vector.extract_strided_slice %25 {offsets = [56, 0], sizes = [384, 4], strides = [1, 1]} : vector<448x4xf32> to vector<384x4xf32>
    %70 = arith.truncf %69 : vector<384x4xf32> to vector<384x4xbf16>
    %c7 = arith.constant 7 : index
    %c0_41 = arith.constant 0 : index
    %c0_42 = arith.constant 0 : index
    %71 = vector.load %arg8[%c7, %c0_41, %c0_42] : memref<9x4x4xbf16, #tpu.memory_space<vmem>>, vector<1x4x4xbf16>
    %72 = vector.shape_cast %71 : vector<1x4x4xbf16> to vector<4x4xbf16>
    %cst_43 = arith.constant dense<0.000000e+00> : vector<384x4xf32>
    %73 = tpu.matmul %70, %72, %cst_43 {dimension_numbers = #tpu.dot_dimension_numbers<[1], [0], [0], [1], [0, 0, 1, 1], [], []>} : vector<384x4xbf16>, vector<4x4xbf16>, vector<384x4xf32> -> vector<384x4xf32>
    %74 = arith.addf %68, %73 : vector<384x4xf32>
    %75 = vector.extract_strided_slice %25 {offsets = [57, 0], sizes = [384, 4], strides = [1, 1]} : vector<448x4xf32> to vector<384x4xf32>
    %76 = arith.truncf %75 : vector<384x4xf32> to vector<384x4xbf16>
    %c8 = arith.constant 8 : index
    %c0_44 = arith.constant 0 : index
    %c0_45 = arith.constant 0 : index
    %77 = vector.load %arg8[%c8, %c0_44, %c0_45] : memref<9x4x4xbf16, #tpu.memory_space<vmem>>, vector<1x4x4xbf16>
    %78 = vector.shape_cast %77 : vector<1x4x4xbf16> to vector<4x4xbf16>
    %cst_46 = arith.constant dense<0.000000e+00> : vector<384x4xf32>
    %79 = tpu.matmul %76, %78, %cst_46 {dimension_numbers = #tpu.dot_dimension_numbers<[1], [0], [0], [1], [0, 0, 1, 1], [], []>} : vector<384x4xbf16>, vector<4x4xbf16>, vector<384x4xf32> -> vector<384x4xf32>
    %80 = arith.addf %74, %79 : vector<384x4xf32>
    %c0_47 = arith.constant 0 : index
    %c0_48 = arith.constant 0 : index
    %81 = vector.load %arg9[%c0_47, %c0_48] : memref<1x4xf32, #tpu.memory_space<vmem>>, vector<1x4xf32>
    %82 = vector.broadcast %81 : vector<1x4xf32> to vector<384x4xf32>
    %83 = arith.addf %80, %82 : vector<384x4xf32>
    %cst_49 = arith.constant 0.000000e+00 : f32
    %84 = vector.broadcast %cst_49 : f32 to vector<384x4xf32>
    %85 = arith.maximumf %83, %84 : vector<384x4xf32>
    %86 = arith.truncf %85 : vector<384x4xf32> to vector<384x4xbf16>
    %c0_50 = arith.constant 0 : index
    %c0_51 = arith.constant 0 : index
    %87 = vector.load %arg10[%c0_50, %c0_51] : memref<4x16xbf16, #tpu.memory_space<vmem>>, vector<4x16xbf16>
    %cst_52 = arith.constant dense<0.000000e+00> : vector<384x16xf32>
    %88 = tpu.matmul %86, %87, %cst_52 {dimension_numbers = #tpu.dot_dimension_numbers<[1], [0], [0], [1], [0, 0, 1, 1], [], []>} : vector<384x4xbf16>, vector<4x16xbf16>, vector<384x16xf32> -> vector<384x16xf32>
    %89 = vector.extract_strided_slice %6 {offsets = [24, 0], sizes = [384, 16], strides = [1, 1]} : vector<432x16xf32> to vector<384x16xf32>
    %c0_53 = arith.constant 0 : index
    %c0_54 = arith.constant 0 : index
    %90 = vector.load %arg11[%c0_53, %c0_54] : memref<1x16xf32, #tpu.memory_space<vmem>>, vector<1x16xf32>
    %91 = vector.broadcast %90 : vector<1x16xf32> to vector<384x16xf32>
    %92 = arith.addf %88, %91 : vector<384x16xf32>
    %93 = arith.addf %92, %89 : vector<384x16xf32>
    %cst_55 = arith.constant 0.000000e+00 : f32
    %94 = vector.broadcast %cst_55 : f32 to vector<384x16xf32>
    %95 = arith.maximumf %93, %94 : vector<384x16xf32>
    %c0_56 = arith.constant 0 : index
    %c0_57 = arith.constant 0 : index
    %c0_58 = arith.constant 0 : index
    %96 = vector.load %arg12[%c0_56, %c0_57, %c0_58] : memref<1x384x16xf32, #tpu.memory_space<vmem>>, vector<1x384x16xf32>
    %97 = vector.shape_cast %96 : vector<1x384x16xf32> to vector<384x16xf32>
    %98 = vector.shape_cast %95 : vector<384x16xf32> to vector<1x384x16xf32>
    tpu.vector_store %arg12[%c0_56, %c0_57, %c0_58], %98 {strides = array<i32>} : memref<1x384x16xf32, #tpu.memory_space<vmem>>, vector<1x384x16xf32>,
    return
  }
  func.func @transform_0(%arg0: i32, %arg1: i32) -> (i32, i32, i32) {
    %c0_i32 = arith.constant 0 : i32
    %c0_i32_0 = arith.constant 0 : i32
    return %arg0, %arg1, %c0_i32 : i32, i32, i32
  }
  func.func @transform_1(%arg0: i32, %arg1: i32) -> (i32, i32, i32) {
    %c1_i32 = arith.constant 1 : i32
    %0 = arith.addi %arg1, %c1_i32 : i32
    %c16_i32 = arith.constant 16 : i32
    %1 = arith.muli %0, %c16_i32 : i32
    %c0_i32 = arith.constant 0 : i32
    %c0_i32_0 = arith.constant 0 : i32
    return %arg0, %1, %c0_i32 : i32, i32, i32
  }
  func.func @transform_2(%arg0: i32, %arg1: i32) -> (i32, i32, i32) {
    %c1_i32 = arith.constant 1 : i32
    %0 = arith.addi %arg1, %c1_i32 : i32
    %c16_i32 = arith.constant 16 : i32
    %1 = arith.muli %0, %c16_i32 : i32
    %c1_i32_0 = arith.constant 1 : i32
    %2 = arith.addi %1, %c1_i32_0 : i32
    %c0_i32 = arith.constant 0 : i32
    %c0_i32_1 = arith.constant 0 : i32
    return %arg0, %2, %c0_i32 : i32, i32, i32
  }
  func.func @transform_3(%arg0: i32, %arg1: i32) -> (i32, i32) {
    %c0_i32 = arith.constant 0 : i32
    %c0_i32_0 = arith.constant 0 : i32
    return %arg1, %c0_i32 : i32, i32
  }
  func.func @transform_4(%arg0: i32, %arg1: i32) -> (i32, i32) {
    %c0_i32 = arith.constant 0 : i32
    %c0_i32_0 = arith.constant 0 : i32
    %c0_i32_1 = arith.constant 0 : i32
    return %c0_i32, %c0_i32_0 : i32, i32
  }
  func.func @transform_5(%arg0: i32, %arg1: i32) -> (i32, i32) {
    %c0_i32 = arith.constant 0 : i32
    %c0_i32_0 = arith.constant 0 : i32
    %c0_i32_1 = arith.constant 0 : i32
    return %c0_i32, %c0_i32_0 : i32, i32
  }
  func.func @transform_6(%arg0: i32, %arg1: i32) -> (i32, i32, i32) {
    %c0_i32 = arith.constant 0 : i32
    %c0_i32_0 = arith.constant 0 : i32
    %c0_i32_1 = arith.constant 0 : i32
    %c0_i32_2 = arith.constant 0 : i32
    return %c0_i32, %c0_i32_0, %c0_i32_1 : i32, i32, i32
  }
  func.func @transform_7(%arg0: i32, %arg1: i32) -> (i32, i32) {
    %c0_i32 = arith.constant 0 : i32
    %c0_i32_0 = arith.constant 0 : i32
    %c0_i32_1 = arith.constant 0 : i32
    return %c0_i32, %c0_i32_0 : i32, i32
  }
  func.func @transform_8(%arg0: i32, %arg1: i32) -> (i32, i32) {
    %c0_i32 = arith.constant 0 : i32
    %c0_i32_0 = arith.constant 0 : i32
    %c0_i32_1 = arith.constant 0 : i32
    return %c0_i32, %c0_i32_0 : i32, i32
  }
  func.func @transform_9(%arg0: i32, %arg1: i32) -> (i32, i32) {
    %c0_i32 = arith.constant 0 : i32
    %c0_i32_0 = arith.constant 0 : i32
    %c0_i32_1 = arith.constant 0 : i32
    return %c0_i32, %c0_i32_0 : i32, i32
  }
  func.func @transform_10(%arg0: i32, %arg1: i32) -> (i32, i32, i32) {
    %c0_i32 = arith.constant 0 : i32
    %c0_i32_0 = arith.constant 0 : i32
    return %arg0, %arg1, %c0_i32 : i32, i32, i32
  }
}

</mosaic_0001>

<llo_original>
// kernel: bottleneck_forward.1
$region0: #{bottleneck_forward.1}
  #allocation0 [shape = 'u32[]', space=smem, size = 0x4, offset = 0x4, fixed_abs, tag = 'smem constant byte address 0x4 - core index']
  #allocation1 [shape = 'u32[144,128]{1,0:T(1,128)}', space=vmem, size = 0x12000, scoped, tag = 'internal scratch']
  %s0 = inlined_call_operand.vmem [shape: f32[2,432,16], index: 0, kind: input, shape index: {}, may-alias: {0,1,2}]
  %s1 = inlined_call_operand.vmem [shape: f32[2,432,16], index: 1, kind: input, shape index: {}, may-alias: {0,1,2}]
  %s2 = inlined_call_operand.vmem [shape: f32[2,432,16], index: 2, kind: input, shape index: {}, may-alias: {0,1,2}]
  %s3 = inlined_call_operand.vmem [shape: f32[432,1], index: 3, kind: input, shape index: {}]
  %s4 = inlined_call_operand.vmem [shape: bf16[16,4], index: 4, kind: input, shape index: {}]
  %s5 = inlined_call_operand.vmem [shape: f32[1,4], index: 5, kind: input, shape index: {}]
  %s6 = inlined_call_operand.vmem [shape: bf16[9,4,4], index: 6, kind: input, shape index: {}]
  %s7 = inlined_call_operand.vmem [shape: f32[1,4], index: 7, kind: input, shape index: {}]
  %s8 = inlined_call_operand.vmem [shape: bf16[4,16], index: 8, kind: input, shape index: {}]
  %s9 = inlined_call_operand.vmem [shape: f32[1,16], index: 9, kind: input, shape index: {}]
  %s10 = inlined_call_operand.vmem [shape: f32[2,384,16], index: 10, kind: output, shape index: {}]
  %s11 = sld [smem:[#allocation0]]
  $region73: #{bottleneck_forward.1} parent=0
    _
  %s13 = ssub.s32 1, %s11
  %s14 = scalar_select 0, %s13, %s11
  loop: start=0, step=1, limit=4
  $region2: #{bottleneck_forward.1} parent=0 // loop_pre_header
    _
  $region3: #{bottleneck_forward.1} parent=0 // loop_header
    %s16 = sphi 0, %s20
    %p17 = scmp.ge.s32.totalorder %s16, 4
    %s23 = sphi 0, %s35
    %s24 = sphi 0, %s31
    %s25 = sphi 0, %s23
    %s26 = sphi 0, %s24
    %s27 = sphi 0, %s25
    %s28 = sphi 0, %s26
    %s40 = sphi 0, %s42
    %s43 = sphi 0, %s40
    %s44 = sphi 0, %s43
    %s60 = sphi 0, %s44
    %s72 = sphi 0, %s74
    %s75 = sphi 0, %s72
    %s76 = sphi 0, %s75
    %s92 = sphi 0, %s76
    %s106 = sphi 0, %s108
    %s109 = sphi 0, %s106
    %s110 = sphi 0, %s109
    %s126 = sphi 0, %s110
    %s132 = sphi 0, %s134
    %s135 = sphi 0, %s132
    %s136 = sphi 0, %s135
    %s152 = sphi 0, %s136
    %s156 = sphi 0, %s156
    %s158 = sphi 0, %s156
    %s159 = sphi 0, %s158
    %s173 = sphi 0, %s159
    %s177 = sphi 0, %s177
    %s179 = sphi 0, %s177
    %s180 = sphi 0, %s179
    %s194 = sphi 0, %s180
    %s198 = sphi 0, %s198
    %s200 = sphi 0, %s198
    %s201 = sphi 0, %s200
    %s215 = sphi 0, %s201
    %s219 = sphi 0, %s219
    %s221 = sphi 0, %s219
    %s222 = sphi 0, %s221
    %s236 = sphi 0, %s222
    %s240 = sphi 0, %s240
    %s242 = sphi 0, %s240
    %s243 = sphi 0, %s242
    %s257 = sphi 0, %s243
    %s261 = sphi 0, %s261
    %s263 = sphi 0, %s261
    %s264 = sphi 0, %s263
    %s278 = sphi 0, %s264
    %s286 = sphi 0, %s288
    %s289 = sphi 0, %s286
    %s290 = sphi 0, %s289
    %s306 = sphi 0, %s290
  $region4: #{bottleneck_forward.1} parent=0 // loop_header_branch
    %19 = sbr.rel (%p17) target = $region8
  $region5: #{bottleneck_forward.1} parent=0 // loop_body
    %s21 = ssub.s32 %s16, 1
    %s22 = ssub.s32 %s16, 2
    %s29 = sadd.s32 1, %s24
    %p30 = scmp.ge.s32.totalorder %s29, 1
    %s31 = scalar_select %p30, 0, %s29
    %s32 = sadd.s32 1, %s23
    %s33 = scalar_select %p30, %s32, %s23
    %p34 = scmp.ge.s32.totalorder %s33, 2
    %s35 = scalar_select %p34, 0, %s33
    %s36 = ssub.s32 %s23, %s35
    %s37 = ssub.s32 %s24, %s31
    %s38 = sor.u32 %s36, %s37
    %p39 = scmp.eq.s32.totalorder %s38, 0
    %s41 = sadd.s32 %s40, 1
    %s42 = scalar_select %p39, %s40, %s41
    %p45 = pneg %p39
    %p46 = scmp.eq.s32.totalorder %s16, 1
    %p47 = por %p45, %p46
    %p48 = scmp.ne.s32.totalorder %s40, %s43
    %p49 = scmp.eq.s32.totalorder %s16, 0
    %p50 = por %p48, %p49
    %p51 = scmp.ne.s32.totalorder %s40, %s43
    %p52 = scmp.eq.s32.totalorder %s21, 1
    %p53 = por %p51, %p52
    %p54 = scmp.ne.s32.totalorder %s43, %s44
    %p55 = scmp.eq.s32.totalorder %s21, 0
    %p56 = por %p54, %p55
    %p57 = scmp.ne.s32.totalorder %s43, %s44
    %p58 = scmp.eq.s32.totalorder %s22, 1
    %p59 = por %p57, %p58
    %p61 = scmp.ne.s32.totalorder %s44, %s60
    %p62 = scmp.eq.s32.totalorder %s22, 0
    %p63 = por %p61, %p62
    %s64 = sadd.s32 %s24, 1
    %s65 = smul.u32 %s64, 16
    %s66 = sadd.s32 %s31, 1
    %s67 = smul.u32 %s66, 16
    %s68 = ssub.s32 %s23, %s35
    %s69 = ssub.s32 %s65, %s67
    %s70 = sor.u32 %s68, %s69
    %p71 = scmp.eq.s32.totalorder %s70, 0
    %s73 = sadd.s32 %s72, 1
    %s74 = scalar_select %p71, %s72, %s73
    %p77 = pneg %p71
    %p78 = scmp.eq.s32.totalorder %s16, 1
    %p79 = por %p77, %p78
    %p80 = scmp.ne.s32.totalorder %s72, %s75
    %p81 = scmp.eq.s32.totalorder %s16, 0
    %p82 = por %p80, %p81
    %p83 = scmp.ne.s32.totalorder %s72, %s75
    %p84 = scmp.eq.s32.totalorder %s21, 1
    %p85 = por %p83, %p84
    %p86 = scmp.ne.s32.totalorder %s75, %s76
    %p87 = scmp.eq.s32.totalorder %s21, 0
    %p88 = por %p86, %p87
    %p89 = scmp.ne.s32.totalorder %s75, %s76
    %p90 = scmp.eq.s32.totalorder %s22, 1
    %p91 = por %p89, %p90
    %p93 = scmp.ne.s32.totalorder %s76, %s92
    %p94 = scmp.eq.s32.totalorder %s22, 0
    %p95 = por %p93, %p94
    %s96 = sadd.s32 %s24, 1
    %s97 = smul.u32 %s96, 16
    %s98 = sadd.s32 %s97, 1
    %s99 = sadd.s32 %s31, 1
    %s100 = smul.u32 %s99, 16
    %s101 = sadd.s32 %s100, 1
    %s102 = ssub.s32 %s23, %s35
    %s103 = ssub.s32 %s98, %s101
    %s104 = sor.u32 %s102, %s103
    %p105 = scmp.eq.s32.totalorder %s104, 0
    %s107 = sadd.s32 %s106, 1
    %s108 = scalar_select %p105, %s106, %s107
    %p111 = pneg %p105
    %p112 = scmp.eq.s32.totalorder %s16, 1
    %p113 = por %p111, %p112
    %p114 = scmp.ne.s32.totalorder %s106, %s109
    %p115 = scmp.eq.s32.totalorder %s16, 0
    %p116 = por %p114, %p115
    %p117 = scmp.ne.s32.totalorder %s106, %s109
    %p118 = scmp.eq.s32.totalorder %s21, 1
    %p119 = por %p117, %p118
    %p120 = scmp.ne.s32.totalorder %s109, %s110
    %p121 = scmp.eq.s32.totalorder %s21, 0
    %p122 = por %p120, %p121
    %p123 = scmp.ne.s32.totalorder %s109, %s110
    %p124 = scmp.eq.s32.totalorder %s22, 1
    %p125 = por %p123, %p124
    %p127 = scmp.ne.s32.totalorder %s110, %s126
    %p128 = scmp.eq.s32.totalorder %s22, 0
    %p129 = por %p127, %p128
    %s130 = ssub.s32 %s24, %s31
    %p131 = scmp.eq.s32.totalorder %s130, 0
    %s133 = sadd.s32 %s132, 1
    %s134 = scalar_select %p131, %s132, %s133
    %p137 = pneg %p131
    %p138 = scmp.eq.s32.totalorder %s16, 1
    %p139 = por %p137, %p138
    %p140 = scmp.ne.s32.totalorder %s132, %s135
    %p141 = scmp.eq.s32.totalorder %s16, 0
    %p142 = por %p140, %p141
    %p143 = scmp.ne.s32.totalorder %s132, %s135
    %p144 = scmp.eq.s32.totalorder %s21, 1
    %p145 = por %p143, %p144
    %p146 = scmp.ne.s32.totalorder %s135, %s136
    %p147 = scmp.eq.s32.totalorder %s21, 0
    %p148 = por %p146, %p147
    %p149 = scmp.ne.s32.totalorder %s135, %s136
    %p150 = scmp.eq.s32.totalorder %s22, 1
    %p151 = por %p149, %p150
    %p153 = scmp.ne.s32.totalorder %s136, %s152
    %p154 = scmp.eq.s32.totalorder %s22, 0
    %p155 = por %p153, %p154
    %s157 = sadd.s32 %s156, 1
    %p160 = scmp.eq.s32.totalorder %s16, 1
    %p161 = scmp.ne.s32.totalorder %s156, %s158
    %p162 = scmp.eq.s32.totalorder %s16, 0
    %p163 = por %p161, %p162
    %p164 = scmp.ne.s32.totalorder %s156, %s158
    %p165 = scmp.eq.s32.totalorder %s21, 1
    %p166 = por %p164, %p165
    %p167 = scmp.ne.s32.totalorder %s158, %s159
    %p168 = scmp.eq.s32.totalorder %s21, 0
    %p169 = por %p167, %p168
    %p170 = scmp.ne.s32.totalorder %s158, %s159
    %p171 = scmp.eq.s32.totalorder %s22, 1
    %p172 = por %p170, %p171
    %p174 = scmp.ne.s32.totalorder %s159, %s173
    %p175 = scmp.eq.s32.totalorder %s22, 0
    %p176 = por %p174, %p175
    %s178 = sadd.s32 %s177, 1
    %p181 = scmp.eq.s32.totalorder %s16, 1
    %p182 = scmp.ne.s32.totalorder %s177, %s179
    %p183 = scmp.eq.s32.totalorder %s16, 0
    %p184 = por %p182, %p183
    %p185 = scmp.ne.s32.totalorder %s177, %s179
    %p186 = scmp.eq.s32.totalorder %s21, 1
    %p187 = por %p185, %p186
    %p188 = scmp.ne.s32.totalorder %s179, %s180
    %p189 = scmp.eq.s32.totalorder %s21, 0
    %p190 = por %p188, %p189
    %p191 = scmp.ne.s32.totalorder %s179, %s180
    %p192 = scmp.eq.s32.totalorder %s22, 1
    %p193 = por %p191, %p192
    %p195 = scmp.ne.s32.totalorder %s180, %s194
    %p196 = scmp.eq.s32.totalorder %s22, 0
    %p197 = por %p195, %p196
    %s199 = sadd.s32 %s198, 1
    %p202 = scmp.eq.s32.totalorder %s16, 1
    %p203 = scmp.ne.s32.totalorder %s198, %s200
    %p204 = scmp.eq.s32.totalorder %s16, 0
    %p205 = por %p203, %p204
    %p206 = scmp.ne.s32.totalorder %s198, %s200
    %p207 = scmp.eq.s32.totalorder %s21, 1
    %p208 = por %p206, %p207
    %p209 = scmp.ne.s32.totalorder %s200, %s201
    %p210 = scmp.eq.s32.totalorder %s21, 0
    %p211 = por %p209, %p210
    %p212 = scmp.ne.s32.totalorder %s200, %s201
    %p213 = scmp.eq.s32.totalorder %s22, 1
    %p214 = por %p212, %p213
    %p216 = scmp.ne.s32.totalorder %s201, %s215
    %p217 = scmp.eq.s32.totalorder %s22, 0
    %p218 = por %p216, %p217
    %s220 = sadd.s32 %s219, 1
    %p223 = scmp.eq.s32.totalorder %s16, 1
    %p224 = scmp.ne.s32.totalorder %s219, %s221
    %p225 = scmp.eq.s32.totalorder %s16, 0
    %p226 = por %p224, %p225
    %p227 = scmp.ne.s32.totalorder %s219, %s221
    %p228 = scmp.eq.s32.totalorder %s21, 1
    %p229 = por %p227, %p228
    %p230 = scmp.ne.s32.totalorder %s221, %s222
    %p231 = scmp.eq.s32.totalorder %s21, 0
    %p232 = por %p230, %p231
    %p233 = scmp.ne.s32.totalorder %s221, %s222
    %p234 = scmp.eq.s32.totalorder %s22, 1
    %p235 = por %p233, %p234
    %p237 = scmp.ne.s32.totalorder %s222, %s236
    %p238 = scmp.eq.s32.totalorder %s22, 0
    %p239 = por %p237, %p238
    %s241 = sadd.s32 %s240, 1
    %p244 = scmp.eq.s32.totalorder %s16, 1
    %p245 = scmp.ne.s32.totalorder %s240, %s242
    %p246 = scmp.eq.s32.totalorder %s16, 0
    %p247 = por %p245, %p246
    %p248 = scmp.ne.s32.totalorder %s240, %s242
    %p249 = scmp.eq.s32.totalorder %s21, 1
    %p250 = por %p248, %p249
    %p251 = scmp.ne.s32.totalorder %s242, %s243
    %p252 = scmp.eq.s32.totalorder %s21, 0
    %p253 = por %p251, %p252
    %p254 = scmp.ne.s32.totalorder %s242, %s243
    %p255 = scmp.eq.s32.totalorder %s22, 1
    %p256 = por %p254, %p255
    %p258 = scmp.ne.s32.totalorder %s243, %s257
    %p259 = scmp.eq.s32.totalorder %s22, 0
    %p260 = por %p258, %p259
    %s262 = sadd.s32 %s261, 1
    %p265 = scmp.eq.s32.totalorder %s16, 1
    %p266 = scmp.ne.s32.totalorder %s261, %s263
    %p267 = scmp.eq.s32.totalorder %s16, 0
    %p268 = por %p266, %p267
    %p269 = scmp.ne.s32.totalorder %s261, %s263
    %p270 = scmp.eq.s32.totalorder %s21, 1
    %p271 = por %p269, %p270
    %p272 = scmp.ne.s32.totalorder %s263, %s264
    %p273 = scmp.eq.s32.totalorder %s21, 0
    %p274 = por %p272, %p273
    %p275 = scmp.ne.s32.totalorder %s263, %s264
    %p276 = scmp.eq.s32.totalorder %s22, 1
    %p277 = por %p275, %p276
    %p279 = scmp.ne.s32.totalorder %s264, %s278
    %p280 = scmp.eq.s32.totalorder %s22, 0
    %p281 = por %p279, %p280
    %s282 = ssub.s32 %s23, %s35
    %s283 = ssub.s32 %s24, %s31
    %s284 = sor.u32 %s282, %s283
    %p285 = scmp.eq.s32.totalorder %s284, 0
    %s287 = sadd.s32 %s286, 1
    %s288 = scalar_select %p285, %s286, %s287
    %p291 = pneg %p285
    %p292 = scmp.eq.s32.totalorder %s16, 1
    %p293 = por %p291, %p292
    %p294 = scmp.ne.s32.totalorder %s286, %s289
    %p295 = scmp.eq.s32.totalorder %s16, 0
    %p296 = por %p294, %p295
    %p297 = scmp.ne.s32.totalorder %s286, %s289
    %p298 = scmp.eq.s32.totalorder %s21, 1
    %p299 = por %p297, %p298
    %p300 = scmp.ne.s32.totalorder %s289, %s290
    %p301 = scmp.eq.s32.totalorder %s21, 0
    %p302 = por %p300, %p301
    %p303 = scmp.ne.s32.totalorder %s289, %s290
    %p304 = scmp.eq.s32.totalorder %s22, 1
    %p305 = por %p303, %p304
    %p307 = scmp.ne.s32.totalorder %s290, %s306
    %p308 = scmp.eq.s32.totalorder %s22, 0
    %p309 = por %p307, %p308
    %p310 = scmp.le.s32.totalorder 1, %s16
    %p311 = scmp.lt.s32.totalorder %s16, 3
    %p312 = pnand %p310, %p311
    %p313 = pneg %p312
    // Predicated region
    $region9: #{bottleneck_forward.1} parent=5 // pred_check
      _
    $region10: #{bottleneck_forward.1} parent=5 // pred_check_branch
      %315 = sbr.rel (%p312) target = $region12
    $region11: #{bottleneck_forward.1} parent=5 // pred_region
      %s316 = ssub.s32 %s16, 1
      // Predicated region
      $region13: #{bottleneck_forward.1} parent=11 // pred_check
        %p317 = pneg %p148
      $region14: #{bottleneck_forward.1} parent=11 // pred_check_branch
        %319 = sbr.rel (%p317) target = $region16
      $region15: #{bottleneck_forward.1} parent=11 // pred_region
        %s320 = smul.u32 48, %s26
        %s321 = ssub.s32 54, %s320
        %p322 = scmp.lt.s32.totalorder %s321, 48
        %s323 = scalar_select %p322, %s321, 48
        %s324 = smul.u32 128, %s323
        %p325 = scmp.lt.s32.totalorder %s320, 53
        %s326 = scalar_select %p325, %s320, 53
        %s327 = smul.addr %s326, 8
        %s328 = scalar_lea.vmem %s3, %s327
        %s329 = smul.u32 48, %s26
        %s330 = ssub.s32 54, %s329
        %p331 = scmp.lt.s32.totalorder %s330, 48
        %s332 = scalar_select %p331, %s330, 48
        %s333 = smul.u32 128, %s332
      $region16: #{bottleneck_forward.1} parent=11 // pred_fallthru
        _
      // Predicated region
      $region17: #{bottleneck_forward.1} parent=11 // pred_check
        %p334 = pneg %p169
      $region18: #{bottleneck_forward.1} parent=11 // pred_check_branch
        %336 = sbr.rel (%p334) target = $region20
      $region19: #{bottleneck_forward.1} parent=11 // pred_region
        _
      $region20: #{bottleneck_forward.1} parent=11 // pred_fallthru
        _
      // Predicated region
      $region21: #{bottleneck_forward.1} parent=11 // pred_check
        %p337 = pneg %p190
      $region22: #{bottleneck_forward.1} parent=11 // pred_check_branch
        %339 = sbr.rel (%p337) target = $region24
      $region23: #{bottleneck_forward.1} parent=11 // pred_region
        _
      $region24: #{bottleneck_forward.1} parent=11 // pred_fallthru
        _
      // Predicated region
      $region25: #{bottleneck_forward.1} parent=11 // pred_check
        %p340 = pneg %p211
      $region26: #{bottleneck_forward.1} parent=11 // pred_check_branch
        %342 = sbr.rel (%p340) target = $region28
      $region27: #{bottleneck_forward.1} parent=11 // pred_region
        _
      $region28: #{bottleneck_forward.1} parent=11 // pred_fallthru
        _
      // Predicated region
      $region29: #{bottleneck_forward.1} parent=11 // pred_check
        %p343 = pneg %p232
      $region30: #{bottleneck_forward.1} parent=11 // pred_check_branch
        %345 = sbr.rel (%p343) target = $region32
      $region31: #{bottleneck_forward.1} parent=11 // pred_region
        _
      $region32: #{bottleneck_forward.1} parent=11 // pred_fallthru
        _
      // Predicated region
      $region33: #{bottleneck_forward.1} parent=11 // pred_check
        %p346 = pneg %p253
      $region34: #{bottleneck_forward.1} parent=11 // pred_check_branch
        %348 = sbr.rel (%p346) target = $region36
      $region35: #{bottleneck_forward.1} parent=11 // pred_region
        _
      $region36: #{bottleneck_forward.1} parent=11 // pred_fallthru
        _
      // Predicated region
      $region37: #{bottleneck_forward.1} parent=11 // pred_check
        %p349 = pneg %p274
      $region38: #{bottleneck_forward.1} parent=11 // pred_check_branch
        %351 = sbr.rel (%p349) target = $region40
      $region39: #{bottleneck_forward.1} parent=11 // pred_region
        _
      $region40: #{bottleneck_forward.1} parent=11 // pred_fallthru
        _
    $region12: #{bottleneck_forward.1} parent=5 // pred_fallthru
      _
    %p352 = scmp.lt.s32.totalorder %s16, 2
    // Predicated region
    $region41: #{bottleneck_forward.1} parent=5 // pred_check
      %p353 = pneg %p352
    $region42: #{bottleneck_forward.1} parent=5 // pred_check_branch
      %355 = sbr.rel (%p353) target = $region44
    $region43: #{bottleneck_forward.1} parent=5 // pred_region
      // Predicated region
      $region45: #{bottleneck_forward.1} parent=43 // pred_check
        %p356 = pneg %p50
      $region46: #{bottleneck_forward.1} parent=43 // pred_check_branch
        %358 = sbr.rel (%p356) target = $region48
      $region47: #{bottleneck_forward.1} parent=43 // pred_region
        %s359 = smul.u32 48, %s24
        %s360 = ssub.s32 54, %s359
        %p361 = scmp.lt.s32.totalorder %s360, 48
        %s362 = scalar_select %p361, %s360, 48
        %s363 = smul.u32 128, %s362
        %p364 = scmp.lt.s32.totalorder %s23, 1
        %s365 = scalar_select %p364, %s23, 1
        %p366 = scmp.lt.s32.totalorder %s359, 53
        %s367 = scalar_select %p366, %s359, 53
        %s368 = smul.addr %s365, 54
        %s369 = sadd.s32 %s367, %s368
        %s370 = smul.addr %s369, 8
        %s371 = scalar_lea.vmem %s0, %s370
        %s372 = smul.u32 48, %s24
        %s373 = ssub.s32 54, %s372
        %p374 = scmp.lt.s32.totalorder %s373, 48
        %s375 = scalar_select %p374, %s373, 48
        %s376 = smul.u32 128, %s375
      $region48: #{bottleneck_forward.1} parent=43 // pred_fallthru
        _
      // Predicated region
      $region49: #{bottleneck_forward.1} parent=43 // pred_check
        %p377 = pneg %p82
      $region50: #{bottleneck_forward.1} parent=43 // pred_check_branch
        %379 = sbr.rel (%p377) target = $region52
      $region51: #{bottleneck_forward.1} parent=43 // pred_region
        %s380 = sadd.s32 %s24, 1
        %s381 = smul.u32 %s380, 16
        %s382 = smul.u32 3, %s381
        %p383 = scmp.lt.s32.totalorder %s23, 1
        %s384 = scalar_select %p383, %s23, 1
        %p385 = scmp.lt.s32.totalorder %s382, 53
        %s386 = scalar_select %p385, %s382, 53
        %s387 = smul.addr %s384, 54
        %s388 = sadd.s32 %s386, %s387
        %s389 = smul.addr %s388, 8
        %s390 = scalar_lea.vmem %s1, %s389
        %s391 = sadd.s32 %s24, 1
        %s392 = smul.u32 %s391, 16
        %s393 = smul.u32 3, %s392
      $region52: #{bottleneck_forward.1} parent=43 // pred_fallthru
        _
      // Predicated region
      $region53: #{bottleneck_forward.1} parent=43 // pred_check
        %p394 = pneg %p116
      $region54: #{bottleneck_forward.1} parent=43 // pred_check_branch
        %396 = sbr.rel (%p394) target = $region56
      $region55: #{bottleneck_forward.1} parent=43 // pred_region
        %s397 = sadd.s32 %s24, 1
        %s398 = smul.u32 %s397, 16
        %s399 = sadd.s32 %s398, 1
        %s400 = smul.u32 3, %s399
        %p401 = scmp.lt.s32.totalorder %s23, 1
        %s402 = scalar_select %p401, %s23, 1
        %p403 = scmp.lt.s32.totalorder %s400, 53
        %s404 = scalar_select %p403, %s400, 53
        %s405 = smul.addr %s402, 54
        %s406 = sadd.s32 %s404, %s405
        %s407 = smul.addr %s406, 8
        %s408 = scalar_lea.vmem %s2, %s407
        %s409 = sadd.s32 %s24, 1
        %s410 = smul.u32 %s409, 16
        %s411 = sadd.s32 %s410, 1
        %s412 = smul.u32 3, %s411
      $region56: #{bottleneck_forward.1} parent=43 // pred_fallthru
        _
    $region44: #{bottleneck_forward.1} parent=5 // pred_fallthru
      _
    %p413 = scmp.le.s32.totalorder 1, %s16
    %p414 = scmp.lt.s32.totalorder %s16, 3
    %p415 = pnand %p413, %p414
    %p416 = pneg %p415
    // Predicated region
    $region57: #{bottleneck_forward.1} parent=5 // pred_check
      _
    $region58: #{bottleneck_forward.1} parent=5 // pred_check_branch
      %418 = sbr.rel (%p415) target = $region60
    $region59: #{bottleneck_forward.1} parent=5 // pred_region
      %s419 = ssub.s32 %s16, 1
      %s420 = smul.u32 48, %s26
      %s421 = ssub.s32 54, %s420
      %p422 = scmp.lt.s32.totalorder %s421, 48
      %s423 = scalar_select %p422, %s421, 48
      %s424 = smul.u32 128, %s423
      %p425 = scmp.lt.s32.totalorder %s25, 1
      %s426 = scalar_select %p425, %s25, 1
      %p427 = scmp.lt.s32.totalorder %s420, 53
      %s428 = scalar_select %p427, %s420, 53
      %s429 = smul.addr %s426, 54
      %s430 = sadd.s32 %s428, %s429
      %s431 = smul.addr %s430, 8
      %s432 = scalar_lea.vmem %s0, %s431
      %p433 = pneg %p56
      %p434 = pneg %p53
      %s435 = sadd.s32 %s26, 1
      %s436 = smul.u32 %s435, 16
      %s437 = smul.u32 3, %s436
      %p438 = scmp.lt.s32.totalorder %s25, 1
      %s439 = scalar_select %p438, %s25, 1
      %p440 = scmp.lt.s32.totalorder %s437, 53
      %s441 = scalar_select %p440, %s437, 53
      %s442 = smul.addr %s439, 54
      %s443 = sadd.s32 %s441, %s442
      %s444 = smul.addr %s443, 8
      %s445 = scalar_lea.vmem %s1, %s444
      %p446 = pneg %p88
      %p447 = pneg %p85
      %s448 = sadd.s32 %s26, 1
      %s449 = smul.u32 %s448, 16
      %s450 = sadd.s32 %s449, 1
      %s451 = smul.u32 3, %s450
      %p452 = scmp.lt.s32.totalorder %s25, 1
      %s453 = scalar_select %p452, %s25, 1
      %p454 = scmp.lt.s32.totalorder %s451, 53
      %s455 = scalar_select %p454, %s451, 53
      %s456 = smul.addr %s453, 54
      %s457 = sadd.s32 %s455, %s456
      %s458 = smul.addr %s457, 8
      %s459 = scalar_lea.vmem %s2, %s458
      %p460 = pneg %p122
      %p461 = pneg %p119
      %s462 = smul.u32 48, %s26
      %s463 = ssub.s32 54, %s462
      %p464 = scmp.lt.s32.totalorder %s463, 48
      %s465 = scalar_select %p464, %s463, 48
      %s466 = smul.u32 128, %s465
      %p467 = scmp.lt.s32.totalorder %s462, 53
      %s468 = scalar_select %p467, %s462, 53
      %s469 = smul.addr %s468, 8
      %s470 = scalar_lea.vmem %s3, %s469
      %p471 = pneg %p148
      %p472 = pneg %p145
      %p473 = pneg %p169
      %p474 = pneg %p166
      %p475 = pneg %p190
      %p476 = pneg %p187
      %p477 = pneg %p211
      %p478 = pneg %p208
      %p479 = pneg %p232
      %p480 = pneg %p229
      %p481 = pneg %p253
      %p482 = pneg %p250
      %p483 = pneg %p274
      %p484 = pneg %p271
      %p485 = pneg %p302
      %p486 = pneg %p299
      %s487 = smul.u32 48, %s26
      %p488 = scmp.lt.s32.totalorder %s25, 1
      %s489 = scalar_select %p488, %s25, 1
      %p490 = scmp.lt.s32.totalorder %s487, 47
      %s491 = scalar_select %p490, %s487, 47
      %s492 = smul.addr %s489, 48
      %s493 = sadd.s32 %s491, %s492
      %s494 = smul.addr %s493, 8
      %s495 = scalar_lea.vmem %s10, %s494
      %s496 = smul.u32 48, %s26
      %s497 = ssub.s32 54, %s496
      %p498 = scmp.lt.s32.totalorder %s497, 48
      %s499 = scalar_select %p498, %s497, 48
      %s500 = smul.u32 128, %s499
      %p501 = scmp.lt.s32.totalorder %s25, 1
      %s502 = scalar_select %p501, %s25, 1
      %p503 = scmp.lt.s32.totalorder %s496, 53
      %s504 = scalar_select %p503, %s496, 53
      %s505 = smul.addr %s502, 54
      %s506 = sadd.s32 %s504, %s505
      %s507 = smul.addr %s506, 8
      %s508 = scalar_lea.vmem %s0, %s507
      %s509 = smul.u32 48, %s26
      %s510 = ssub.s32 54, %s509
      %p511 = scmp.lt.s32.totalorder %s510, 48
      %s512 = scalar_select %p511, %s510, 48
      %s513 = smul.u32 128, %s512
      %s514 = sadd.s32 %s26, 1
      %s515 = smul.u32 %s514, 16
      %s516 = smul.u32 3, %s515
      %p517 = scmp.lt.s32.totalorder %s25, 1
      %s518 = scalar_select %p517, %s25, 1
      %p519 = scmp.lt.s32.totalorder %s516, 53
      %s520 = scalar_select %p519, %s516, 53
      %s521 = smul.addr %s518, 54
      %s522 = sadd.s32 %s520, %s521
      %s523 = smul.addr %s522, 8
      %s524 = scalar_lea.vmem %s1, %s523
      %s525 = sadd.s32 %s26, 1
      %s526 = smul.u32 %s525, 16
      %s527 = smul.u32 3, %s526
      %s528 = sadd.s32 %s26, 1
      %s529 = smul.u32 %s528, 16
      %s530 = sadd.s32 %s529, 1
      %s531 = smul.u32 3, %s530
      %p532 = scmp.lt.s32.totalorder %s25, 1
      %s533 = scalar_select %p532, %s25, 1
      %p534 = scmp.lt.s32.totalorder %s531, 53
      %s535 = scalar_select %p534, %s531, 53
      %s536 = smul.addr %s533, 54
      %s537 = sadd.s32 %s535, %s536
      %s538 = smul.addr %s537, 8
      %s539 = scalar_lea.vmem %s2, %s538
      %s540 = sadd.s32 %s26, 1
      %s541 = smul.u32 %s540, 16
      %s542 = sadd.s32 %s541, 1
      %s543 = smul.u32 3, %s542
      %s544 = smul.u32 48, %s26
      %s545 = ssub.s32 54, %s544
      %p546 = scmp.lt.s32.totalorder %s545, 48
      %s547 = scalar_select %p546, %s545, 48
      %s548 = smul.u32 128, %s547
      %p549 = scmp.lt.s32.totalorder %s544, 53
      %s550 = scalar_select %p549, %s544, 53
      %s551 = smul.addr %s550, 8
      %s552 = scalar_lea.vmem %s3, %s551
      %s553 = smul.u32 48, %s26
      %s554 = ssub.s32 54, %s553
      %p555 = scmp.lt.s32.totalorder %s554, 48
      %s556 = scalar_select %p555, %s554, 48
      %s557 = smul.u32 128, %s556
      %s558 = smul.u32 48, %s26
      %p559 = scmp.lt.s32.totalorder %s25, 1
      %s560 = scalar_select %p559, %s25, 1
      %p561 = scmp.lt.s32.totalorder %s558, 47
      %s562 = scalar_select %p561, %s558, 47
      %s563 = smul.addr %s560, 48
      %s564 = sadd.s32 %s562, %s563
      %s565 = smul.addr %s564, 8
      %s566 = scalar_lea.vmem %s10, %s565
      %s567 = smul.u32 48, %s26
      %v569 = vld [vmem:[%s508] sm:$0xff]
      %v570 = vld [vmem:[%s508 + $0x8] sm:$0xff]
      %v571 = vld [vmem:[%s508 + $0x10] sm:$0xff]
      %v572 = vld [vmem:[%s508 + $0x18] sm:$0xff]
      %v573 = vld [vmem:[%s508 + $0x20] sm:$0xff]
      %v574 = vld [vmem:[%s508 + $0x28] sm:$0xff]
      %v575 = vld [vmem:[%s508 + $0x30] sm:$0xff]
      %v576 = vld [vmem:[%s508 + $0x38] sm:$0xff]
      %v577 = vld [vmem:[%s508 + $0x40] sm:$0xff]
      %v578 = vld [vmem:[%s508 + $0x48] sm:$0xff]
      %v579 = vld [vmem:[%s508 + $0x50] sm:$0xff]
      %v580 = vld [vmem:[%s508 + $0x58] sm:$0xff]
      %v581 = vld [vmem:[%s508 + $0x60] sm:$0xff]
      %v582 = vld [vmem:[%s508 + $0x68] sm:$0xff]
      %v583 = vld [vmem:[%s508 + $0x70] sm:$0xff]
      %v584 = vld [vmem:[%s508 + $0x78] sm:$0xff]
      %v585 = vld [vmem:[%s508 + $0x80] sm:$0xff]
      %v586 = vld [vmem:[%s508 + $0x88] sm:$0xff]
      %v587 = vld [vmem:[%s508 + $0x90] sm:$0xff]
      %v588 = vld [vmem:[%s508 + $0x98] sm:$0xff]
      %v589 = vld [vmem:[%s508 + $0xa0] sm:$0xff]
      %v590 = vld [vmem:[%s508 + $0xa8] sm:$0xff]
      %v591 = vld [vmem:[%s508 + $0xb0] sm:$0xff]
      %v592 = vld [vmem:[%s508 + $0xb8] sm:$0xff]
      %v593 = vld [vmem:[%s508 + $0xc0] sm:$0xff]
      %v594 = vld [vmem:[%s508 + $0xc8] sm:$0xff]
      %v595 = vld [vmem:[%s508 + $0xd0] sm:$0xff]
      %v596 = vld [vmem:[%s508 + $0xd8] sm:$0xff]
      %v597 = vld [vmem:[%s508 + $0xe0] sm:$0xff]
      %v598 = vld [vmem:[%s508 + $0xe8] sm:$0xff]
      %v599 = vld [vmem:[%s508 + $0xf0] sm:$0xff]
      %v600 = vld [vmem:[%s508 + $0xf8] sm:$0xff]
      %v601 = vld [vmem:[%s508 + $0x100] sm:$0xff]
      %v602 = vld [vmem:[%s508 + $0x108] sm:$0xff]
      %v603 = vld [vmem:[%s508 + $0x110] sm:$0xff]
      %v604 = vld [vmem:[%s508 + $0x118] sm:$0xff]
      %v605 = vld [vmem:[%s508 + $0x120] sm:$0xff]
      %v606 = vld [vmem:[%s508 + $0x128] sm:$0xff]
      %v607 = vld [vmem:[%s508 + $0x130] sm:$0xff]
      %v608 = vld [vmem:[%s508 + $0x138] sm:$0xff]
      %v609 = vld [vmem:[%s508 + $0x140] sm:$0xff]
      %v610 = vld [vmem:[%s508 + $0x148] sm:$0xff]
      %v611 = vld [vmem:[%s508 + $0x150] sm:$0xff]
      %v612 = vld [vmem:[%s508 + $0x158] sm:$0xff]
      %v613 = vld [vmem:[%s508 + $0x160] sm:$0xff]
      %v614 = vld [vmem:[%s508 + $0x168] sm:$0xff]
      %v615 = vld [vmem:[%s508 + $0x170] sm:$0xff]
      %v616 = vld [vmem:[%s508 + $0x178] sm:$0xff]
      %v617 = vld [vmem:[%s524] sm:$0xff]
      %v618 = vld [vmem:[%s524 + $0x8] sm:$0xff]
      %v619 = vld [vmem:[%s524 + $0x10] sm:$0xff]
      %v620 = vld [vmem:[%s539] sm:$0xff]
      %v621 = vld [vmem:[%s539 + $0x8] sm:$0xff]
      %v622 = vld [vmem:[%s539 + $0x10] sm:$0xff]
      %v623 = vld [vmem:[%s552] sm:$0xff]
      %v624 = vld [vmem:[%s552 + $0x8] sm:$0xff]
      %v625 = vld [vmem:[%s552 + $0x10] sm:$0xff]
      %v626 = vld [vmem:[%s552 + $0x18] sm:$0xff]
      %v627 = vld [vmem:[%s552 + $0x20] sm:$0xff]
      %v628 = vld [vmem:[%s552 + $0x28] sm:$0xff]
      %v629 = vld [vmem:[%s552 + $0x30] sm:$0xff]
      %v630 = vld [vmem:[%s552 + $0x38] sm:$0xff]
      %v631 = vld [vmem:[%s552 + $0x40] sm:$0xff]
      %v632 = vld [vmem:[%s552 + $0x48] sm:$0xff]
      %v633 = vld [vmem:[%s552 + $0x50] sm:$0xff]
      %v634 = vld [vmem:[%s552 + $0x58] sm:$0xff]
      %v635 = vld [vmem:[%s552 + $0x60] sm:$0xff]
      %v636 = vld [vmem:[%s552 + $0x68] sm:$0xff]
      %v637 = vld [vmem:[%s552 + $0x70] sm:$0xff]
      %v638 = vld [vmem:[%s552 + $0x78] sm:$0xff]
      %v639 = vld [vmem:[%s552 + $0x80] sm:$0xff]
      %v640 = vld [vmem:[%s552 + $0x88] sm:$0xff]
      %v641 = vld [vmem:[%s552 + $0x90] sm:$0xff]
      %v642 = vld [vmem:[%s552 + $0x98] sm:$0xff]
      %v643 = vld [vmem:[%s552 + $0xa0] sm:$0xff]
      %v644 = vld [vmem:[%s552 + $0xa8] sm:$0xff]
      %v645 = vld [vmem:[%s552 + $0xb0] sm:$0xff]
      %v646 = vld [vmem:[%s552 + $0xb8] sm:$0xff]
      %v647 = vld [vmem:[%s552 + $0xc0] sm:$0xff]
      %v648 = vld [vmem:[%s552 + $0xc8] sm:$0xff]
      %v649 = vld [vmem:[%s552 + $0xd0] sm:$0xff]
      %v650 = vld [vmem:[%s552 + $0xd8] sm:$0xff]
      %v651 = vld [vmem:[%s552 + $0xe0] sm:$0xff]
      %v652 = vld [vmem:[%s552 + $0xe8] sm:$0xff]
      %v653 = vld [vmem:[%s552 + $0xf0] sm:$0xff]
      %v654 = vld [vmem:[%s552 + $0xf8] sm:$0xff]
      %v655 = vld [vmem:[%s552 + $0x100] sm:$0xff]
      %v656 = vld [vmem:[%s552 + $0x108] sm:$0xff]
      %v657 = vld [vmem:[%s552 + $0x110] sm:$0xff]
      %v658 = vld [vmem:[%s552 + $0x118] sm:$0xff]
      %v659 = vld [vmem:[%s552 + $0x120] sm:$0xff]
      %v660 = vld [vmem:[%s552 + $0x128] sm:$0xff]
      %v661 = vld [vmem:[%s552 + $0x130] sm:$0xff]
      %v662 = vld [vmem:[%s552 + $0x138] sm:$0xff]
      %v663 = vld [vmem:[%s552 + $0x140] sm:$0xff]
      %v664 = vld [vmem:[%s552 + $0x148] sm:$0xff]
      %v665 = vld [vmem:[%s552 + $0x150] sm:$0xff]
      %v666 = vld [vmem:[%s552 + $0x158] sm:$0xff]
      %v667 = vld [vmem:[%s552 + $0x160] sm:$0xff]
      %v668 = vld [vmem:[%s552 + $0x168] sm:$0xff]
      %v669 = vld [vmem:[%s552 + $0x170] sm:$0xff]
      %v670 = vld [vmem:[%s552 + $0x178] sm:$0xff]
      %p671 = scmp.lt.s32.totalorder %s26, 0
      %s672 = scalar_select %p671, 1.0, 0.0
      %v673 = vstv %s672
      %v674 = vmul.f32 %v668, %v673
      %v675 = vmul.f32 %v669, %v673
      %v676 = vmul.f32 %v670, %v673
      %v677 = vpack.c.bf16 %v570, %v569
      %v678 = vpack.c.bf16 %v572, %v571
      %v679 = vpack.c.bf16 %v574, %v573
      %v680 = vpack.c.bf16 %v576, %v575
      %v681 = vpack.c.bf16 %v578, %v577
      %v682 = vpack.c.bf16 %v580, %v579
      %v683 = vpack.c.bf16 %v582, %v581
      %v684 = vpack.c.bf16 %v584, %v583
      %v685 = vpack.c.bf16 %v586, %v585
      %v686 = vpack.c.bf16 %v588, %v587
      %v687 = vpack.c.bf16 %v590, %v589
      %v688 = vpack.c.bf16 %v592, %v591
      %v689 = vpack.c.bf16 %v594, %v593
      %v690 = vpack.c.bf16 %v596, %v595
      %v691 = vpack.c.bf16 %v598, %v597
      %v692 = vpack.c.bf16 %v600, %v599
      %v693 = vpack.c.bf16 %v602, %v601
      %v694 = vpack.c.bf16 %v604, %v603
      %v695 = vpack.c.bf16 %v606, %v605
      %v696 = vpack.c.bf16 %v608, %v607
      %v697 = vpack.c.bf16 %v610, %v609
      %v698 = vpack.c.bf16 %v612, %v611
      %v699 = vpack.c.bf16 %v614, %v613
      %v700 = vpack.c.bf16 %v616, %v615
      %v701 = vpack.c.bf16 %v618, %v617
      %v702 = vpack.c.bf16 %v620, %v619
      %v703 = vpack.c.bf16 %v622, %v621
      %v704 = vld [vmem:[%s4] sm:$0xf]
      %v705 = vld [vmem:[%s4 + $0x4] sm:$0xf]
      %v706 = vld [vmem:[%s5] sm:$0x1]
      %v708 = vlaneseq
      %v709 = vshrl.u32 %v708, 7
      %v710 = vsub.s32 0, %v709
      %v711 = vrot.slane %v706, %v710
      %v715 = vunpack.c.l.b16 %v704
      %v716 = vunpack.c.l.b16 %v705
      %v717 = vpack.c.b16 %v716, %v715
      %vm719 = vcmask 130048
      %v721 = vsel %vm719, %v677, 0
      %v724 = vsel %vm719, %v678, 0
      %v727 = vsel %vm719, %v679, 0
      %v730 = vsel %vm719, %v680, 0
      %v733 = vsel %vm719, %v681, 0
      %v736 = vsel %vm719, %v682, 0
      %v739 = vsel %vm719, %v683, 0
      %v742 = vsel %vm719, %v684, 0
      %v745 = vsel %vm719, %v685, 0
      %v748 = vsel %vm719, %v686, 0
      %v751 = vsel %vm719, %v687, 0
      %v754 = vsel %vm719, %v688, 0
      %v757 = vsel %vm719, %v689, 0
      %v760 = vsel %vm719, %v690, 0
      %v763 = vsel %vm719, %v691, 0
      %v766 = vsel %vm719, %v692, 0
      %v769 = vsel %vm719, %v693, 0
      %v772 = vsel %vm719, %v694, 0
      %v775 = vsel %vm719, %v695, 0
      %v778 = vsel %vm719, %v696, 0
      %v781 = vsel %vm719, %v697, 0
      %v784 = vsel %vm719, %v698, 0
      %v787 = vsel %vm719, %v699, 0
      %v790 = vsel %vm719, %v700, 0
      %v793 = vsel %vm719, %v701, 0
      %v796 = vsel %vm719, %v702, 0
      %v799 = vsel %vm719, %v703, 0
      %801 = vmatprep.subr.bf16.mxu0 0
      %802 = vmatpush1.bf16.msra.mxu0 %v717
      %803 = vmatprep.subr.bf16.mxu0 0
      %804 = vmatpush1.bf16.msra.mxu0 0
      %805 = vmatprep.subr.bf16.mxu0 0
      %806 = vmatpush1.bf16.msra.mxu0 0
      %807 = vmatprep.subr.bf16.mxu0 0
      %808 = vmatpush1.bf16.msra.mxu0 0
      %809 = vmatprep.subr.bf16.mxu0 0
      %810 = vmatpush1.bf16.msra.mxu0 0
      %811 = vmatprep.subr.bf16.mxu0 0
      %812 = vmatpush1.bf16.msra.mxu0 0
      %813 = vmatprep.subr.bf16.mxu0 0
      %814 = vmatpush1.bf16.msra.mxu0 0
      %815 = vmatprep.subr.bf16.mxu0 0
      %816 = vmatpush1.bf16.msra.mxu0 0
      %817 = vmatprep.subr.bf16.mxu0 0
      %818 = vmatpush1.bf16.msra.mxu0 0
      %819 = vmatprep.subr.bf16.mxu0 0
      %820 = vmatpush1.bf16.msra.mxu0 0
      %821 = vmatprep.subr.bf16.mxu0 0
      %822 = vmatpush1.bf16.msra.mxu0 0
      %823 = vmatprep.subr.bf16.mxu0 0
      %824 = vmatpush1.bf16.msra.mxu0 0
      %825 = vmatprep.subr.bf16.mxu0 0
      %826 = vmatpush1.bf16.msra.mxu0 0
      %827 = vmatprep.subr.bf16.mxu0 0
      %828 = vmatpush1.bf16.msra.mxu0 0
      %829 = vmatprep.subr.bf16.mxu0 0
      %830 = vmatpush1.bf16.msra.mxu0 0
      %831 = vmatprep.subr.bf16.mxu0 0
      %832 = vmatpush1.bf16.msra.mxu0 0
      %833 = vmatprep.mubr.bf16.mxu0 0
      %834 = vmatmul.mubr.bf16.gmra.mrb[0].mxu0 %v721
      %v835 = vpop.f32.mrb[0].mxu0
      %v836 = vadd.f32 %v711, %v835
      %v837 = vpop.f32.mrb[0].mxu0
      %v838 = vpop.f32.mrb[0].mxu0
      %v839 = vadd.f32 %v711, %v838
      %v840 = vpop.f32.mrb[0].mxu0
      %841 = vmatprep.mubr.bf16.mxu0 0
      %842 = vmatmul.mubr.bf16.gmra.mrb[0].mxu0 %v724
      %v843 = vpop.f32.mrb[0].mxu0
      %v844 = vadd.f32 %v711, %v843
      %v845 = vpop.f32.mrb[0].mxu0
      %v846 = vpop.f32.mrb[0].mxu0
      %v847 = vadd.f32 %v711, %v846
      %v848 = vpop.f32.mrb[0].mxu0
      %849 = vmatprep.mubr.bf16.mxu0 0
      %850 = vmatmul.mubr.bf16.gmra.mrb[0].mxu0 %v727
      %v851 = vpop.f32.mrb[0].mxu0
      %v852 = vadd.f32 %v711, %v851
      %v853 = vpop.f32.mrb[0].mxu0
      %v854 = vpop.f32.mrb[0].mxu0
      %v855 = vadd.f32 %v711, %v854
      %v856 = vpop.f32.mrb[0].mxu0
      %857 = vmatprep.mubr.bf16.mxu0 0
      %858 = vmatmul.mubr.bf16.gmra.mrb[0].mxu0 %v730
      %v859 = vpop.f32.mrb[0].mxu0
      %v860 = vadd.f32 %v711, %v859
      %v861 = vpop.f32.mrb[0].mxu0
      %v862 = vpop.f32.mrb[0].mxu0
      %v863 = vadd.f32 %v711, %v862
      %v864 = vpop.f32.mrb[0].mxu0
      %865 = vmatprep.mubr.bf16.mxu0 0
      %866 = vmatmul.mubr.bf16.gmra.mrb[0].mxu0 %v733
      %v867 = vpop.f32.mrb[0].mxu0
      %v868 = vadd.f32 %v711, %v867
      %v869 = vpop.f32.mrb[0].mxu0
      %v870 = vpop.f32.mrb[0].mxu0
      %v871 = vadd.f32 %v711, %v870
      %v872 = vpop.f32.mrb[0].mxu0
      %873 = vmatprep.mubr.bf16.mxu0 0
      %874 = vmatmul.mubr.bf16.gmra.mrb[0].mxu0 %v736
      %v875 = vpop.f32.mrb[0].mxu0
      %v876 = vadd.f32 %v711, %v875
      %v877 = vpop.f32.mrb[0].mxu0
      %v878 = vpop.f32.mrb[0].mxu0
      %v879 = vadd.f32 %v711, %v878
      %v880 = vpop.f32.mrb[0].mxu0
      %881 = vmatprep.mubr.bf16.mxu0 0
      %882 = vmatmul.mubr.bf16.gmra.mrb[0].mxu0 %v739
      %v883 = vpop.f32.mrb[0].mxu0
      %v884 = vadd.f32 %v711, %v883
      %v885 = vpop.f32.mrb[0].mxu0
      %v886 = vpop.f32.mrb[0].mxu0
      %v887 = vadd.f32 %v711, %v886
      %v888 = vpop.f32.mrb[0].mxu0
      %889 = vmatprep.mubr.bf16.mxu0 0
      %890 = vmatmul.mubr.bf16.gmra.mrb[0].mxu0 %v742
      %v891 = vpop.f32.mrb[0].mxu0
      %v892 = vadd.f32 %v711, %v891
      %v893 = vpop.f32.mrb[0].mxu0
      %v894 = vpop.f32.mrb[0].mxu0
      %v895 = vadd.f32 %v711, %v894
      %v896 = vpop.f32.mrb[0].mxu0
      %897 = vmatprep.mubr.bf16.mxu0 0
      %898 = vmatmul.mubr.bf16.gmra.mrb[0].mxu0 %v745
      %v899 = vpop.f32.mrb[0].mxu0
      %v900 = vadd.f32 %v711, %v899
      %v901 = vpop.f32.mrb[0].mxu0
      %v902 = vpop.f32.mrb[0].mxu0
      %v903 = vadd.f32 %v711, %v902
      %v904 = vpop.f32.mrb[0].mxu0
      %905 = vmatprep.mubr.bf16.mxu0 0
      %906 = vmatmul.mubr.bf16.gmra.mrb[0].mxu0 %v748
      %v907 = vpop.f32.mrb[0].mxu0
      %v908 = vadd.f32 %v711, %v907
      %v909 = vpop.f32.mrb[0].mxu0
      %v910 = vpop.f32.mrb[0].mxu0
      %v911 = vadd.f32 %v711, %v910
      %v912 = vpop.f32.mrb[0].mxu0
      %913 = vmatprep.mubr.bf16.mxu0 0
      %914 = vmatmul.mubr.bf16.gmra.mrb[0].mxu0 %v751
      %v915 = vpop.f32.mrb[0].mxu0
      %v916 = vadd.f32 %v711, %v915
      %v917 = vpop.f32.mrb[0].mxu0
      %v918 = vpop.f32.mrb[0].mxu0
      %v919 = vadd.f32 %v711, %v918
      %v920 = vpop.f32.mrb[0].mxu0
      %921 = vmatprep.mubr.bf16.mxu0 0
      %922 = vmatmul.mubr.bf16.gmra.mrb[0].mxu0 %v754
      %v923 = vpop.f32.mrb[0].mxu0
      %v924 = vadd.f32 %v711, %v923
      %v925 = vpop.f32.mrb[0].mxu0
      %v926 = vpop.f32.mrb[0].mxu0
      %v927 = vadd.f32 %v711, %v926
      %v928 = vpop.f32.mrb[0].mxu0
      %929 = vmatprep.mubr.bf16.mxu0 0
      %930 = vmatmul.mubr.bf16.gmra.mrb[0].mxu0 %v757
      %v931 = vpop.f32.mrb[0].mxu0
      %v932 = vadd.f32 %v711, %v931
      %v933 = vpop.f32.mrb[0].mxu0
      %v934 = vpop.f32.mrb[0].mxu0
      %v935 = vadd.f32 %v711, %v934
      %v936 = vpop.f32.mrb[0].mxu0
      %937 = vmatprep.mubr.bf16.mxu0 0
      %938 = vmatmul.mubr.bf16.gmra.mrb[0].mxu0 %v760
      %v939 = vpop.f32.mrb[0].mxu0
      %v940 = vadd.f32 %v711, %v939
      %v941 = vpop.f32.mrb[0].mxu0
      %v942 = vpop.f32.mrb[0].mxu0
      %v943 = vadd.f32 %v711, %v942
      %v944 = vpop.f32.mrb[0].mxu0
      %945 = vmatprep.mubr.bf16.mxu0 0
      %946 = vmatmul.mubr.bf16.gmra.mrb[0].mxu0 %v763
      %v947 = vpop.f32.mrb[0].mxu0
      %v948 = vadd.f32 %v711, %v947
      %v949 = vpop.f32.mrb[0].mxu0
      %v950 = vpop.f32.mrb[0].mxu0
      %v951 = vadd.f32 %v711, %v950
      %v952 = vpop.f32.mrb[0].mxu0
      %953 = vmatprep.mubr.bf16.mxu0 0
      %954 = vmatmul.mubr.bf16.gmra.mrb[0].mxu0 %v766
      %v955 = vpop.f32.mrb[0].mxu0
      %v956 = vadd.f32 %v711, %v955
      %v957 = vpop.f32.mrb[0].mxu0
      %v958 = vpop.f32.mrb[0].mxu0
      %v959 = vadd.f32 %v711, %v958
      %v960 = vpop.f32.mrb[0].mxu0
      %961 = vmatprep.mubr.bf16.mxu0 0
      %962 = vmatmul.mubr.bf16.gmra.mrb[0].mxu0 %v769
      %v963 = vpop.f32.mrb[0].mxu0
      %v964 = vadd.f32 %v711, %v963
      %v965 = vpop.f32.mrb[0].mxu0
      %v966 = vpop.f32.mrb[0].mxu0
      %v967 = vadd.f32 %v711, %v966
      %v968 = vpop.f32.mrb[0].mxu0
      %969 = vmatprep.mubr.bf16.mxu0 0
      %970 = vmatmul.mubr.bf16.gmra.mrb[0].mxu0 %v772
      %v971 = vpop.f32.mrb[0].mxu0
      %v972 = vadd.f32 %v711, %v971
      %v973 = vpop.f32.mrb[0].mxu0
      %v974 = vpop.f32.mrb[0].mxu0
      %v975 = vadd.f32 %v711, %v974
      %v976 = vpop.f32.mrb[0].mxu0
      %977 = vmatprep.mubr.bf16.mxu0 0
      %978 = vmatmul.mubr.bf16.gmra.mrb[0].mxu0 %v775
      %v979 = vpop.f32.mrb[0].mxu0
      %v980 = vadd.f32 %v711, %v979
      %v981 = vpop.f32.mrb[0].mxu0
      %v982 = vpop.f32.mrb[0].mxu0
      %v983 = vadd.f32 %v711, %v982
      %v984 = vpop.f32.mrb[0].mxu0
      %985 = vmatprep.mubr.bf16.mxu0 0
      %986 = vmatmul.mubr.bf16.gmra.mrb[0].mxu0 %v778
      %v987 = vpop.f32.mrb[0].mxu0
      %v988 = vadd.f32 %v711, %v987
      %v989 = vpop.f32.mrb[0].mxu0
      %v990 = vpop.f32.mrb[0].mxu0
      %v991 = vadd.f32 %v711, %v990
      %v992 = vpop.f32.mrb[0].mxu0
      %993 = vmatprep.mubr.bf16.mxu0 0
      %994 = vmatmul.mubr.bf16.gmra.mrb[0].mxu0 %v781
      %v995 = vpop.f32.mrb[0].mxu0
      %v996 = vadd.f32 %v711, %v995
      %v997 = vpop.f32.mrb[0].mxu0
      %v998 = vpop.f32.mrb[0].mxu0
      %v999 = vadd.f32 %v711, %v998
      %v1000 = vpop.f32.mrb[0].mxu0
      %1001 = vmatprep.mubr.bf16.mxu0 0
      %1002 = vmatmul.mubr.bf16.gmra.mrb[0].mxu0 %v784
      %v1003 = vpop.f32.mrb[0].mxu0
      %v1004 = vadd.f32 %v711, %v1003
      %v1005 = vpop.f32.mrb[0].mxu0
      %v1006 = vpop.f32.mrb[0].mxu0
      %v1007 = vadd.f32 %v711, %v1006
      %v1008 = vpop.f32.mrb[0].mxu0
      %1009 = vmatprep.mubr.bf16.mxu0 0
      %1010 = vmatmul.mubr.bf16.gmra.mrb[0].mxu0 %v787
      %v1011 = vpop.f32.mrb[0].mxu0
      %v1012 = vadd.f32 %v711, %v1011
      %v1013 = vpop.f32.mrb[0].mxu0
      %v1014 = vpop.f32.mrb[0].mxu0
      %v1015 = vadd.f32 %v711, %v1014
      %v1016 = vpop.f32.mrb[0].mxu0
      %1017 = vmatprep.mubr.bf16.mxu0 0
      %1018 = vmatmul.mubr.bf16.gmra.mrb[0].mxu0 %v790
      %v1019 = vpop.f32.mrb[0].mxu0
      %v1020 = vadd.f32 %v711, %v1019
      %v1021 = vpop.f32.mrb[0].mxu0
      %v1022 = vpop.f32.mrb[0].mxu0
      %v1023 = vadd.f32 %v711, %v1022
      %v1024 = vpop.f32.mrb[0].mxu0
      %1025 = vmatprep.mubr.bf16.mxu0 0
      %1026 = vmatmul.mubr.bf16.gmra.mrb[0].mxu0 %v793
      %v1027 = vpop.f32.mrb[0].mxu0
      %v1028 = vadd.f32 %v711, %v1027
      %v1029 = vpop.f32.mrb[0].mxu0
      %v1030 = vpop.f32.mrb[0].mxu0
      %v1031 = vadd.f32 %v711, %v1030
      %v1032 = vpop.f32.mrb[0].mxu0
      %1033 = vmatprep.mubr.bf16.mxu0 0
      %1034 = vmatmul.mubr.bf16.gmra.mrb[0].mxu0 %v796
      %v1035 = vpop.f32.mrb[0].mxu0
      %v1036 = vadd.f32 %v711, %v1035
      %v1037 = vpop.f32.mrb[0].mxu0
      %v1038 = vpop.f32.mrb[0].mxu0
      %v1039 = vadd.f32 %v711, %v1038
      %v1040 = vpop.f32.mrb[0].mxu0
      %1041 = vmatprep.mubr.bf16.mxu0 0
      %1042 = vmatmul.mubr.bf16.gmra.mrb[0].mxu0 %v799
      %v1043 = vpop.f32.mrb[0].mxu0
      %v1044 = vadd.f32 %v711, %v1043
      %v1045 = vpop.f32.mrb[0].mxu0
      %v1046 = vpop.f32.mrb[0].mxu0
      %v1047 = vadd.f32 %v711, %v1046
      %v1048 = vpop.f32.mrb[0].mxu0
      %1049 = vdwg.mxu0
      %v1050 = vmax.f32 %v836, 0.0
      %v1051 = vmax.f32 %v839, 0.0
      %v1052 = vmax.f32 %v844, 0.0
      %v1053 = vmax.f32 %v847, 0.0
      %v1054 = vmax.f32 %v852, 0.0
      %v1055 = vmax.f32 %v855, 0.0
      %v1056 = vmax.f32 %v860, 0.0
      %v1057 = vmax.f32 %v863, 0.0
      %v1058 = vmax.f32 %v868, 0.0
      %v1059 = vmax.f32 %v871, 0.0
      %v1060 = vmax.f32 %v876, 0.0
      %v1061 = vmax.f32 %v879, 0.0
      %v1062 = vmax.f32 %v884, 0.0
      %v1063 = vmax.f32 %v887, 0.0
      %v1064 = vmax.f32 %v892, 0.0
      %v1065 = vmax.f32 %v895, 0.0
      %v1066 = vmax.f32 %v900, 0.0
      %v1067 = vmax.f32 %v903, 0.0
      %v1068 = vmax.f32 %v908, 0.0
      %v1069 = vmax.f32 %v911, 0.0
      %v1070 = vmax.f32 %v916, 0.0
      %v1071 = vmax.f32 %v919, 0.0
      %v1072 = vmax.f32 %v924, 0.0
      %v1073 = vmax.f32 %v927, 0.0
      %v1074 = vmax.f32 %v932, 0.0
      %v1075 = vmax.f32 %v935, 0.0
      %v1076 = vmax.f32 %v940, 0.0
      %v1077 = vmax.f32 %v943, 0.0
      %v1078 = vmax.f32 %v948, 0.0
      %v1079 = vmax.f32 %v951, 0.0
      %v1080 = vmax.f32 %v956, 0.0
      %v1081 = vmax.f32 %v959, 0.0
      %v1082 = vmax.f32 %v964, 0.0
      %v1083 = vmax.f32 %v967, 0.0
      %v1084 = vmax.f32 %v972, 0.0
      %v1085 = vmax.f32 %v975, 0.0
      %v1086 = vmax.f32 %v980, 0.0
      %v1087 = vmax.f32 %v983, 0.0
      %v1088 = vmax.f32 %v988, 0.0
      %v1089 = vmax.f32 %v991, 0.0
      %v1090 = vmax.f32 %v996, 0.0
      %v1091 = vmax.f32 %v999, 0.0
      %v1092 = vmax.f32 %v1004, 0.0
      %v1093 = vmax.f32 %v1007, 0.0
      %v1094 = vmax.f32 %v1012, 0.0
      %v1095 = vmax.f32 %v1015, 0.0
      %v1096 = vmax.f32 %v1020, 0.0
      %v1097 = vmax.f32 %v1023, 0.0
      %v1098 = vmax.f32 %v1028, 0.0
      %v1099 = vmax.f32 %v1031, 0.0
      %v1100 = vmax.f32 %v1036, 0.0
      %v1101 = vmax.f32 %v1039, 0.0
      %v1102 = vmax.f32 %v1044, 0.0
      %v1103 = vmax.f32 %v1047, 0.0
      %1105 = vset.pattern.permute.xlu0 0
      %1106 = vperm.xlu0 %1105, %v623
      %v1107 = vpop.permute.xlu0 %1106
      %1110 = vset.pattern.permute.xlu0 0
      %1111 = vperm.xlu0 %1110, %v624
      %v1112 = vpop.permute.xlu0 %1111
      %1115 = vset.pattern.permute.xlu0 0
      %1116 = vperm.xlu0 %1115, %v625
      %v1117 = vpop.permute.xlu0 %1116
      %1120 = vset.pattern.permute.xlu0 0
      %1121 = vperm.xlu0 %1120, %v626
      %v1122 = vpop.permute.xlu0 %1121
      %1125 = vset.pattern.permute.xlu0 0
      %1126 = vperm.xlu0 %1125, %v627
      %v1127 = vpop.permute.xlu0 %1126
      %1130 = vset.pattern.permute.xlu0 0
      %1131 = vperm.xlu0 %1130, %v628
      %v1132 = vpop.permute.xlu0 %1131
      %1135 = vset.pattern.permute.xlu0 0
      %1136 = vperm.xlu0 %1135, %v629
      %v1137 = vpop.permute.xlu0 %1136
      %1140 = vset.pattern.permute.xlu0 0
      %1141 = vperm.xlu0 %1140, %v630
      %v1142 = vpop.permute.xlu0 %1141
      %1145 = vset.pattern.permute.xlu0 0
      %1146 = vperm.xlu0 %1145, %v631
      %v1147 = vpop.permute.xlu0 %1146
      %1150 = vset.pattern.permute.xlu0 0
      %1151 = vperm.xlu0 %1150, %v632
      %v1152 = vpop.permute.xlu0 %1151
      %1155 = vset.pattern.permute.xlu0 0
      %1156 = vperm.xlu0 %1155, %v633
      %v1157 = vpop.permute.xlu0 %1156
      %1160 = vset.pattern.permute.xlu0 0
      %1161 = vperm.xlu0 %1160, %v634
      %v1162 = vpop.permute.xlu0 %1161
      %1165 = vset.pattern.permute.xlu0 0
      %1166 = vperm.xlu0 %1165, %v635
      %v1167 = vpop.permute.xlu0 %1166
      %1170 = vset.pattern.permute.xlu0 0
      %1171 = vperm.xlu0 %1170, %v636
      %v1172 = vpop.permute.xlu0 %1171
      %1175 = vset.pattern.permute.xlu0 0
      %1176 = vperm.xlu0 %1175, %v637
      %v1177 = vpop.permute.xlu0 %1176
      %1180 = vset.pattern.permute.xlu0 0
      %1181 = vperm.xlu0 %1180, %v638
      %v1182 = vpop.permute.xlu0 %1181
      %1185 = vset.pattern.permute.xlu0 0
      %1186 = vperm.xlu0 %1185, %v639
      %v1187 = vpop.permute.xlu0 %1186
      %1190 = vset.pattern.permute.xlu0 0
      %1191 = vperm.xlu0 %1190, %v640
      %v1192 = vpop.permute.xlu0 %1191
      %1195 = vset.pattern.permute.xlu0 0
      %1196 = vperm.xlu0 %1195, %v641
      %v1197 = vpop.permute.xlu0 %1196
      %1200 = vset.pattern.permute.xlu0 0
      %1201 = vperm.xlu0 %1200, %v642
      %v1202 = vpop.permute.xlu0 %1201
      %1205 = vset.pattern.permute.xlu0 0
      %1206 = vperm.xlu0 %1205, %v643
      %v1207 = vpop.permute.xlu0 %1206
      %1210 = vset.pattern.permute.xlu0 0
      %1211 = vperm.xlu0 %1210, %v644
      %v1212 = vpop.permute.xlu0 %1211
      %1215 = vset.pattern.permute.xlu0 0
      %1216 = vperm.xlu0 %1215, %v645
      %v1217 = vpop.permute.xlu0 %1216
      %1220 = vset.pattern.permute.xlu0 0
      %1221 = vperm.xlu0 %1220, %v646
      %v1222 = vpop.permute.xlu0 %1221
      %1225 = vset.pattern.permute.xlu0 0
      %1226 = vperm.xlu0 %1225, %v647
      %v1227 = vpop.permute.xlu0 %1226
      %1230 = vset.pattern.permute.xlu0 0
      %1231 = vperm.xlu0 %1230, %v648
      %v1232 = vpop.permute.xlu0 %1231
      %1235 = vset.pattern.permute.xlu0 0
      %1236 = vperm.xlu0 %1235, %v649
      %v1237 = vpop.permute.xlu0 %1236
      %1240 = vset.pattern.permute.xlu0 0
      %1241 = vperm.xlu0 %1240, %v650
      %v1242 = vpop.permute.xlu0 %1241
      %1245 = vset.pattern.permute.xlu0 0
      %1246 = vperm.xlu0 %1245, %v651
      %v1247 = vpop.permute.xlu0 %1246
      %1250 = vset.pattern.permute.xlu0 0
      %1251 = vperm.xlu0 %1250, %v652
      %v1252 = vpop.permute.xlu0 %1251
      %1255 = vset.pattern.permute.xlu0 0
      %1256 = vperm.xlu0 %1255, %v653
      %v1257 = vpop.permute.xlu0 %1256
      %1260 = vset.pattern.permute.xlu0 0
      %1261 = vperm.xlu0 %1260, %v654
      %v1262 = vpop.permute.xlu0 %1261
      %1265 = vset.pattern.permute.xlu0 0
      %1266 = vperm.xlu0 %1265, %v655
      %v1267 = vpop.permute.xlu0 %1266
      %1270 = vset.pattern.permute.xlu0 0
      %1271 = vperm.xlu0 %1270, %v656
      %v1272 = vpop.permute.xlu0 %1271
      %1275 = vset.pattern.permute.xlu0 0
      %1276 = vperm.xlu0 %1275, %v657
      %v1277 = vpop.permute.xlu0 %1276
      %1280 = vset.pattern.permute.xlu0 0
      %1281 = vperm.xlu0 %1280, %v658
      %v1282 = vpop.permute.xlu0 %1281
      %1285 = vset.pattern.permute.xlu0 0
      %1286 = vperm.xlu0 %1285, %v659
      %v1287 = vpop.permute.xlu0 %1286
      %1290 = vset.pattern.permute.xlu0 0
      %1291 = vperm.xlu0 %1290, %v660
      %v1292 = vpop.permute.xlu0 %1291
      %1295 = vset.pattern.permute.xlu0 0
      %1296 = vperm.xlu0 %1295, %v661
      %v1297 = vpop.permute.xlu0 %1296
      %1300 = vset.pattern.permute.xlu0 0
      %1301 = vperm.xlu0 %1300, %v662
      %v1302 = vpop.permute.xlu0 %1301
      %1305 = vset.pattern.permute.xlu0 0
      %1306 = vperm.xlu0 %1305, %v663
      %v1307 = vpop.permute.xlu0 %1306
      %1310 = vset.pattern.permute.xlu0 0
      %1311 = vperm.xlu0 %1310, %v664
      %v1312 = vpop.permute.xlu0 %1311
      %1315 = vset.pattern.permute.xlu0 0
      %1316 = vperm.xlu0 %1315, %v665
      %v1317 = vpop.permute.xlu0 %1316
      %1320 = vset.pattern.permute.xlu0 0
      %1321 = vperm.xlu0 %1320, %v666
      %v1322 = vpop.permute.xlu0 %1321
      %1325 = vset.pattern.permute.xlu0 0
      %1326 = vperm.xlu0 %1325, %v667
      %v1327 = vpop.permute.xlu0 %1326
      %1330 = vset.pattern.permute.xlu0 0
      %1331 = vperm.xlu0 %1330, %v668
      %v1332 = vpop.permute.xlu0 %1331
      %1335 = vset.pattern.permute.xlu0 0
      %1336 = vperm.xlu0 %1335, %v669
      %v1337 = vpop.permute.xlu0 %1336
      %1340 = vset.pattern.permute.xlu0 0
      %1341 = vperm.xlu0 %1340, %v670
      %v1342 = vpop.permute.xlu0 %1341
      %1345 = vset.pattern.permute.xlu0 0
      %1346 = vperm.xlu0 %1345, %v674
      %v1347 = vpop.permute.xlu0 %1346
      %1350 = vset.pattern.permute.xlu0 0
      %1351 = vperm.xlu0 %1350, %v675
      %v1352 = vpop.permute.xlu0 %1351
      %1355 = vset.pattern.permute.xlu0 0
      %1356 = vperm.xlu0 %1355, %v676
      %v1357 = vpop.permute.xlu0 %1356
      %v1359 = vmul.f32 %v1050, %v1107
      %v1360 = vmul.f32 %v1051, %v1112
      %v1361 = vmul.f32 %v1052, %v1117
      %v1362 = vmul.f32 %v1053, %v1122
      %v1363 = vmul.f32 %v1054, %v1127
      %v1364 = vmul.f32 %v1055, %v1132
      %v1365 = vmul.f32 %v1056, %v1137
      %v1366 = vmul.f32 %v1057, %v1142
      %v1367 = vmul.f32 %v1058, %v1147
      %v1368 = vmul.f32 %v1059, %v1152
      %v1369 = vmul.f32 %v1060, %v1157
      %v1370 = vmul.f32 %v1061, %v1162
      %v1371 = vmul.f32 %v1062, %v1167
      %v1372 = vmul.f32 %v1063, %v1172
      %v1373 = vmul.f32 %v1064, %v1177
      %v1374 = vmul.f32 %v1065, %v1182
      %v1375 = vmul.f32 %v1066, %v1187
      %v1376 = vmul.f32 %v1067, %v1192
      %v1377 = vmul.f32 %v1068, %v1197
      %v1378 = vmul.f32 %v1069, %v1202
      %v1379 = vmul.f32 %v1070, %v1207
      %v1380 = vmul.f32 %v1071, %v1212
      %v1381 = vmul.f32 %v1072, %v1217
      %v1382 = vmul.f32 %v1073, %v1222
      %v1383 = vmul.f32 %v1074, %v1227
      %v1384 = vmul.f32 %v1075, %v1232
      %v1385 = vmul.f32 %v1076, %v1237
      %v1386 = vmul.f32 %v1077, %v1242
      %v1387 = vmul.f32 %v1078, %v1247
      %v1388 = vmul.f32 %v1079, %v1252
      %v1389 = vmul.f32 %v1080, %v1257
      %v1390 = vmul.f32 %v1081, %v1262
      %v1391 = vmul.f32 %v1082, %v1267
      %v1392 = vmul.f32 %v1083, %v1272
      %v1393 = vmul.f32 %v1084, %v1277
      %v1394 = vmul.f32 %v1085, %v1282
      %v1395 = vmul.f32 %v1086, %v1287
      %v1396 = vmul.f32 %v1087, %v1292
      %v1397 = vmul.f32 %v1088, %v1297
      %v1398 = vmul.f32 %v1089, %v1302
      %v1399 = vmul.f32 %v1090, %v1307
      %v1400 = vmul.f32 %v1091, %v1312
      %v1401 = vmul.f32 %v1092, %v1317
      %v1402 = vmul.f32 %v1093, %v1322
      %v1403 = vmul.f32 %v1094, %v1327
      %v1404 = vmul.f32 %v1095, %v1332
      %v1405 = vmul.f32 %v1096, %v1337
      %v1406 = vmul.f32 %v1097, %v1342
      %v1407 = vmul.f32 %v1098, %v1332
      %v1408 = vmul.f32 %v1099, %v1337
      %v1409 = vmul.f32 %v1100, %v1342
      %v1410 = vmul.f32 %v1101, %v1347
      %v1411 = vmul.f32 %v1102, %v1352
      %v1412 = vmul.f32 %v1103, %v1357
      %v1413 = vpack.c.bf16 %v1359, 0.0
      %v1414 = vpack.c.bf16 %v1361, %v1360
      %v1415 = vpack.c.bf16 %v1363, %v1362
      %v1416 = vpack.c.bf16 %v1365, %v1364
      %v1417 = vpack.c.bf16 %v1367, %v1366
      %v1418 = vpack.c.bf16 %v1369, %v1368
      %v1419 = vpack.c.bf16 %v1371, %v1370
      %v1420 = vpack.c.bf16 %v1373, %v1372
      %v1421 = vpack.c.bf16 %v1375, %v1374
      %v1422 = vpack.c.bf16 %v1377, %v1376
      %v1423 = vpack.c.bf16 %v1379, %v1378
      %v1424 = vpack.c.bf16 %v1381, %v1380
      %v1425 = vpack.c.bf16 %v1383, %v1382
      %v1426 = vpack.c.bf16 %v1385, %v1384
      %v1427 = vpack.c.bf16 %v1387, %v1386
      %v1428 = vpack.c.bf16 %v1389, %v1388
      %v1429 = vpack.c.bf16 %v1391, %v1390
      %v1430 = vpack.c.bf16 %v1393, %v1392
      %v1431 = vpack.c.bf16 %v1395, %v1394
      %v1432 = vpack.c.bf16 %v1397, %v1396
      %v1433 = vpack.c.bf16 %v1399, %v1398
      %v1434 = vpack.c.bf16 %v1401, %v1400
      %v1435 = vpack.c.bf16 %v1403, %v1402
      %v1436 = vpack.c.bf16 %v1405, %v1404
      %v1437 = vpack.c.bf16 %v1406, %v1406
      %v1438 = vld [vmem:[%s6] sm:$0x3]
      %v1439 = vpack.c.bf16 %v1360, %v1359
      %v1440 = vpack.c.bf16 %v1362, %v1361
      %v1441 = vpack.c.bf16 %v1364, %v1363
      %v1442 = vpack.c.bf16 %v1366, %v1365
      %v1443 = vpack.c.bf16 %v1368, %v1367
      %v1444 = vpack.c.bf16 %v1370, %v1369
      %v1445 = vpack.c.bf16 %v1372, %v1371
      %v1446 = vpack.c.bf16 %v1374, %v1373
      %v1447 = vpack.c.bf16 %v1376, %v1375
      %v1448 = vpack.c.bf16 %v1378, %v1377
      %v1449 = vpack.c.bf16 %v1380, %v1379
      %v1450 = vpack.c.bf16 %v1382, %v1381
      %v1451 = vpack.c.bf16 %v1384, %v1383
      %v1452 = vpack.c.bf16 %v1386, %v1385
      %v1453 = vpack.c.bf16 %v1388, %v1387
      %v1454 = vpack.c.bf16 %v1390, %v1389
      %v1455 = vpack.c.bf16 %v1392, %v1391
      %v1456 = vpack.c.bf16 %v1394, %v1393
      %v1457 = vpack.c.bf16 %v1396, %v1395
      %v1458 = vpack.c.bf16 %v1398, %v1397
      %v1459 = vpack.c.bf16 %v1400, %v1399
      %v1460 = vpack.c.bf16 %v1402, %v1401
      %v1461 = vpack.c.bf16 %v1404, %v1403
      %v1462 = vpack.c.bf16 %v1406, %v1405
      %s1463 = scalar_lea.vmem %s6, 2
      %v1464 = vld [vmem:[%s1463] sm:$0x3]
      %vm1465 = vcmask 31744
      %v1467 = vsel %vm1465, %v1439, 0
      %v1470 = vsel %vm1465, %v1440, 0
      %v1473 = vsel %vm1465, %v1441, 0
      %v1476 = vsel %vm1465, %v1442, 0
      %v1479 = vsel %vm1465, %v1443, 0
      %v1482 = vsel %vm1465, %v1444, 0
      %v1485 = vsel %vm1465, %v1445, 0
      %v1488 = vsel %vm1465, %v1446, 0
      %v1491 = vsel %vm1465, %v1447, 0
      %v1494 = vsel %vm1465, %v1448, 0
      %v1497 = vsel %vm1465, %v1449, 0
      %v1500 = vsel %vm1465, %v1450, 0
      %v1503 = vsel %vm1465, %v1451, 0
      %v1506 = vsel %vm1465, %v1452, 0
      %v1509 = vsel %vm1465, %v1453, 0
      %v1512 = vsel %vm1465, %v1454, 0
      %v1515 = vsel %vm1465, %v1455, 0
      %v1518 = vsel %vm1465, %v1456, 0
      %v1521 = vsel %vm1465, %v1457, 0
      %v1524 = vsel %vm1465, %v1458, 0
      %v1527 = vsel %vm1465, %v1459, 0
      %v1530 = vsel %vm1465, %v1460, 0
      %v1533 = vsel %vm1465, %v1461, 0
      %v1536 = vsel %vm1465, %v1462, 0
      %vm1538 = vcmask 1041408
      %v1540 = vsel %vm1538, %v1464, 0
      %1542 = vmatprep.subr.bf16.mxu0 0
      %1543 = vmatpush1.bf16.msra.mxu0 %v1540
      %1544 = vmatprep.subr.bf16.mxu0 0
      %1545 = vmatpush1.bf16.msra.mxu0 0
      %1546 = vmatprep.subr.bf16.mxu0 0
      %1547 = vmatpush1.bf16.msra.mxu0 0
      %1548 = vmatprep.subr.bf16.mxu0 0
      %1549 = vmatpush1.bf16.msra.mxu0 0
      %1550 = vmatprep.subr.bf16.mxu0 0
      %1551 = vmatpush1.bf16.msra.mxu0 0
      %1552 = vmatprep.subr.bf16.mxu0 0
      %1553 = vmatpush1.bf16.msra.mxu0 0
      %1554 = vmatprep.subr.bf16.mxu0 0
      %1555 = vmatpush1.bf16.msra.mxu0 0
      %1556 = vmatprep.subr.bf16.mxu0 0
      %1557 = vmatpush1.bf16.msra.mxu0 0
      %1558 = vmatprep.subr.bf16.mxu0 0
      %1559 = vmatpush1.bf16.msra.mxu0 0
      %1560 = vmatprep.subr.bf16.mxu0 0
      %1561 = vmatpush1.bf16.msra.mxu0 0
      %1562 = vmatprep.subr.bf16.mxu0 0
      %1563 = vmatpush1.bf16.msra.mxu0 0
      %1564 = vmatprep.subr.bf16.mxu0 0
      %1565 = vmatpush1.bf16.msra.mxu0 0
      %1566 = vmatprep.subr.bf16.mxu0 0
      %1567 = vmatpush1.bf16.msra.mxu0 0
      %1568 = vmatprep.subr.bf16.mxu0 0
      %1569 = vmatpush1.bf16.msra.mxu0 0
      %1570 = vmatprep.subr.bf16.mxu0 0
      %1571 = vmatpush1.bf16.msra.mxu0 0
      %1572 = vmatprep.subr.bf16.mxu0 0
      %1573 = vmatpush1.bf16.msra.mxu0 0
      %1574 = vmatprep.mubr.bf16.mxu0 0
      %1575 = vmatmul.mubr.bf16.gmra.mrb[0].mxu0 %v1467
      %v1576 = vpop.f32.mrb[0].mxu0
      %v1577 = vadd.f32 0.0, %v1576
      %v1578 = vpop.f32.mrb[0].mxu0
      %v1579 = vpop.f32.mrb[0].mxu0
      %v1580 = vadd.f32 0.0, %v1579
      %v1581 = vpop.f32.mrb[0].mxu0
      %1582 = vmatprep.mubr.bf16.mxu0 0
      %1583 = vmatmul.mubr.bf16.gmra.mrb[0].mxu0 %v1470
      %v1584 = vpop.f32.mrb[0].mxu0
      %v1585 = vadd.f32 0.0, %v1584
      %v1586 = vpop.f32.mrb[0].mxu0
      %v1587 = vpop.f32.mrb[0].mxu0
      %v1588 = vadd.f32 0.0, %v1587
      %v1589 = vpop.f32.mrb[0].mxu0
      %1590 = vmatprep.mubr.bf16.mxu0 0
      %1591 = vmatmul.mubr.bf16.gmra.mrb[0].mxu0 %v1473
      %v1592 = vpop.f32.mrb[0].mxu0
      %v1593 = vadd.f32 0.0, %v1592
      %v1594 = vpop.f32.mrb[0].mxu0
      %v1595 = vpop.f32.mrb[0].mxu0
      %v1596 = vadd.f32 0.0, %v1595
      %v1597 = vpop.f32.mrb[0].mxu0
      %1598 = vmatprep.mubr.bf16.mxu0 0
      %1599 = vmatmul.mubr.bf16.gmra.mrb[0].mxu0 %v1476
      %v1600 = vpop.f32.mrb[0].mxu0
      %v1601 = vadd.f32 0.0, %v1600
      %v1602 = vpop.f32.mrb[0].mxu0
      %v1603 = vpop.f32.mrb[0].mxu0
      %v1604 = vadd.f32 0.0, %v1603
      %v1605 = vpop.f32.mrb[0].mxu0
      %1606 = vmatprep.mubr.bf16.mxu0 0
      %1607 = vmatmul.mubr.bf16.gmra.mrb[0].mxu0 %v1479
      %v1608 = vpop.f32.mrb[0].mxu0
      %v1609 = vadd.f32 0.0, %v1608
      %v1610 = vpop.f32.mrb[0].mxu0
      %v1611 = vpop.f32.mrb[0].mxu0
      %v1612 = vadd.f32 0.0, %v1611
      %v1613 = vpop.f32.mrb[0].mxu0
      %1614 = vmatprep.mubr.bf16.mxu0 0
      %1615 = vmatmul.mubr.bf16.gmra.mrb[0].mxu0 %v1482
      %v1616 = vpop.f32.mrb[0].mxu0
      %v1617 = vadd.f32 0.0, %v1616
      %v1618 = vpop.f32.mrb[0].mxu0
      %v1619 = vpop.f32.mrb[0].mxu0
      %v1620 = vadd.f32 0.0, %v1619
      %v1621 = vpop.f32.mrb[0].mxu0
      %1622 = vmatprep.mubr.bf16.mxu0 0
      %1623 = vmatmul.mubr.bf16.gmra.mrb[0].mxu0 %v1485
      %v1624 = vpop.f32.mrb[0].mxu0
      %v1625 = vadd.f32 0.0, %v1624
      %v1626 = vpop.f32.mrb[0].mxu0
      %v1627 = vpop.f32.mrb[0].mxu0
      %v1628 = vadd.f32 0.0, %v1627
      %v1629 = vpop.f32.mrb[0].mxu0
      %1630 = vmatprep.mubr.bf16.mxu0 0
      %1631 = vmatmul.mubr.bf16.gmra.mrb[0].mxu0 %v1488
      %v1632 = vpop.f32.mrb[0].mxu0
      %v1633 = vadd.f32 0.0, %v1632
      %v1634 = vpop.f32.mrb[0].mxu0
      %v1635 = vpop.f32.mrb[0].mxu0
      %v1636 = vadd.f32 0.0, %v1635
      %v1637 = vpop.f32.mrb[0].mxu0
      %1638 = vmatprep.mubr.bf16.mxu0 0
      %1639 = vmatmul.mubr.bf16.gmra.mrb[0].mxu0 %v1491
      %v1640 = vpop.f32.mrb[0].mxu0
      %v1641 = vadd.f32 0.0, %v1640
      %v1642 = vpop.f32.mrb[0].mxu0
      %v1643 = vpop.f32.mrb[0].mxu0
      %v1644 = vadd.f32 0.0, %v1643
      %v1645 = vpop.f32.mrb[0].mxu0
      %1646 = vmatprep.mubr.bf16.mxu0 0
      %1647 = vmatmul.mubr.bf16.gmra.mrb[0].mxu0 %v1494
      %v1648 = vpop.f32.mrb[0].mxu0
      %v1649 = vadd.f32 0.0, %v1648
      %v1650 = vpop.f32.mrb[0].mxu0
      %v1651 = vpop.f32.mrb[0].mxu0
      %v1652 = vadd.f32 0.0, %v1651
      %v1653 = vpop.f32.mrb[0].mxu0
      %1654 = vmatprep.mubr.bf16.mxu0 0
      %1655 = vmatmul.mubr.bf16.gmra.mrb[0].mxu0 %v1497
      %v1656 = vpop.f32.mrb[0].mxu0
      %v1657 = vadd.f32 0.0, %v1656
      %v1658 = vpop.f32.mrb[0].mxu0
      %v1659 = vpop.f32.mrb[0].mxu0
      %v1660 = vadd.f32 0.0, %v1659
      %v1661 = vpop.f32.mrb[0].mxu0
      %1662 = vmatprep.mubr.bf16.mxu0 0
      %1663 = vmatmul.mubr.bf16.gmra.mrb[0].mxu0 %v1500
      %v1664 = vpop.f32.mrb[0].mxu0
      %v1665 = vadd.f32 0.0, %v1664
      %v1666 = vpop.f32.mrb[0].mxu0
      %v1667 = vpop.f32.mrb[0].mxu0
      %v1668 = vadd.f32 0.0, %v1667
      %v1669 = vpop.f32.mrb[0].mxu0
      %1670 = vmatprep.mubr.bf16.mxu0 0
      %1671 = vmatmul.mubr.bf16.gmra.mrb[0].mxu0 %v1503
      %v1672 = vpop.f32.mrb[0].mxu0
      %v1673 = vadd.f32 0.0, %v1672
      %v1674 = vpop.f32.mrb[0].mxu0
      %v1675 = vpop.f32.mrb[0].mxu0
      %v1676 = vadd.f32 0.0, %v1675
      %v1677 = vpop.f32.mrb[0].mxu0
      %1678 = vmatprep.mubr.bf16.mxu0 0
      %1679 = vmatmul.mubr.bf16.gmra.mrb[0].mxu0 %v1506
      %v1680 = vpop.f32.mrb[0].mxu0
      %v1681 = vadd.f32 0.0, %v1680
      %v1682 = vpop.f32.mrb[0].mxu0
      %v1683 = vpop.f32.mrb[0].mxu0
      %v1684 = vadd.f32 0.0, %v1683
      %v1685 = vpop.f32.mrb[0].mxu0
      %1686 = vmatprep.mubr.bf16.mxu0 0
      %1687 = vmatmul.mubr.bf16.gmra.mrb[0].mxu0 %v1509
      %v1688 = vpop.f32.mrb[0].mxu0
      %v1689 = vadd.f32 0.0, %v1688
      %v1690 = vpop.f32.mrb[0].mxu0
      %v1691 = vpop.f32.mrb[0].mxu0
      %v1692 = vadd.f32 0.0, %v1691
      %v1693 = vpop.f32.mrb[0].mxu0
      %1694 = vmatprep.mubr.bf16.mxu0 0
      %1695 = vmatmul.mubr.bf16.gmra.mrb[0].mxu0 %v1512
      %v1696 = vpop.f32.mrb[0].mxu0
      %v1697 = vadd.f32 0.0, %v1696
      %v1698 = vpop.f32.mrb[0].mxu0
      %v1699 = vpop.f32.mrb[0].mxu0
      %v1700 = vadd.f32 0.0, %v1699
      %v1701 = vpop.f32.mrb[0].mxu0
      %1702 = vmatprep.mubr.bf16.mxu0 0
      %1703 = vmatmul.mubr.bf16.gmra.mrb[0].mxu0 %v1515
      %v1704 = vpop.f32.mrb[0].mxu0
      %v1705 = vadd.f32 0.0, %v1704
      %v1706 = vpop.f32.mrb[0].mxu0
      %v1707 = vpop.f32.mrb[0].mxu0
      %v1708 = vadd.f32 0.0, %v1707
      %v1709 = vpop.f32.mrb[0].mxu0
      %1710 = vmatprep.mubr.bf16.mxu0 0
      %1711 = vmatmul.mubr.bf16.gmra.mrb[0].mxu0 %v1518
      %v1712 = vpop.f32.mrb[0].mxu0
      %v1713 = vadd.f32 0.0, %v1712
      %v1714 = vpop.f32.mrb[0].mxu0
      %v1715 = vpop.f32.mrb[0].mxu0
      %v1716 = vadd.f32 0.0, %v1715
      %v1717 = vpop.f32.mrb[0].mxu0
      %1718 = vmatprep.mubr.bf16.mxu0 0
      %1719 = vmatmul.mubr.bf16.gmra.mrb[0].mxu0 %v1521
      %v1720 = vpop.f32.mrb[0].mxu0
      %v1721 = vadd.f32 0.0, %v1720
      %v1722 = vpop.f32.mrb[0].mxu0
      %v1723 = vpop.f32.mrb[0].mxu0
      %v1724 = vadd.f32 0.0, %v1723
      %v1725 = vpop.f32.mrb[0].mxu0
      %1726 = vmatprep.mubr.bf16.mxu0 0
      %1727 = vmatmul.mubr.bf16.gmra.mrb[0].mxu0 %v1524
      %v1728 = vpop.f32.mrb[0].mxu0
      %v1729 = vadd.f32 0.0, %v1728
      %v1730 = vpop.f32.mrb[0].mxu0
      %v1731 = vpop.f32.mrb[0].mxu0
      %v1732 = vadd.f32 0.0, %v1731
      %v1733 = vpop.f32.mrb[0].mxu0
      %1734 = vmatprep.mubr.bf16.mxu0 0
      %1735 = vmatmul.mubr.bf16.gmra.mrb[0].mxu0 %v1527
      %v1736 = vpop.f32.mrb[0].mxu0
      %v1737 = vadd.f32 0.0, %v1736
      %v1738 = vpop.f32.mrb[0].mxu0
      %v1739 = vpop.f32.mrb[0].mxu0
      %v1740 = vadd.f32 0.0, %v1739
      %v1741 = vpop.f32.mrb[0].mxu0
      %1742 = vmatprep.mubr.bf16.mxu0 0
      %1743 = vmatmul.mubr.bf16.gmra.mrb[0].mxu0 %v1530
      %v1744 = vpop.f32.mrb[0].mxu0
      %v1745 = vadd.f32 0.0, %v1744
      %v1746 = vpop.f32.mrb[0].mxu0
      %v1747 = vpop.f32.mrb[0].mxu0
      %v1748 = vadd.f32 0.0, %v1747
      %v1749 = vpop.f32.mrb[0].mxu0
      %1750 = vmatprep.mubr.bf16.mxu0 0
      %1751 = vmatmul.mubr.bf16.gmra.mrb[0].mxu0 %v1533
      %v1752 = vpop.f32.mrb[0].mxu0
      %v1753 = vadd.f32 0.0, %v1752
      %v1754 = vpop.f32.mrb[0].mxu0
      %v1755 = vpop.f32.mrb[0].mxu0
      %v1756 = vadd.f32 0.0, %v1755
      %v1757 = vpop.f32.mrb[0].mxu0
      %1758 = vmatprep.mubr.bf16.mxu0 0
      %1759 = vmatmul.mubr.bf16.gmra.mrb[0].mxu0 %v1536
      %v1760 = vpop.f32.mrb[0].mxu0
      %v1761 = vadd.f32 0.0, %v1760
      %v1762 = vpop.f32.mrb[0].mxu0
      %v1763 = vpop.f32.mrb[0].mxu0
      %v1764 = vadd.f32 0.0, %v1763
      %v1765 = vpop.f32.mrb[0].mxu0
      %1766 = vdwg.mxu0
      %vm1767 = vsmask.f32 4352
      %v1769 = vshrl.u32 %v1413, 16
      %v1771 = vrot.slane %v1769, 3
      %v1772 = vshll.u32 %v1413, 16
      %v1774 = vrot.slane %v1772, 4
      %v1775 = vor.u32 %v1771, %v1774
      %v1777 = vshrl.u32 %v1414, 16
      %v1779 = vrot.slane %v1777, 3
      %v1780 = vshll.u32 %v1414, 16
      %v1782 = vrot.slane %v1780, 4
      %v1783 = vor.u32 %v1779, %v1782
      %v1784 = vsel %vm1767, %v1775, %v1783
      %v1786 = vshrl.u32 %v1415, 16
      %v1788 = vrot.slane %v1786, 3
      %v1789 = vshll.u32 %v1415, 16
      %v1791 = vrot.slane %v1789, 4
      %v1792 = vor.u32 %v1788, %v1791
      %v1793 = vsel %vm1767, %v1783, %v1792
      %v1795 = vshrl.u32 %v1416, 16
      %v1797 = vrot.slane %v1795, 3
      %v1798 = vshll.u32 %v1416, 16
      %v1800 = vrot.slane %v1798, 4
      %v1801 = vor.u32 %v1797, %v1800
      %v1802 = vsel %vm1767, %v1792, %v1801
      %v1804 = vshrl.u32 %v1417, 16
      %v1806 = vrot.slane %v1804, 3
      %v1807 = vshll.u32 %v1417, 16
      %v1809 = vrot.slane %v1807, 4
      %v1810 = vor.u32 %v1806, %v1809
      %v1811 = vsel %vm1767, %v1801, %v1810
      %v1813 = vshrl.u32 %v1418, 16
      %v1815 = vrot.slane %v1813, 3
      %v1816 = vshll.u32 %v1418, 16
      %v1818 = vrot.slane %v1816, 4
      %v1819 = vor.u32 %v1815, %v1818
      %v1820 = vsel %vm1767, %v1810, %v1819
      %v1822 = vshrl.u32 %v1419, 16
      %v1824 = vrot.slane %v1822, 3
      %v1825 = vshll.u32 %v1419, 16
      %v1827 = vrot.slane %v1825, 4
      %v1828 = vor.u32 %v1824, %v1827
      %v1829 = vsel %vm1767, %v1819, %v1828
      %v1831 = vshrl.u32 %v1420, 16
      %v1833 = vrot.slane %v1831, 3
      %v1834 = vshll.u32 %v1420, 16
      %v1836 = vrot.slane %v1834, 4
      %v1837 = vor.u32 %v1833, %v1836
      %v1838 = vsel %vm1767, %v1828, %v1837
      %v1840 = vshrl.u32 %v1421, 16
      %v1842 = vrot.slane %v1840, 3
      %v1843 = vshll.u32 %v1421, 16
      %v1845 = vrot.slane %v1843, 4
      %v1846 = vor.u32 %v1842, %v1845
      %v1847 = vsel %vm1767, %v1837, %v1846
      %v1849 = vshrl.u32 %v1422, 16
      %v1851 = vrot.slane %v1849, 3
      %v1852 = vshll.u32 %v1422, 16
      %v1854 = vrot.slane %v1852, 4
      %v1855 = vor.u32 %v1851, %v1854
      %v1856 = vsel %vm1767, %v1846, %v1855
      %v1858 = vshrl.u32 %v1423, 16
      %v1860 = vrot.slane %v1858, 3
      %v1861 = vshll.u32 %v1423, 16
      %v1863 = vrot.slane %v1861, 4
      %v1864 = vor.u32 %v1860, %v1863
      %v1865 = vsel %vm1767, %v1855, %v1864
      %v1867 = vshrl.u32 %v1424, 16
      %v1869 = vrot.slane %v1867, 3
      %v1870 = vshll.u32 %v1424, 16
      %v1872 = vrot.slane %v1870, 4
      %v1873 = vor.u32 %v1869, %v1872
      %v1874 = vsel %vm1767, %v1864, %v1873
      %v1876 = vshrl.u32 %v1425, 16
      %v1878 = vrot.slane %v1876, 3
      %v1879 = vshll.u32 %v1425, 16
      %v1881 = vrot.slane %v1879, 4
      %v1882 = vor.u32 %v1878, %v1881
      %v1883 = vsel %vm1767, %v1873, %v1882
      %v1885 = vshrl.u32 %v1426, 16
      %v1887 = vrot.slane %v1885, 3
      %v1888 = vshll.u32 %v1426, 16
      %v1890 = vrot.slane %v1888, 4
      %v1891 = vor.u32 %v1887, %v1890
      %v1892 = vsel %vm1767, %v1882, %v1891
      %v1894 = vshrl.u32 %v1427, 16
      %v1896 = vrot.slane %v1894, 3
      %v1897 = vshll.u32 %v1427, 16
      %v1899 = vrot.slane %v1897, 4
      %v1900 = vor.u32 %v1896, %v1899
      %v1901 = vsel %vm1767, %v1891, %v1900
      %v1903 = vshrl.u32 %v1428, 16
      %v1905 = vrot.slane %v1903, 3
      %v1906 = vshll.u32 %v1428, 16
      %v1908 = vrot.slane %v1906, 4
      %v1909 = vor.u32 %v1905, %v1908
      %v1910 = vsel %vm1767, %v1900, %v1909
      %v1912 = vshrl.u32 %v1429, 16
      %v1914 = vrot.slane %v1912, 3
      %v1915 = vshll.u32 %v1429, 16
      %v1917 = vrot.slane %v1915, 4
      %v1918 = vor.u32 %v1914, %v1917
      %v1919 = vsel %vm1767, %v1909, %v1918
      %v1921 = vshrl.u32 %v1430, 16
      %v1923 = vrot.slane %v1921, 3
      %v1924 = vshll.u32 %v1430, 16
      %v1926 = vrot.slane %v1924, 4
      %v1927 = vor.u32 %v1923, %v1926
      %v1928 = vsel %vm1767, %v1918, %v1927
      %v1930 = vshrl.u32 %v1431, 16
      %v1932 = vrot.slane %v1930, 3
      %v1933 = vshll.u32 %v1431, 16
      %v1935 = vrot.slane %v1933, 4
      %v1936 = vor.u32 %v1932, %v1935
      %v1937 = vsel %vm1767, %v1927, %v1936
      %v1939 = vshrl.u32 %v1432, 16
      %v1941 = vrot.slane %v1939, 3
      %v1942 = vshll.u32 %v1432, 16
      %v1944 = vrot.slane %v1942, 4
      %v1945 = vor.u32 %v1941, %v1944
      %v1946 = vsel %vm1767, %v1936, %v1945
      %v1948 = vshrl.u32 %v1433, 16
      %v1950 = vrot.slane %v1948, 3
      %v1951 = vshll.u32 %v1433, 16
      %v1953 = vrot.slane %v1951, 4
      %v1954 = vor.u32 %v1950, %v1953
      %v1955 = vsel %vm1767, %v1945, %v1954
      %v1957 = vshrl.u32 %v1434, 16
      %v1959 = vrot.slane %v1957, 3
      %v1960 = vshll.u32 %v1434, 16
      %v1962 = vrot.slane %v1960, 4
      %v1963 = vor.u32 %v1959, %v1962
      %v1964 = vsel %vm1767, %v1954, %v1963
      %v1966 = vshrl.u32 %v1435, 16
      %v1968 = vrot.slane %v1966, 3
      %v1969 = vshll.u32 %v1435, 16
      %v1971 = vrot.slane %v1969, 4
      %v1972 = vor.u32 %v1968, %v1971
      %v1973 = vsel %vm1767, %v1963, %v1972
      %v1975 = vshrl.u32 %v1436, 16
      %v1977 = vrot.slane %v1975, 3
      %v1978 = vshll.u32 %v1436, 16
      %v1980 = vrot.slane %v1978, 4
      %v1981 = vor.u32 %v1977, %v1980
      %v1982 = vsel %vm1767, %v1972, %v1981
      %v1984 = vshrl.u32 %v1437, 16
      %v1986 = vrot.slane %v1984, 3
      %v1987 = vshll.u32 %v1437, 16
      %v1989 = vrot.slane %v1987, 4
      %v1990 = vor.u32 %v1986, %v1989
      %v1991 = vsel %vm1767, %v1981, %v1990
      %v1993 = vsel %vm1465, %v1784, 0
      %v1996 = vsel %vm1465, %v1793, 0
      %v1999 = vsel %vm1465, %v1802, 0
      %v2002 = vsel %vm1465, %v1811, 0
      %v2005 = vsel %vm1465, %v1820, 0
      %v2008 = vsel %vm1465, %v1829, 0
      %v2011 = vsel %vm1465, %v1838, 0
      %v2014 = vsel %vm1465, %v1847, 0
      %v2017 = vsel %vm1465, %v1856, 0
      %v2020 = vsel %vm1465, %v1865, 0
      %v2023 = vsel %vm1465, %v1874, 0
      %v2026 = vsel %vm1465, %v1883, 0
      %v2029 = vsel %vm1465, %v1892, 0
      %v2032 = vsel %vm1465, %v1901, 0
      %v2035 = vsel %vm1465, %v1910, 0
      %v2038 = vsel %vm1465, %v1919, 0
      %v2041 = vsel %vm1465, %v1928, 0
      %v2044 = vsel %vm1465, %v1937, 0
      %v2047 = vsel %vm1465, %v1946, 0
      %v2050 = vsel %vm1465, %v1955, 0
      %v2053 = vsel %vm1465, %v1964, 0
      %v2056 = vsel %vm1465, %v1973, 0
      %v2059 = vsel %vm1465, %v1982, 0
      %v2062 = vsel %vm1465, %v1991, 0
      %v2065 = vsel %vm1538, %v1438, 0
      %2067 = vmatprep.subr.bf16.mxu0 0
      %2068 = vmatpush1.bf16.msra.mxu0 %v2065
      %2069 = vmatprep.subr.bf16.mxu0 0
      %2070 = vmatpush1.bf16.msra.mxu0 0
      %2071 = vmatprep.subr.bf16.mxu0 0
      %2072 = vmatpush1.bf16.msra.mxu0 0
      %2073 = vmatprep.subr.bf16.mxu0 0
      %2074 = vmatpush1.bf16.msra.mxu0 0
      %2075 = vmatprep.subr.bf16.mxu0 0
      %2076 = vmatpush1.bf16.msra.mxu0 0
      %2077 = vmatprep.subr.bf16.mxu0 0
      %2078 = vmatpush1.bf16.msra.mxu0 0
      %2079 = vmatprep.subr.bf16.mxu0 0
      %2080 = vmatpush1.bf16.msra.mxu0 0
      %2081 = vmatprep.subr.bf16.mxu0 0
      %2082 = vmatpush1.bf16.msra.mxu0 0
      %2083 = vmatprep.subr.bf16.mxu0 0
      %2084 = vmatpush1.bf16.msra.mxu0 0
      %2085 = vmatprep.subr.bf16.mxu0 0
      %2086 = vmatpush1.bf16.msra.mxu0 0
      %2087 = vmatprep.subr.bf16.mxu0 0
      %2088 = vmatpush1.bf16.msra.mxu0 0
      %2089 = vmatprep.subr.bf16.mxu0 0
      %2090 = vmatpush1.bf16.msra.mxu0 0
      %2091 = vmatprep.subr.bf16.mxu0 0
      %2092 = vmatpush1.bf16.msra.mxu0 0
      %2093 = vmatprep.subr.bf16.mxu0 0
      %2094 = vmatpush1.bf16.msra.mxu0 0
      %2095 = vmatprep.subr.bf16.mxu0 0
      %2096 = vmatpush1.bf16.msra.mxu0 0
      %2097 = vmatprep.subr.bf16.mxu0 0
      %2098 = vmatpush1.bf16.msra.mxu0 0
      %2099 = vmatprep.mubr.bf16.mxu0 0
      %2100 = vmatmul.mubr.bf16.gmra.mrb[0].mxu0 %v1993
      %v2101 = vpop.f32.mrb[0].mxu0
      %v2102 = vadd.f32 %v1577, %v2101
      %v2103 = vpop.f32.mrb[0].mxu0
      %v2104 = vpop.f32.mrb[0].mxu0
      %v2105 = vadd.f32 %v1580, %v2104
      %v2106 = vpop.f32.mrb[0].mxu0
      %2107 = vmatprep.mubr.bf16.mxu0 0
      %2108 = vmatmul.mubr.bf16.gmra.mrb[0].mxu0 %v1996
      %v2109 = vpop.f32.mrb[0].mxu0
      %v2110 = vadd.f32 %v1585, %v2109
      %v2111 = vpop.f32.mrb[0].mxu0
      %v2112 = vpop.f32.mrb[0].mxu0
      %v2113 = vadd.f32 %v1588, %v2112
      %v2114 = vpop.f32.mrb[0].mxu0
      %2115 = vmatprep.mubr.bf16.mxu0 0
      %2116 = vmatmul.mubr.bf16.gmra.mrb[0].mxu0 %v1999
      %v2117 = vpop.f32.mrb[0].mxu0
      %v2118 = vadd.f32 %v1593, %v2117
      %v2119 = vpop.f32.mrb[0].mxu0
      %v2120 = vpop.f32.mrb[0].mxu0
      %v2121 = vadd.f32 %v1596, %v2120
      %v2122 = vpop.f32.mrb[0].mxu0
      %2123 = vmatprep.mubr.bf16.mxu0 0
      %2124 = vmatmul.mubr.bf16.gmra.mrb[0].mxu0 %v2002
      %v2125 = vpop.f32.mrb[0].mxu0
      %v2126 = vadd.f32 %v1601, %v2125
      %v2127 = vpop.f32.mrb[0].mxu0
      %v2128 = vpop.f32.mrb[0].mxu0
      %v2129 = vadd.f32 %v1604, %v2128
      %v2130 = vpop.f32.mrb[0].mxu0
      %2131 = vmatprep.mubr.bf16.mxu0 0
      %2132 = vmatmul.mubr.bf16.gmra.mrb[0].mxu0 %v2005
      %v2133 = vpop.f32.mrb[0].mxu0
      %v2134 = vadd.f32 %v1609, %v2133
      %v2135 = vpop.f32.mrb[0].mxu0
      %v2136 = vpop.f32.mrb[0].mxu0
      %v2137 = vadd.f32 %v1612, %v2136
      %v2138 = vpop.f32.mrb[0].mxu0
      %2139 = vmatprep.mubr.bf16.mxu0 0
      %2140 = vmatmul.mubr.bf16.gmra.mrb[0].mxu0 %v2008
      %v2141 = vpop.f32.mrb[0].mxu0
      %v2142 = vadd.f32 %v1617, %v2141
      %v2143 = vpop.f32.mrb[0].mxu0
      %v2144 = vpop.f32.mrb[0].mxu0
      %v2145 = vadd.f32 %v1620, %v2144
      %v2146 = vpop.f32.mrb[0].mxu0
      %2147 = vmatprep.mubr.bf16.mxu0 0
      %2148 = vmatmul.mubr.bf16.gmra.mrb[0].mxu0 %v2011
      %v2149 = vpop.f32.mrb[0].mxu0
      %v2150 = vadd.f32 %v1625, %v2149
      %v2151 = vpop.f32.mrb[0].mxu0
      %v2152 = vpop.f32.mrb[0].mxu0
      %v2153 = vadd.f32 %v1628, %v2152
      %v2154 = vpop.f32.mrb[0].mxu0
      %2155 = vmatprep.mubr.bf16.mxu0 0
      %2156 = vmatmul.mubr.bf16.gmra.mrb[0].mxu0 %v2014
      %v2157 = vpop.f32.mrb[0].mxu0
      %v2158 = vadd.f32 %v1633, %v2157
      %v2159 = vpop.f32.mrb[0].mxu0
      %v2160 = vpop.f32.mrb[0].mxu0
      %v2161 = vadd.f32 %v1636, %v2160
      %v2162 = vpop.f32.mrb[0].mxu0
      %2163 = vmatprep.mubr.bf16.mxu0 0
      %2164 = vmatmul.mubr.bf16.gmra.mrb[0].mxu0 %v2017
      %v2165 = vpop.f32.mrb[0].mxu0
      %v2166 = vadd.f32 %v1641, %v2165
      %v2167 = vpop.f32.mrb[0].mxu0
      %v2168 = vpop.f32.mrb[0].mxu0
      %v2169 = vadd.f32 %v1644, %v2168
      %v2170 = vpop.f32.mrb[0].mxu0
      %2171 = vmatprep.mubr.bf16.mxu0 0
      %2172 = vmatmul.mubr.bf16.gmra.mrb[0].mxu0 %v2020
      %v2173 = vpop.f32.mrb[0].mxu0
      %v2174 = vadd.f32 %v1649, %v2173
      %v2175 = vpop.f32.mrb[0].mxu0
      %v2176 = vpop.f32.mrb[0].mxu0
      %v2177 = vadd.f32 %v1652, %v2176
      %v2178 = vpop.f32.mrb[0].mxu0
      %2179 = vmatprep.mubr.bf16.mxu0 0
      %2180 = vmatmul.mubr.bf16.gmra.mrb[0].mxu0 %v2023
      %v2181 = vpop.f32.mrb[0].mxu0
      %v2182 = vadd.f32 %v1657, %v2181
      %v2183 = vpop.f32.mrb[0].mxu0
      %v2184 = vpop.f32.mrb[0].mxu0
      %v2185 = vadd.f32 %v1660, %v2184
      %v2186 = vpop.f32.mrb[0].mxu0
      %2187 = vmatprep.mubr.bf16.mxu0 0
      %2188 = vmatmul.mubr.bf16.gmra.mrb[0].mxu0 %v2026
      %v2189 = vpop.f32.mrb[0].mxu0
      %v2190 = vadd.f32 %v1665, %v2189
      %v2191 = vpop.f32.mrb[0].mxu0
      %v2192 = vpop.f32.mrb[0].mxu0
      %v2193 = vadd.f32 %v1668, %v2192
      %v2194 = vpop.f32.mrb[0].mxu0
      %2195 = vmatprep.mubr.bf16.mxu0 0
      %2196 = vmatmul.mubr.bf16.gmra.mrb[0].mxu0 %v2029
      %v2197 = vpop.f32.mrb[0].mxu0
      %v2198 = vadd.f32 %v1673, %v2197
      %v2199 = vpop.f32.mrb[0].mxu0
      %v2200 = vpop.f32.mrb[0].mxu0
      %v2201 = vadd.f32 %v1676, %v2200
      %v2202 = vpop.f32.mrb[0].mxu0
      %2203 = vmatprep.mubr.bf16.mxu0 0
      %2204 = vmatmul.mubr.bf16.gmra.mrb[0].mxu0 %v2032
      %v2205 = vpop.f32.mrb[0].mxu0
      %v2206 = vadd.f32 %v1681, %v2205
      %v2207 = vpop.f32.mrb[0].mxu0
      %v2208 = vpop.f32.mrb[0].mxu0
      %v2209 = vadd.f32 %v1684, %v2208
      %v2210 = vpop.f32.mrb[0].mxu0
      %2211 = vmatprep.mubr.bf16.mxu0 0
      %2212 = vmatmul.mubr.bf16.gmra.mrb[0].mxu0 %v2035
      %v2213 = vpop.f32.mrb[0].mxu0
      %v2214 = vadd.f32 %v1689, %v2213
      %v2215 = vpop.f32.mrb[0].mxu0
      %v2216 = vpop.f32.mrb[0].mxu0
      %v2217 = vadd.f32 %v1692, %v2216
      %v2218 = vpop.f32.mrb[0].mxu0
      %2219 = vmatprep.mubr.bf16.mxu0 0
      %2220 = vmatmul.mubr.bf16.gmra.mrb[0].mxu0 %v2038
      %v2221 = vpop.f32.mrb[0].mxu0
      %v2222 = vadd.f32 %v1697, %v2221
      %v2223 = vpop.f32.mrb[0].mxu0
      %v2224 = vpop.f32.mrb[0].mxu0
      %v2225 = vadd.f32 %v1700, %v2224
      %v2226 = vpop.f32.mrb[0].mxu0
      %2227 = vmatprep.mubr.bf16.mxu0 0
      %2228 = vmatmul.mubr.bf16.gmra.mrb[0].mxu0 %v2041
      %v2229 = vpop.f32.mrb[0].mxu0
      %v2230 = vadd.f32 %v1705, %v2229
      %v2231 = vpop.f32.mrb[0].mxu0
      %v2232 = vpop.f32.mrb[0].mxu0
      %v2233 = vadd.f32 %v1708, %v2232
      %v2234 = vpop.f32.mrb[0].mxu0
      %2235 = vmatprep.mubr.bf16.mxu0 0
      %2236 = vmatmul.mubr.bf16.gmra.mrb[0].mxu0 %v2044
      %v2237 = vpop.f32.mrb[0].mxu0
      %v2238 = vadd.f32 %v1713, %v2237
      %v2239 = vpop.f32.mrb[0].mxu0
      %v2240 = vpop.f32.mrb[0].mxu0
      %v2241 = vadd.f32 %v1716, %v2240
      %v2242 = vpop.f32.mrb[0].mxu0
      %2243 = vmatprep.mubr.bf16.mxu0 0
      %2244 = vmatmul.mubr.bf16.gmra.mrb[0].mxu0 %v2047
      %v2245 = vpop.f32.mrb[0].mxu0
      %v2246 = vadd.f32 %v1721, %v2245
      %v2247 = vpop.f32.mrb[0].mxu0
      %v2248 = vpop.f32.mrb[0].mxu0
      %v2249 = vadd.f32 %v1724, %v2248
      %v2250 = vpop.f32.mrb[0].mxu0
      %2251 = vmatprep.mubr.bf16.mxu0 0
      %2252 = vmatmul.mubr.bf16.gmra.mrb[0].mxu0 %v2050
      %v2253 = vpop.f32.mrb[0].mxu0
      %v2254 = vadd.f32 %v1729, %v2253
      %v2255 = vpop.f32.mrb[0].mxu0
      %v2256 = vpop.f32.mrb[0].mxu0
      %v2257 = vadd.f32 %v1732, %v2256
      %v2258 = vpop.f32.mrb[0].mxu0
      %2259 = vmatprep.mubr.bf16.mxu0 0
      %2260 = vmatmul.mubr.bf16.gmra.mrb[0].mxu0 %v2053
      %v2261 = vpop.f32.mrb[0].mxu0
      %v2262 = vadd.f32 %v1737, %v2261
      %v2263 = vpop.f32.mrb[0].mxu0
      %v2264 = vpop.f32.mrb[0].mxu0
      %v2265 = vadd.f32 %v1740, %v2264
      %v2266 = vpop.f32.mrb[0].mxu0
      %2267 = vmatprep.mubr.bf16.mxu0 0
      %2268 = vmatmul.mubr.bf16.gmra.mrb[0].mxu0 %v2056
      %v2269 = vpop.f32.mrb[0].mxu0
      %v2270 = vadd.f32 %v1745, %v2269
      %v2271 = vpop.f32.mrb[0].mxu0
      %v2272 = vpop.f32.mrb[0].mxu0
      %v2273 = vadd.f32 %v1748, %v2272
      %v2274 = vpop.f32.mrb[0].mxu0
      %2275 = vmatprep.mubr.bf16.mxu0 0
      %2276 = vmatmul.mubr.bf16.gmra.mrb[0].mxu0 %v2059
      %v2277 = vpop.f32.mrb[0].mxu0
      %v2278 = vadd.f32 %v1753, %v2277
      %v2279 = vpop.f32.mrb[0].mxu0
      %v2280 = vpop.f32.mrb[0].mxu0
      %v2281 = vadd.f32 %v1756, %v2280
      %v2282 = vpop.f32.mrb[0].mxu0
      %2283 = vmatprep.mubr.bf16.mxu0 0
      %2284 = vmatmul.mubr.bf16.gmra.mrb[0].mxu0 %v2062
      %v2285 = vpop.f32.mrb[0].mxu0
      %v2286 = vadd.f32 %v1761, %v2285
      %v2287 = vpop.f32.mrb[0].mxu0
      %v2288 = vpop.f32.mrb[0].mxu0
      %v2289 = vadd.f32 %v1764, %v2288
      %v2290 = vpop.f32.mrb[0].mxu0
      %2291 = vdwg.mxu0
      %v2292 = vpack.c.bf16 %v1407, %v1407
      %s2293 = scalar_lea.vmem %s6, 4
      %v2294 = vld [vmem:[%s2293] sm:$0x3]
      %vm2295 = vsmask.f32 7424
      %v2296 = vshrl.u32 %v1439, 16
      %v2298 = vshll.u32 %v1439, 16
      %v2300 = vrot.slane %v2298, 1
      %v2301 = vor.u32 %v2296, %v2300
      %v2302 = vshll.u32 %v1440, 16
      %v2304 = vrot.slane %v2302, 1
      %v2305 = vsel %vm2295, %v2301, %v2304
      %v2306 = vshrl.u32 %v1440, 16
      %v2308 = vor.u32 %v2306, %v2304
      %v2309 = vshll.u32 %v1441, 16
      %v2311 = vrot.slane %v2309, 1
      %v2312 = vsel %vm2295, %v2308, %v2311
      %v2313 = vshrl.u32 %v1441, 16
      %v2315 = vor.u32 %v2313, %v2311
      %v2316 = vshll.u32 %v1442, 16
      %v2318 = vrot.slane %v2316, 1
      %v2319 = vsel %vm2295, %v2315, %v2318
      %v2320 = vshrl.u32 %v1442, 16
      %v2322 = vor.u32 %v2320, %v2318
      %v2323 = vshll.u32 %v1443, 16
      %v2325 = vrot.slane %v2323, 1
      %v2326 = vsel %vm2295, %v2322, %v2325
      %v2327 = vshrl.u32 %v1443, 16
      %v2329 = vor.u32 %v2327, %v2325
      %v2330 = vshll.u32 %v1444, 16
      %v2332 = vrot.slane %v2330, 1
      %v2333 = vsel %vm2295, %v2329, %v2332
      %v2334 = vshrl.u32 %v1444, 16
      %v2336 = vor.u32 %v2334, %v2332
      %v2337 = vshll.u32 %v1445, 16
      %v2339 = vrot.slane %v2337, 1
      %v2340 = vsel %vm2295, %v2336, %v2339
      %v2341 = vshrl.u32 %v1445, 16
      %v2343 = vor.u32 %v2341, %v2339
      %v2344 = vshll.u32 %v1446, 16
      %v2346 = vrot.slane %v2344, 1
      %v2347 = vsel %vm2295, %v2343, %v2346
      %v2348 = vshrl.u32 %v1446, 16
      %v2350 = vor.u32 %v2348, %v2346
      %v2351 = vshll.u32 %v1447, 16
      %v2353 = vrot.slane %v2351, 1
      %v2354 = vsel %vm2295, %v2350, %v2353
      %v2355 = vshrl.u32 %v1447, 16
      %v2357 = vor.u32 %v2355, %v2353
      %v2358 = vshll.u32 %v1448, 16
      %v2360 = vrot.slane %v2358, 1
      %v2361 = vsel %vm2295, %v2357, %v2360
      %v2362 = vshrl.u32 %v1448, 16
      %v2364 = vor.u32 %v2362, %v2360
      %v2365 = vshll.u32 %v1449, 16
      %v2367 = vrot.slane %v2365, 1
      %v2368 = vsel %vm2295, %v2364, %v2367
      %v2369 = vshrl.u32 %v1449, 16
      %v2371 = vor.u32 %v2369, %v2367
      %v2372 = vshll.u32 %v1450, 16
      %v2374 = vrot.slane %v2372, 1
      %v2375 = vsel %vm2295, %v2371, %v2374
      %v2376 = vshrl.u32 %v1450, 16
      %v2378 = vor.u32 %v2376, %v2374
      %v2379 = vshll.u32 %v1451, 16
      %v2381 = vrot.slane %v2379, 1
      %v2382 = vsel %vm2295, %v2378, %v2381
      %v2383 = vshrl.u32 %v1451, 16
      %v2385 = vor.u32 %v2383, %v2381
      %v2386 = vshll.u32 %v1452, 16
      %v2388 = vrot.slane %v2386, 1
      %v2389 = vsel %vm2295, %v2385, %v2388
      %v2390 = vshrl.u32 %v1452, 16
      %v2392 = vor.u32 %v2390, %v2388
      %v2393 = vshll.u32 %v1453, 16
      %v2395 = vrot.slane %v2393, 1
      %v2396 = vsel %vm2295, %v2392, %v2395
      %v2397 = vshrl.u32 %v1453, 16
      %v2399 = vor.u32 %v2397, %v2395
      %v2400 = vshll.u32 %v1454, 16
      %v2402 = vrot.slane %v2400, 1
      %v2403 = vsel %vm2295, %v2399, %v2402
      %v2404 = vshrl.u32 %v1454, 16
      %v2406 = vor.u32 %v2404, %v2402
      %v2407 = vshll.u32 %v1455, 16
      %v2409 = vrot.slane %v2407, 1
      %v2410 = vsel %vm2295, %v2406, %v2409
      %v2411 = vshrl.u32 %v1455, 16
      %v2413 = vor.u32 %v2411, %v2409
      %v2414 = vshll.u32 %v1456, 16
      %v2416 = vrot.slane %v2414, 1
      %v2417 = vsel %vm2295, %v2413, %v2416
      %v2418 = vshrl.u32 %v1456, 16
      %v2420 = vor.u32 %v2418, %v2416
      %v2421 = vshll.u32 %v1457, 16
      %v2423 = vrot.slane %v2421, 1
      %v2424 = vsel %vm2295, %v2420, %v2423
      %v2425 = vshrl.u32 %v1457, 16
      %v2427 = vor.u32 %v2425, %v2423
      %v2428 = vshll.u32 %v1458, 16
      %v2430 = vrot.slane %v2428, 1
      %v2431 = vsel %vm2295, %v2427, %v2430
      %v2432 = vshrl.u32 %v1458, 16
      %v2434 = vor.u32 %v2432, %v2430
      %v2435 = vshll.u32 %v1459, 16
      %v2437 = vrot.slane %v2435, 1
      %v2438 = vsel %vm2295, %v2434, %v2437
      %v2439 = vshrl.u32 %v1459, 16
      %v2441 = vor.u32 %v2439, %v2437
      %v2442 = vshll.u32 %v1460, 16
      %v2444 = vrot.slane %v2442, 1
      %v2445 = vsel %vm2295, %v2441, %v2444
      %v2446 = vshrl.u32 %v1460, 16
      %v2448 = vor.u32 %v2446, %v2444
      %v2449 = vshll.u32 %v1461, 16
      %v2451 = vrot.slane %v2449, 1
      %v2452 = vsel %vm2295, %v2448, %v2451
      %v2453 = vshrl.u32 %v1461, 16
      %v2455 = vor.u32 %v2453, %v2451
      %v2456 = vshll.u32 %v1462, 16
      %v2458 = vrot.slane %v2456, 1
      %v2459 = vsel %vm2295, %v2455, %v2458
      %v2460 = vshrl.u32 %v1462, 16
      %v2462 = vor.u32 %v2460, %v2458
      %v2464 = vshll.u32 %v2292, 16
      %v2466 = vrot.slane %v2464, 1
      %v2467 = vsel %vm2295, %v2462, %v2466
      %v2469 = vsel %vm1465, %v2305, 0
      %v2472 = vsel %vm1465, %v2312, 0
      %v2475 = vsel %vm1465, %v2319, 0
      %v2478 = vsel %vm1465, %v2326, 0
      %v2481 = vsel %vm1465, %v2333, 0
      %v2484 = vsel %vm1465, %v2340, 0
      %v2487 = vsel %vm1465, %v2347, 0
      %v2490 = vsel %vm1465, %v2354, 0
      %v2493 = vsel %vm1465, %v2361, 0
      %v2496 = vsel %vm1465, %v2368, 0
      %v2499 = vsel %vm1465, %v2375, 0
      %v2502 = vsel %vm1465, %v2382, 0
      %v2505 = vsel %vm1465, %v2389, 0
      %v2508 = vsel %vm1465, %v2396, 0
      %v2511 = vsel %vm1465, %v2403, 0
      %v2514 = vsel %vm1465, %v2410, 0
      %v2517 = vsel %vm1465, %v2417, 0
      %v2520 = vsel %vm1465, %v2424, 0
      %v2523 = vsel %vm1465, %v2431, 0
      %v2526 = vsel %vm1465, %v2438, 0
      %v2529 = vsel %vm1465, %v2445, 0
      %v2532 = vsel %vm1465, %v2452, 0
      %v2535 = vsel %vm1465, %v2459, 0
      %v2538 = vsel %vm1465, %v2467, 0
      %v2541 = vsel %vm1538, %v2294, 0
      %2543 = vmatprep.subr.bf16.mxu0 0
      %2544 = vmatpush1.bf16.msra.mxu0 %v2541
      %2545 = vmatprep.subr.bf16.mxu0 0
      %2546 = vmatpush1.bf16.msra.mxu0 0
      %2547 = vmatprep.subr.bf16.mxu0 0
      %2548 = vmatpush1.bf16.msra.mxu0 0
      %2549 = vmatprep.subr.bf16.mxu0 0
      %2550 = vmatpush1.bf16.msra.mxu0 0
      %2551 = vmatprep.subr.bf16.mxu0 0
      %2552 = vmatpush1.bf16.msra.mxu0 0
      %2553 = vmatprep.subr.bf16.mxu0 0
      %2554 = vmatpush1.bf16.msra.mxu0 0
      %2555 = vmatprep.subr.bf16.mxu0 0
      %2556 = vmatpush1.bf16.msra.mxu0 0
      %2557 = vmatprep.subr.bf16.mxu0 0
      %2558 = vmatpush1.bf16.msra.mxu0 0
      %2559 = vmatprep.subr.bf16.mxu0 0
      %2560 = vmatpush1.bf16.msra.mxu0 0
      %2561 = vmatprep.subr.bf16.mxu0 0
      %2562 = vmatpush1.bf16.msra.mxu0 0
      %2563 = vmatprep.subr.bf16.mxu0 0
      %2564 = vmatpush1.bf16.msra.mxu0 0
      %2565 = vmatprep.subr.bf16.mxu0 0
      %2566 = vmatpush1.bf16.msra.mxu0 0
      %2567 = vmatprep.subr.bf16.mxu0 0
      %2568 = vmatpush1.bf16.msra.mxu0 0
      %2569 = vmatprep.subr.bf16.mxu0 0
      %2570 = vmatpush1.bf16.msra.mxu0 0
      %2571 = vmatprep.subr.bf16.mxu0 0
      %2572 = vmatpush1.bf16.msra.mxu0 0
      %2573 = vmatprep.subr.bf16.mxu0 0
      %2574 = vmatpush1.bf16.msra.mxu0 0
      %2575 = vmatprep.mubr.bf16.mxu0 0
      %2576 = vmatmul.mubr.bf16.gmra.mrb[0].mxu0 %v2469
      %v2577 = vpop.f32.mrb[0].mxu0
      %v2578 = vadd.f32 0.0, %v2577
      %v2579 = vpop.f32.mrb[0].mxu0
      %v2580 = vpop.f32.mrb[0].mxu0
      %v2581 = vadd.f32 0.0, %v2580
      %v2582 = vpop.f32.mrb[0].mxu0
      %2583 = vmatprep.mubr.bf16.mxu0 0
      %2584 = vmatmul.mubr.bf16.gmra.mrb[0].mxu0 %v2472
      %v2585 = vpop.f32.mrb[0].mxu0
      %v2586 = vadd.f32 0.0, %v2585
      %v2587 = vpop.f32.mrb[0].mxu0
      %v2588 = vpop.f32.mrb[0].mxu0
      %v2589 = vadd.f32 0.0, %v2588
      %v2590 = vpop.f32.mrb[0].mxu0
      %2591 = vmatprep.mubr.bf16.mxu0 0
      %2592 = vmatmul.mubr.bf16.gmra.mrb[0].mxu0 %v2475
      %v2593 = vpop.f32.mrb[0].mxu0
      %v2594 = vadd.f32 0.0, %v2593
      %v2595 = vpop.f32.mrb[0].mxu0
      %v2596 = vpop.f32.mrb[0].mxu0
      %v2597 = vadd.f32 0.0, %v2596
      %v2598 = vpop.f32.mrb[0].mxu0
      %2599 = vmatprep.mubr.bf16.mxu0 0
      %2600 = vmatmul.mubr.bf16.gmra.mrb[0].mxu0 %v2478
      %v2601 = vpop.f32.mrb[0].mxu0
      %v2602 = vadd.f32 0.0, %v2601
      %v2603 = vpop.f32.mrb[0].mxu0
      %v2604 = vpop.f32.mrb[0].mxu0
      %v2605 = vadd.f32 0.0, %v2604
      %v2606 = vpop.f32.mrb[0].mxu0
      %2607 = vmatprep.mubr.bf16.mxu0 0
      %2608 = vmatmul.mubr.bf16.gmra.mrb[0].mxu0 %v2481
      %v2609 = vpop.f32.mrb[0].mxu0
      %v2610 = vadd.f32 0.0, %v2609
      %v2611 = vpop.f32.mrb[0].mxu0
      %v2612 = vpop.f32.mrb[0].mxu0
      %v2613 = vadd.f32 0.0, %v2612
      %v2614 = vpop.f32.mrb[0].mxu0
      %2615 = vmatprep.mubr.bf16.mxu0 0
      %2616 = vmatmul.mubr.bf16.gmra.mrb[0].mxu0 %v2484
      %v2617 = vpop.f32.mrb[0].mxu0
      %v2618 = vadd.f32 0.0, %v2617
      %v2619 = vpop.f32.mrb[0].mxu0
      %v2620 = vpop.f32.mrb[0].mxu0
      %v2621 = vadd.f32 0.0, %v2620
      %v2622 = vpop.f32.mrb[0].mxu0
      %2623 = vmatprep.mubr.bf16.mxu0 0
      %2624 = vmatmul.mubr.bf16.gmra.mrb[0].mxu0 %v2487
      %v2625 = vpop.f32.mrb[0].mxu0
      %v2626 = vadd.f32 0.0, %v2625
      %v2627 = vpop.f32.mrb[0].mxu0
      %v2628 = vpop.f32.mrb[0].mxu0
      %v2629 = vadd.f32 0.0, %v2628
      %v2630 = vpop.f32.mrb[0].mxu0
      %2631 = vmatprep.mubr.bf16.mxu0 0
      %2632 = vmatmul.mubr.bf16.gmra.mrb[0].mxu0 %v2490
      %v2633 = vpop.f32.mrb[0].mxu0
      %v2634 = vadd.f32 0.0, %v2633
      %v2635 = vpop.f32.mrb[0].mxu0
      %v2636 = vpop.f32.mrb[0].mxu0
      %v2637 = vadd.f32 0.0, %v2636
      %v2638 = vpop.f32.mrb[0].mxu0
      %2639 = vmatprep.mubr.bf16.mxu0 0
      %2640 = vmatmul.mubr.bf16.gmra.mrb[0].mxu0 %v2493
      %v2641 = vpop.f32.mrb[0].mxu0
      %v2642 = vadd.f32 0.0, %v2641
      %v2643 = vpop.f32.mrb[0].mxu0
      %v2644 = vpop.f32.mrb[0].mxu0
      %v2645 = vadd.f32 0.0, %v2644
      %v2646 = vpop.f32.mrb[0].mxu0
      %2647 = vmatprep.mubr.bf16.mxu0 0
      %2648 = vmatmul.mubr.bf16.gmra.mrb[0].mxu0 %v2496
      %v2649 = vpop.f32.mrb[0].mxu0
      %v2650 = vadd.f32 0.0, %v2649
      %v2651 = vpop.f32.mrb[0].mxu0
      %v2652 = vpop.f32.mrb[0].mxu0
      %v2653 = vadd.f32 0.0, %v2652
      %v2654 = vpop.f32.mrb[0].mxu0
      %2655 = vmatprep.mubr.bf16.mxu0 0
      %2656 = vmatmul.mubr.bf16.gmra.mrb[0].mxu0 %v2499
      %v2657 = vpop.f32.mrb[0].mxu0
      %v2658 = vadd.f32 0.0, %v2657
      %v2659 = vpop.f32.mrb[0].mxu0
      %v2660 = vpop.f32.mrb[0].mxu0
      %v2661 = vadd.f32 0.0, %v2660
      %v2662 = vpop.f32.mrb[0].mxu0
      %2663 = vmatprep.mubr.bf16.mxu0 0
      %2664 = vmatmul.mubr.bf16.gmra.mrb[0].mxu0 %v2502
      %v2665 = vpop.f32.mrb[0].mxu0
      %v2666 = vadd.f32 0.0, %v2665
      %v2667 = vpop.f32.mrb[0].mxu0
      %v2668 = vpop.f32.mrb[0].mxu0
      %v2669 = vadd.f32 0.0, %v2668
      %v2670 = vpop.f32.mrb[0].mxu0
      %2671 = vmatprep.mubr.bf16.mxu0 0
      %2672 = vmatmul.mubr.bf16.gmra.mrb[0].mxu0 %v2505
      %v2673 = vpop.f32.mrb[0].mxu0
      %v2674 = vadd.f32 0.0, %v2673
      %v2675 = vpop.f32.mrb[0].mxu0
      %v2676 = vpop.f32.mrb[0].mxu0
      %v2677 = vadd.f32 0.0, %v2676
      %v2678 = vpop.f32.mrb[0].mxu0
      %2679 = vmatprep.mubr.bf16.mxu0 0
      %2680 = vmatmul.mubr.bf16.gmra.mrb[0].mxu0 %v2508
      %v2681 = vpop.f32.mrb[0].mxu0
      %v2682 = vadd.f32 0.0, %v2681
      %v2683 = vpop.f32.mrb[0].mxu0
      %v2684 = vpop.f32.mrb[0].mxu0
      %v2685 = vadd.f32 0.0, %v2684
      %v2686 = vpop.f32.mrb[0].mxu0
      %2687 = vmatprep.mubr.bf16.mxu0 0
      %2688 = vmatmul.mubr.bf16.gmra.mrb[0].mxu0 %v2511
      %v2689 = vpop.f32.mrb[0].mxu0
      %v2690 = vadd.f32 0.0, %v2689
      %v2691 = vpop.f32.mrb[0].mxu0
      %v2692 = vpop.f32.mrb[0].mxu0
      %v2693 = vadd.f32 0.0, %v2692
      %v2694 = vpop.f32.mrb[0].mxu0
      %2695 = vmatprep.mubr.bf16.mxu0 0
      %2696 = vmatmul.mubr.bf16.gmra.mrb[0].mxu0 %v2514
      %v2697 = vpop.f32.mrb[0].mxu0
      %v2698 = vadd.f32 0.0, %v2697
      %v2699 = vpop.f32.mrb[0].mxu0
      %v2700 = vpop.f32.mrb[0].mxu0
      %v2701 = vadd.f32 0.0, %v2700
      %v2702 = vpop.f32.mrb[0].mxu0
      %2703 = vmatprep.mubr.bf16.mxu0 0
      %2704 = vmatmul.mubr.bf16.gmra.mrb[0].mxu0 %v2517
      %v2705 = vpop.f32.mrb[0].mxu0
      %v2706 = vadd.f32 0.0, %v2705
      %v2707 = vpop.f32.mrb[0].mxu0
      %v2708 = vpop.f32.mrb[0].mxu0
      %v2709 = vadd.f32 0.0, %v2708
      %v2710 = vpop.f32.mrb[0].mxu0
      %2711 = vmatprep.mubr.bf16.mxu0 0
      %2712 = vmatmul.mubr.bf16.gmra.mrb[0].mxu0 %v2520
      %v2713 = vpop.f32.mrb[0].mxu0
      %v2714 = vadd.f32 0.0, %v2713
      %v2715 = vpop.f32.mrb[0].mxu0
      %v2716 = vpop.f32.mrb[0].mxu0
      %v2717 = vadd.f32 0.0, %v2716
      %v2718 = vpop.f32.mrb[0].mxu0
      %2719 = vmatprep.mubr.bf16.mxu0 0
      %2720 = vmatmul.mubr.bf16.gmra.mrb[0].mxu0 %v2523
      %v2721 = vpop.f32.mrb[0].mxu0
      %v2722 = vadd.f32 0.0, %v2721
      %v2723 = vpop.f32.mrb[0].mxu0
      %v2724 = vpop.f32.mrb[0].mxu0
      %v2725 = vadd.f32 0.0, %v2724
      %v2726 = vpop.f32.mrb[0].mxu0
      %2727 = vmatprep.mubr.bf16.mxu0 0
      %2728 = vmatmul.mubr.bf16.gmra.mrb[0].mxu0 %v2526
      %v2729 = vpop.f32.mrb[0].mxu0
      %v2730 = vadd.f32 0.0, %v2729
      %v2731 = vpop.f32.mrb[0].mxu0
      %v2732 = vpop.f32.mrb[0].mxu0
      %v2733 = vadd.f32 0.0, %v2732
      %v2734 = vpop.f32.mrb[0].mxu0
      %2735 = vmatprep.mubr.bf16.mxu0 0
      %2736 = vmatmul.mubr.bf16.gmra.mrb[0].mxu0 %v2529
      %v2737 = vpop.f32.mrb[0].mxu0
      %v2738 = vadd.f32 0.0, %v2737
      %v2739 = vpop.f32.mrb[0].mxu0
      %v2740 = vpop.f32.mrb[0].mxu0
      %v2741 = vadd.f32 0.0, %v2740
      %v2742 = vpop.f32.mrb[0].mxu0
      %2743 = vmatprep.mubr.bf16.mxu0 0
      %2744 = vmatmul.mubr.bf16.gmra.mrb[0].mxu0 %v2532
      %v2745 = vpop.f32.mrb[0].mxu0
      %v2746 = vadd.f32 0.0, %v2745
      %v2747 = vpop.f32.mrb[0].mxu0
      %v2748 = vpop.f32.mrb[0].mxu0
      %v2749 = vadd.f32 0.0, %v2748
      %v2750 = vpop.f32.mrb[0].mxu0
      %2751 = vmatprep.mubr.bf16.mxu0 0
      %2752 = vmatmul.mubr.bf16.gmra.mrb[0].mxu0 %v2535
      %v2753 = vpop.f32.mrb[0].mxu0
      %v2754 = vadd.f32 0.0, %v2753
      %v2755 = vpop.f32.mrb[0].mxu0
      %v2756 = vpop.f32.mrb[0].mxu0
      %v2757 = vadd.f32 0.0, %v2756
      %v2758 = vpop.f32.mrb[0].mxu0
      %2759 = vmatprep.mubr.bf16.mxu0 0
      %2760 = vmatmul.mubr.bf16.gmra.mrb[0].mxu0 %v2538
      %v2761 = vpop.f32.mrb[0].mxu0
      %v2762 = vadd.f32 0.0, %v2761
      %v2763 = vpop.f32.mrb[0].mxu0
      %v2764 = vpop.f32.mrb[0].mxu0
      %v2765 = vadd.f32 0.0, %v2764
      %v2766 = vpop.f32.mrb[0].mxu0
      %2767 = vdwg.mxu0
      %v2768 = vadd.f32 %v2102, %v2578
      %v2769 = vadd.f32 %v2105, %v2581
      %v2770 = vadd.f32 %v2110, %v2586
      %v2771 = vadd.f32 %v2113, %v2589
      %v2772 = vadd.f32 %v2118, %v2594
      %v2773 = vadd.f32 %v2121, %v2597
      %v2774 = vadd.f32 %v2126, %v2602
      %v2775 = vadd.f32 %v2129, %v2605
      %v2776 = vadd.f32 %v2134, %v2610
      %v2777 = vadd.f32 %v2137, %v2613
      %v2778 = vadd.f32 %v2142, %v2618
      %v2779 = vadd.f32 %v2145, %v2621
      %v2780 = vadd.f32 %v2150, %v2626
      %v2781 = vadd.f32 %v2153, %v2629
      %v2782 = vadd.f32 %v2158, %v2634
      %v2783 = vadd.f32 %v2161, %v2637
      %v2784 = vadd.f32 %v2166, %v2642
      %v2785 = vadd.f32 %v2169, %v2645
      %v2786 = vadd.f32 %v2174, %v2650
      %v2787 = vadd.f32 %v2177, %v2653
      %v2788 = vadd.f32 %v2182, %v2658
      %v2789 = vadd.f32 %v2185, %v2661
      %v2790 = vadd.f32 %v2190, %v2666
      %v2791 = vadd.f32 %v2193, %v2669
      %v2792 = vadd.f32 %v2198, %v2674
      %v2793 = vadd.f32 %v2201, %v2677
      %v2794 = vadd.f32 %v2206, %v2682
      %v2795 = vadd.f32 %v2209, %v2685
      %v2796 = vadd.f32 %v2214, %v2690
      %v2797 = vadd.f32 %v2217, %v2693
      %v2798 = vadd.f32 %v2222, %v2698
      %v2799 = vadd.f32 %v2225, %v2701
      %v2800 = vadd.f32 %v2230, %v2706
      %v2801 = vadd.f32 %v2233, %v2709
      %v2802 = vadd.f32 %v2238, %v2714
      %v2803 = vadd.f32 %v2241, %v2717
      %v2804 = vadd.f32 %v2246, %v2722
      %v2805 = vadd.f32 %v2249, %v2725
      %v2806 = vadd.f32 %v2254, %v2730
      %v2807 = vadd.f32 %v2257, %v2733
      %v2808 = vadd.f32 %v2262, %v2738
      %v2809 = vadd.f32 %v2265, %v2741
      %v2810 = vadd.f32 %v2270, %v2746
      %v2811 = vadd.f32 %v2273, %v2749
      %v2812 = vadd.f32 %v2278, %v2754
      %v2813 = vadd.f32 %v2281, %v2757
      %v2814 = vadd.f32 %v2286, %v2762
      %v2815 = vadd.f32 %v2289, %v2765
      %v2816 = vpack.c.bf16 %v1408, %v1407
      %v2817 = vpack.c.bf16 %v1409, %v1409
      %s2818 = scalar_lea.vmem %s6, 6
      %v2819 = vld [vmem:[%s2818] sm:$0x3]
      %v2820 = vrot.slane %v2306, 3
      %v2821 = vrot.slane %v2302, 4
      %v2822 = vor.u32 %v2820, %v2821
      %v2823 = vrot.slane %v2313, 3
      %v2824 = vrot.slane %v2309, 4
      %v2825 = vor.u32 %v2823, %v2824
      %v2826 = vsel %vm1767, %v2822, %v2825
      %v2827 = vrot.slane %v2320, 3
      %v2828 = vrot.slane %v2316, 4
      %v2829 = vor.u32 %v2827, %v2828
      %v2830 = vsel %vm1767, %v2825, %v2829
      %v2831 = vrot.slane %v2327, 3
      %v2832 = vrot.slane %v2323, 4
      %v2833 = vor.u32 %v2831, %v2832
      %v2834 = vsel %vm1767, %v2829, %v2833
      %v2835 = vrot.slane %v2334, 3
      %v2836 = vrot.slane %v2330, 4
      %v2837 = vor.u32 %v2835, %v2836
      %v2838 = vsel %vm1767, %v2833, %v2837
      %v2839 = vrot.slane %v2341, 3
      %v2840 = vrot.slane %v2337, 4
      %v2841 = vor.u32 %v2839, %v2840
      %v2842 = vsel %vm1767, %v2837, %v2841
      %v2843 = vrot.slane %v2348, 3
      %v2844 = vrot.slane %v2344, 4
      %v2845 = vor.u32 %v2843, %v2844
      %v2846 = vsel %vm1767, %v2841, %v2845
      %v2847 = vrot.slane %v2355, 3
      %v2848 = vrot.slane %v2351, 4
      %v2849 = vor.u32 %v2847, %v2848
      %v2850 = vsel %vm1767, %v2845, %v2849
      %v2851 = vrot.slane %v2362, 3
      %v2852 = vrot.slane %v2358, 4
      %v2853 = vor.u32 %v2851, %v2852
      %v2854 = vsel %vm1767, %v2849, %v2853
      %v2855 = vrot.slane %v2369, 3
      %v2856 = vrot.slane %v2365, 4
      %v2857 = vor.u32 %v2855, %v2856
      %v2858 = vsel %vm1767, %v2853, %v2857
      %v2859 = vrot.slane %v2376, 3
      %v2860 = vrot.slane %v2372, 4
      %v2861 = vor.u32 %v2859, %v2860
      %v2862 = vsel %vm1767, %v2857, %v2861
      %v2863 = vrot.slane %v2383, 3
      %v2864 = vrot.slane %v2379, 4
      %v2865 = vor.u32 %v2863, %v2864
      %v2866 = vsel %vm1767, %v2861, %v2865
      %v2867 = vrot.slane %v2390, 3
      %v2868 = vrot.slane %v2386, 4
      %v2869 = vor.u32 %v2867, %v2868
      %v2870 = vsel %vm1767, %v2865, %v2869
      %v2871 = vrot.slane %v2397, 3
      %v2872 = vrot.slane %v2393, 4
      %v2873 = vor.u32 %v2871, %v2872
      %v2874 = vsel %vm1767, %v2869, %v2873
      %v2875 = vrot.slane %v2404, 3
      %v2876 = vrot.slane %v2400, 4
      %v2877 = vor.u32 %v2875, %v2876
      %v2878 = vsel %vm1767, %v2873, %v2877
      %v2879 = vrot.slane %v2411, 3
      %v2880 = vrot.slane %v2407, 4
      %v2881 = vor.u32 %v2879, %v2880
      %v2882 = vsel %vm1767, %v2877, %v2881
      %v2883 = vrot.slane %v2418, 3
      %v2884 = vrot.slane %v2414, 4
      %v2885 = vor.u32 %v2883, %v2884
      %v2886 = vsel %vm1767, %v2881, %v2885
      %v2887 = vrot.slane %v2425, 3
      %v2888 = vrot.slane %v2421, 4
      %v2889 = vor.u32 %v2887, %v2888
      %v2890 = vsel %vm1767, %v2885, %v2889
      %v2891 = vrot.slane %v2432, 3
      %v2892 = vrot.slane %v2428, 4
      %v2893 = vor.u32 %v2891, %v2892
      %v2894 = vsel %vm1767, %v2889, %v2893
      %v2895 = vrot.slane %v2439, 3
      %v2896 = vrot.slane %v2435, 4
      %v2897 = vor.u32 %v2895, %v2896
      %v2898 = vsel %vm1767, %v2893, %v2897
      %v2899 = vrot.slane %v2446, 3
      %v2900 = vrot.slane %v2442, 4
      %v2901 = vor.u32 %v2899, %v2900
      %v2902 = vsel %vm1767, %v2897, %v2901
      %v2903 = vrot.slane %v2453, 3
      %v2904 = vrot.slane %v2449, 4
      %v2905 = vor.u32 %v2903, %v2904
      %v2906 = vsel %vm1767, %v2901, %v2905
      %v2907 = vrot.slane %v2460, 3
      %v2908 = vrot.slane %v2456, 4
      %v2909 = vor.u32 %v2907, %v2908
      %v2910 = vsel %vm1767, %v2905, %v2909
      %v2912 = vshrl.u32 %v2816, 16
      %v2914 = vrot.slane %v2912, 3
      %v2915 = vshll.u32 %v2816, 16
      %v2917 = vrot.slane %v2915, 4
      %v2918 = vor.u32 %v2914, %v2917
      %v2919 = vsel %vm1767, %v2909, %v2918
      %v2921 = vshrl.u32 %v2817, 16
      %v2923 = vrot.slane %v2921, 3
      %v2924 = vshll.u32 %v2817, 16
      %v2926 = vrot.slane %v2924, 4
      %v2927 = vor.u32 %v2923, %v2926
      %v2928 = vsel %vm1767, %v2918, %v2927
      %v2930 = vsel %vm1465, %v2826, 0
      %v2933 = vsel %vm1465, %v2830, 0
      %v2936 = vsel %vm1465, %v2834, 0
      %v2939 = vsel %vm1465, %v2838, 0
      %v2942 = vsel %vm1465, %v2842, 0
      %v2945 = vsel %vm1465, %v2846, 0
      %v2948 = vsel %vm1465, %v2850, 0
      %v2951 = vsel %vm1465, %v2854, 0
      %v2954 = vsel %vm1465, %v2858, 0
      %v2957 = vsel %vm1465, %v2862, 0
      %v2960 = vsel %vm1465, %v2866, 0
      %v2963 = vsel %vm1465, %v2870, 0
      %v2966 = vsel %vm1465, %v2874, 0
      %v2969 = vsel %vm1465, %v2878, 0
      %v2972 = vsel %vm1465, %v2882, 0
      %v2975 = vsel %vm1465, %v2886, 0
      %v2978 = vsel %vm1465, %v2890, 0
      %v2981 = vsel %vm1465, %v2894, 0
      %v2984 = vsel %vm1465, %v2898, 0
      %v2987 = vsel %vm1465, %v2902, 0
      %v2990 = vsel %vm1465, %v2906, 0
      %v2993 = vsel %vm1465, %v2910, 0
      %v2996 = vsel %vm1465, %v2919, 0
      %v2999 = vsel %vm1465, %v2928, 0
      %v3002 = vsel %vm1538, %v2819, 0
      %3004 = vmatprep.subr.bf16.mxu0 0
      %3005 = vmatpush1.bf16.msra.mxu0 %v3002
      %3006 = vmatprep.subr.bf16.mxu0 0
      %3007 = vmatpush1.bf16.msra.mxu0 0
      %3008 = vmatprep.subr.bf16.mxu0 0
      %3009 = vmatpush1.bf16.msra.mxu0 0
      %3010 = vmatprep.subr.bf16.mxu0 0
      %3011 = vmatpush1.bf16.msra.mxu0 0
      %3012 = vmatprep.subr.bf16.mxu0 0
      %3013 = vmatpush1.bf16.msra.mxu0 0
      %3014 = vmatprep.subr.bf16.mxu0 0
      %3015 = vmatpush1.bf16.msra.mxu0 0
      %3016 = vmatprep.subr.bf16.mxu0 0
      %3017 = vmatpush1.bf16.msra.mxu0 0
      %3018 = vmatprep.subr.bf16.mxu0 0
      %3019 = vmatpush1.bf16.msra.mxu0 0
      %3020 = vmatprep.subr.bf16.mxu0 0
      %3021 = vmatpush1.bf16.msra.mxu0 0
      %3022 = vmatprep.subr.bf16.mxu0 0
      %3023 = vmatpush1.bf16.msra.mxu0 0
      %3024 = vmatprep.subr.bf16.mxu0 0
      %3025 = vmatpush1.bf16.msra.mxu0 0
      %3026 = vmatprep.subr.bf16.mxu0 0
      %3027 = vmatpush1.bf16.msra.mxu0 0
      %3028 = vmatprep.subr.bf16.mxu0 0
      %3029 = vmatpush1.bf16.msra.mxu0 0
      %3030 = vmatprep.subr.bf16.mxu0 0
      %3031 = vmatpush1.bf16.msra.mxu0 0
      %3032 = vmatprep.subr.bf16.mxu0 0
      %3033 = vmatpush1.bf16.msra.mxu0 0
      %3034 = vmatprep.subr.bf16.mxu0 0
      %3035 = vmatpush1.bf16.msra.mxu0 0
      %3036 = vmatprep.mubr.bf16.mxu0 0
      %3037 = vmatmul.mubr.bf16.gmra.mrb[0].mxu0 %v2930
      %v3038 = vpop.f32.mrb[0].mxu0
      %v3039 = vadd.f32 0.0, %v3038
      %v3040 = vpop.f32.mrb[0].mxu0
      %v3041 = vpop.f32.mrb[0].mxu0
      %v3042 = vadd.f32 0.0, %v3041
      %v3043 = vpop.f32.mrb[0].mxu0
      %3044 = vmatprep.mubr.bf16.mxu0 0
      %3045 = vmatmul.mubr.bf16.gmra.mrb[0].mxu0 %v2933
      %v3046 = vpop.f32.mrb[0].mxu0
      %v3047 = vadd.f32 0.0, %v3046
      %v3048 = vpop.f32.mrb[0].mxu0
      %v3049 = vpop.f32.mrb[0].mxu0
      %v3050 = vadd.f32 0.0, %v3049
      %v3051 = vpop.f32.mrb[0].mxu0
      %3052 = vmatprep.mubr.bf16.mxu0 0
      %3053 = vmatmul.mubr.bf16.gmra.mrb[0].mxu0 %v2936
      %v3054 = vpop.f32.mrb[0].mxu0
      %v3055 = vadd.f32 0.0, %v3054
      %v3056 = vpop.f32.mrb[0].mxu0
      %v3057 = vpop.f32.mrb[0].mxu0
      %v3058 = vadd.f32 0.0, %v3057
      %v3059 = vpop.f32.mrb[0].mxu0
      %3060 = vmatprep.mubr.bf16.mxu0 0
      %3061 = vmatmul.mubr.bf16.gmra.mrb[0].mxu0 %v2939
      %v3062 = vpop.f32.mrb[0].mxu0
      %v3063 = vadd.f32 0.0, %v3062
      %v3064 = vpop.f32.mrb[0].mxu0
      %v3065 = vpop.f32.mrb[0].mxu0
      %v3066 = vadd.f32 0.0, %v3065
      %v3067 = vpop.f32.mrb[0].mxu0
      %3068 = vmatprep.mubr.bf16.mxu0 0
      %3069 = vmatmul.mubr.bf16.gmra.mrb[0].mxu0 %v2942
      %v3070 = vpop.f32.mrb[0].mxu0
      %v3071 = vadd.f32 0.0, %v3070
      %v3072 = vpop.f32.mrb[0].mxu0
      %v3073 = vpop.f32.mrb[0].mxu0
      %v3074 = vadd.f32 0.0, %v3073
      %v3075 = vpop.f32.mrb[0].mxu0
      %3076 = vmatprep.mubr.bf16.mxu0 0
      %3077 = vmatmul.mubr.bf16.gmra.mrb[0].mxu0 %v2945
      %v3078 = vpop.f32.mrb[0].mxu0
      %v3079 = vadd.f32 0.0, %v3078
      %v3080 = vpop.f32.mrb[0].mxu0
      %v3081 = vpop.f32.mrb[0].mxu0
      %v3082 = vadd.f32 0.0, %v3081
      %v3083 = vpop.f32.mrb[0].mxu0
      %3084 = vmatprep.mubr.bf16.mxu0 0
      %3085 = vmatmul.mubr.bf16.gmra.mrb[0].mxu0 %v2948
      %v3086 = vpop.f32.mrb[0].mxu0
      %v3087 = vadd.f32 0.0, %v3086
      %v3088 = vpop.f32.mrb[0].mxu0
      %v3089 = vpop.f32.mrb[0].mxu0
      %v3090 = vadd.f32 0.0, %v3089
      %v3091 = vpop.f32.mrb[0].mxu0
      %3092 = vmatprep.mubr.bf16.mxu0 0
      %3093 = vmatmul.mubr.bf16.gmra.mrb[0].mxu0 %v2951
      %v3094 = vpop.f32.mrb[0].mxu0
      %v3095 = vadd.f32 0.0, %v3094
      %v3096 = vpop.f32.mrb[0].mxu0
      %v3097 = vpop.f32.mrb[0].mxu0
      %v3098 = vadd.f32 0.0, %v3097
      %v3099 = vpop.f32.mrb[0].mxu0
      %3100 = vmatprep.mubr.bf16.mxu0 0
      %3101 = vmatmul.mubr.bf16.gmra.mrb[0].mxu0 %v2954
      %v3102 = vpop.f32.mrb[0].mxu0
      %v3103 = vadd.f32 0.0, %v3102
      %v3104 = vpop.f32.mrb[0].mxu0
      %v3105 = vpop.f32.mrb[0].mxu0
      %v3106 = vadd.f32 0.0, %v3105
      %v3107 = vpop.f32.mrb[0].mxu0
      %3108 = vmatprep.mubr.bf16.mxu0 0
      %3109 = vmatmul.mubr.bf16.gmra.mrb[0].mxu0 %v2957
      %v3110 = vpop.f32.mrb[0].mxu0
      %v3111 = vadd.f32 0.0, %v3110
      %v3112 = vpop.f32.mrb[0].mxu0
      %v3113 = vpop.f32.mrb[0].mxu0
      %v3114 = vadd.f32 0.0, %v3113
      %v3115 = vpop.f32.mrb[0].mxu0
      %3116 = vmatprep.mubr.bf16.mxu0 0
      %3117 = vmatmul.mubr.bf16.gmra.mrb[0].mxu0 %v2960
      %v3118 = vpop.f32.mrb[0].mxu0
      %v3119 = vadd.f32 0.0, %v3118
      %v3120 = vpop.f32.mrb[0].mxu0
      %v3121 = vpop.f32.mrb[0].mxu0
      %v3122 = vadd.f32 0.0, %v3121
      %v3123 = vpop.f32.mrb[0].mxu0
      %3124 = vmatprep.mubr.bf16.mxu0 0
      %3125 = vmatmul.mubr.bf16.gmra.mrb[0].mxu0 %v2963
      %v3126 = vpop.f32.mrb[0].mxu0
      %v3127 = vadd.f32 0.0, %v3126
      %v3128 = vpop.f32.mrb[0].mxu0
      %v3129 = vpop.f32.mrb[0].mxu0
      %v3130 = vadd.f32 0.0, %v3129
      %v3131 = vpop.f32.mrb[0].mxu0
      %3132 = vmatprep.mubr.bf16.mxu0 0
      %3133 = vmatmul.mubr.bf16.gmra.mrb[0].mxu0 %v2966
      %v3134 = vpop.f32.mrb[0].mxu0
      %v3135 = vadd.f32 0.0, %v3134
      %v3136 = vpop.f32.mrb[0].mxu0
      %v3137 = vpop.f32.mrb[0].mxu0
      %v3138 = vadd.f32 0.0, %v3137
      %v3139 = vpop.f32.mrb[0].mxu0
      %3140 = vmatprep.mubr.bf16.mxu0 0
      %3141 = vmatmul.mubr.bf16.gmra.mrb[0].mxu0 %v2969
      %v3142 = vpop.f32.mrb[0].mxu0
      %v3143 = vadd.f32 0.0, %v3142
      %v3144 = vpop.f32.mrb[0].mxu0
      %v3145 = vpop.f32.mrb[0].mxu0
      %v3146 = vadd.f32 0.0, %v3145
      %v3147 = vpop.f32.mrb[0].mxu0
      %3148 = vmatprep.mubr.bf16.mxu0 0
      %3149 = vmatmul.mubr.bf16.gmra.mrb[0].mxu0 %v2972
      %v3150 = vpop.f32.mrb[0].mxu0
      %v3151 = vadd.f32 0.0, %v3150
      %v3152 = vpop.f32.mrb[0].mxu0
      %v3153 = vpop.f32.mrb[0].mxu0
      %v3154 = vadd.f32 0.0, %v3153
      %v3155 = vpop.f32.mrb[0].mxu0
      %3156 = vmatprep.mubr.bf16.mxu0 0
      %3157 = vmatmul.mubr.bf16.gmra.mrb[0].mxu0 %v2975
      %v3158 = vpop.f32.mrb[0].mxu0
      %v3159 = vadd.f32 0.0, %v3158
      %v3160 = vpop.f32.mrb[0].mxu0
      %v3161 = vpop.f32.mrb[0].mxu0
      %v3162 = vadd.f32 0.0, %v3161
      %v3163 = vpop.f32.mrb[0].mxu0
      %3164 = vmatprep.mubr.bf16.mxu0 0
      %3165 = vmatmul.mubr.bf16.gmra.mrb[0].mxu0 %v2978
      %v3166 = vpop.f32.mrb[0].mxu0
      %v3167 = vadd.f32 0.0, %v3166
      %v3168 = vpop.f32.mrb[0].mxu0
      %v3169 = vpop.f32.mrb[0].mxu0
      %v3170 = vadd.f32 0.0, %v3169
      %v3171 = vpop.f32.mrb[0].mxu0
      %3172 = vmatprep.mubr.bf16.mxu0 0
      %3173 = vmatmul.mubr.bf16.gmra.mrb[0].mxu0 %v2981
      %v3174 = vpop.f32.mrb[0].mxu0
      %v3175 = vadd.f32 0.0, %v3174
      %v3176 = vpop.f32.mrb[0].mxu0
      %v3177 = vpop.f32.mrb[0].mxu0
      %v3178 = vadd.f32 0.0, %v3177
      %v3179 = vpop.f32.mrb[0].mxu0
      %3180 = vmatprep.mubr.bf16.mxu0 0
      %3181 = vmatmul.mubr.bf16.gmra.mrb[0].mxu0 %v2984
      %v3182 = vpop.f32.mrb[0].mxu0
      %v3183 = vadd.f32 0.0, %v3182
      %v3184 = vpop.f32.mrb[0].mxu0
      %v3185 = vpop.f32.mrb[0].mxu0
      %v3186 = vadd.f32 0.0, %v3185
      %v3187 = vpop.f32.mrb[0].mxu0
      %3188 = vmatprep.mubr.bf16.mxu0 0
      %3189 = vmatmul.mubr.bf16.gmra.mrb[0].mxu0 %v2987
      %v3190 = vpop.f32.mrb[0].mxu0
      %v3191 = vadd.f32 0.0, %v3190
      %v3192 = vpop.f32.mrb[0].mxu0
      %v3193 = vpop.f32.mrb[0].mxu0
      %v3194 = vadd.f32 0.0, %v3193
      %v3195 = vpop.f32.mrb[0].mxu0
      %3196 = vmatprep.mubr.bf16.mxu0 0
      %3197 = vmatmul.mubr.bf16.gmra.mrb[0].mxu0 %v2990
      %v3198 = vpop.f32.mrb[0].mxu0
      %v3199 = vadd.f32 0.0, %v3198
      %v3200 = vpop.f32.mrb[0].mxu0
      %v3201 = vpop.f32.mrb[0].mxu0
      %v3202 = vadd.f32 0.0, %v3201
      %v3203 = vpop.f32.mrb[0].mxu0
      %3204 = vmatprep.mubr.bf16.mxu0 0
      %3205 = vmatmul.mubr.bf16.gmra.mrb[0].mxu0 %v2993
      %v3206 = vpop.f32.mrb[0].mxu0
      %v3207 = vadd.f32 0.0, %v3206
      %v3208 = vpop.f32.mrb[0].mxu0
      %v3209 = vpop.f32.mrb[0].mxu0
      %v3210 = vadd.f32 0.0, %v3209
      %v3211 = vpop.f32.mrb[0].mxu0
      %3212 = vmatprep.mubr.bf16.mxu0 0
      %3213 = vmatmul.mubr.bf16.gmra.mrb[0].mxu0 %v2996
      %v3214 = vpop.f32.mrb[0].mxu0
      %v3215 = vadd.f32 0.0, %v3214
      %v3216 = vpop.f32.mrb[0].mxu0
      %v3217 = vpop.f32.mrb[0].mxu0
      %v3218 = vadd.f32 0.0, %v3217
      %v3219 = vpop.f32.mrb[0].mxu0
      %3220 = vmatprep.mubr.bf16.mxu0 0
      %3221 = vmatmul.mubr.bf16.gmra.mrb[0].mxu0 %v2999
      %v3222 = vpop.f32.mrb[0].mxu0
      %v3223 = vadd.f32 0.0, %v3222
      %v3224 = vpop.f32.mrb[0].mxu0
      %v3225 = vpop.f32.mrb[0].mxu0
      %v3226 = vadd.f32 0.0, %v3225
      %v3227 = vpop.f32.mrb[0].mxu0
      %3228 = vdwg.mxu0
      %v3229 = vadd.f32 %v2768, %v3039
      %v3230 = vadd.f32 %v2769, %v3042
      %v3231 = vadd.f32 %v2770, %v3047
      %v3232 = vadd.f32 %v2771, %v3050
      %v3233 = vadd.f32 %v2772, %v3055
      %v3234 = vadd.f32 %v2773, %v3058
      %v3235 = vadd.f32 %v2774, %v3063
      %v3236 = vadd.f32 %v2775, %v3066
      %v3237 = vadd.f32 %v2776, %v3071
      %v3238 = vadd.f32 %v2777, %v3074
      %v3239 = vadd.f32 %v2778, %v3079
      %v3240 = vadd.f32 %v2779, %v3082
      %v3241 = vadd.f32 %v2780, %v3087
      %v3242 = vadd.f32 %v2781, %v3090
      %v3243 = vadd.f32 %v2782, %v3095
      %v3244 = vadd.f32 %v2783, %v3098
      %v3245 = vadd.f32 %v2784, %v3103
      %v3246 = vadd.f32 %v2785, %v3106
      %v3247 = vadd.f32 %v2786, %v3111
      %v3248 = vadd.f32 %v2787, %v3114
      %v3249 = vadd.f32 %v2788, %v3119
      %v3250 = vadd.f32 %v2789, %v3122
      %v3251 = vadd.f32 %v2790, %v3127
      %v3252 = vadd.f32 %v2791, %v3130
      %v3253 = vadd.f32 %v2792, %v3135
      %v3254 = vadd.f32 %v2793, %v3138
      %v3255 = vadd.f32 %v2794, %v3143
      %v3256 = vadd.f32 %v2795, %v3146
      %v3257 = vadd.f32 %v2796, %v3151
      %v3258 = vadd.f32 %v2797, %v3154
      %v3259 = vadd.f32 %v2798, %v3159
      %v3260 = vadd.f32 %v2799, %v3162
      %v3261 = vadd.f32 %v2800, %v3167
      %v3262 = vadd.f32 %v2801, %v3170
      %v3263 = vadd.f32 %v2802, %v3175
      %v3264 = vadd.f32 %v2803, %v3178
      %v3265 = vadd.f32 %v2804, %v3183
      %v3266 = vadd.f32 %v2805, %v3186
      %v3267 = vadd.f32 %v2806, %v3191
      %v3268 = vadd.f32 %v2807, %v3194
      %v3269 = vadd.f32 %v2808, %v3199
      %v3270 = vadd.f32 %v2809, %v3202
      %v3271 = vadd.f32 %v2810, %v3207
      %v3272 = vadd.f32 %v2811, %v3210
      %v3273 = vadd.f32 %v2812, %v3215
      %v3274 = vadd.f32 %v2813, %v3218
      %v3275 = vadd.f32 %v2814, %v3223
      %v3276 = vadd.f32 %v2815, %v3226
      %v3277 = vpack.c.bf16 %v1407, %v1406
      %v3278 = vpack.c.bf16 %v1409, %v1408
      %s3279 = scalar_lea.vmem %s6, 8
      %v3280 = vld [vmem:[%s3279] sm:$0x3]
      %v3281 = vsel %vm1465, %v1415, 0
      %v3283 = vsel %vm1465, %v1416, 0
      %v3285 = vsel %vm1465, %v1417, 0
      %v3287 = vsel %vm1465, %v1418, 0
      %v3289 = vsel %vm1465, %v1419, 0
      %v3291 = vsel %vm1465, %v1420, 0
      %v3293 = vsel %vm1465, %v1421, 0
      %v3295 = vsel %vm1465, %v1422, 0
      %v3297 = vsel %vm1465, %v1423, 0
      %v3299 = vsel %vm1465, %v1424, 0
      %v3301 = vsel %vm1465, %v1425, 0
      %v3303 = vsel %vm1465, %v1426, 0
      %v3305 = vsel %vm1465, %v1427, 0
      %v3307 = vsel %vm1465, %v1428, 0
      %v3309 = vsel %vm1465, %v1429, 0
      %v3311 = vsel %vm1465, %v1430, 0
      %v3313 = vsel %vm1465, %v1431, 0
      %v3315 = vsel %vm1465, %v1432, 0
      %v3317 = vsel %vm1465, %v1433, 0
      %v3319 = vsel %vm1465, %v1434, 0
      %v3321 = vsel %vm1465, %v1435, 0
      %v3323 = vsel %vm1465, %v1436, 0
      %v3326 = vsel %vm1465, %v3277, 0
      %v3329 = vsel %vm1465, %v3278, 0
      %v3332 = vsel %vm1538, %v3280, 0
      %3334 = vmatprep.subr.bf16.mxu0 0
      %3335 = vmatpush1.bf16.msra.mxu0 %v3332
      %3336 = vmatprep.subr.bf16.mxu0 0
      %3337 = vmatpush1.bf16.msra.mxu0 0
      %3338 = vmatprep.subr.bf16.mxu0 0
      %3339 = vmatpush1.bf16.msra.mxu0 0
      %3340 = vmatprep.subr.bf16.mxu0 0
      %3341 = vmatpush1.bf16.msra.mxu0 0
      %3342 = vmatprep.subr.bf16.mxu0 0
      %3343 = vmatpush1.bf16.msra.mxu0 0
      %3344 = vmatprep.subr.bf16.mxu0 0
      %3345 = vmatpush1.bf16.msra.mxu0 0
      %3346 = vmatprep.subr.bf16.mxu0 0
      %3347 = vmatpush1.bf16.msra.mxu0 0
      %3348 = vmatprep.subr.bf16.mxu0 0
      %3349 = vmatpush1.bf16.msra.mxu0 0
      %3350 = vmatprep.subr.bf16.mxu0 0
      %3351 = vmatpush1.bf16.msra.mxu0 0
      %3352 = vmatprep.subr.bf16.mxu0 0
      %3353 = vmatpush1.bf16.msra.mxu0 0
      %3354 = vmatprep.subr.bf16.mxu0 0
      %3355 = vmatpush1.bf16.msra.mxu0 0
      %3356 = vmatprep.subr.bf16.mxu0 0
      %3357 = vmatpush1.bf16.msra.mxu0 0
      %3358 = vmatprep.subr.bf16.mxu0 0
      %3359 = vmatpush1.bf16.msra.mxu0 0
      %3360 = vmatprep.subr.bf16.mxu0 0
      %3361 = vmatpush1.bf16.msra.mxu0 0
      %3362 = vmatprep.subr.bf16.mxu0 0
      %3363 = vmatpush1.bf16.msra.mxu0 0
      %3364 = vmatprep.subr.bf16.mxu0 0
      %3365 = vmatpush1.bf16.msra.mxu0 0
      %3366 = vmatprep.mubr.bf16.mxu0 0
      %3367 = vmatmul.mubr.bf16.gmra.mrb[0].mxu0 %v3281
      %v3368 = vpop.f32.mrb[0].mxu0
      %v3369 = vadd.f32 0.0, %v3368
      %v3370 = vpop.f32.mrb[0].mxu0
      %v3371 = vpop.f32.mrb[0].mxu0
      %v3372 = vadd.f32 0.0, %v3371
      %v3373 = vpop.f32.mrb[0].mxu0
      %3374 = vmatprep.mubr.bf16.mxu0 0
      %3375 = vmatmul.mubr.bf16.gmra.mrb[0].mxu0 %v3283
      %v3376 = vpop.f32.mrb[0].mxu0
      %v3377 = vadd.f32 0.0, %v3376
      %v3378 = vpop.f32.mrb[0].mxu0
      %v3379 = vpop.f32.mrb[0].mxu0
      %v3380 = vadd.f32 0.0, %v3379
      %v3381 = vpop.f32.mrb[0].mxu0
      %3382 = vmatprep.mubr.bf16.mxu0 0
      %3383 = vmatmul.mubr.bf16.gmra.mrb[0].mxu0 %v3285
      %v3384 = vpop.f32.mrb[0].mxu0
      %v3385 = vadd.f32 0.0, %v3384
      %v3386 = vpop.f32.mrb[0].mxu0
      %v3387 = vpop.f32.mrb[0].mxu0
      %v3388 = vadd.f32 0.0, %v3387
      %v3389 = vpop.f32.mrb[0].mxu0
      %3390 = vmatprep.mubr.bf16.mxu0 0
      %3391 = vmatmul.mubr.bf16.gmra.mrb[0].mxu0 %v3287
      %v3392 = vpop.f32.mrb[0].mxu0
      %v3393 = vadd.f32 0.0, %v3392
      %v3394 = vpop.f32.mrb[0].mxu0
      %v3395 = vpop.f32.mrb[0].mxu0
      %v3396 = vadd.f32 0.0, %v3395
      %v3397 = vpop.f32.mrb[0].mxu0
      %3398 = vmatprep.mubr.bf16.mxu0 0
      %3399 = vmatmul.mubr.bf16.gmra.mrb[0].mxu0 %v3289
      %v3400 = vpop.f32.mrb[0].mxu0
      %v3401 = vadd.f32 0.0, %v3400
      %v3402 = vpop.f32.mrb[0].mxu0
      %v3403 = vpop.f32.mrb[0].mxu0
      %v3404 = vadd.f32 0.0, %v3403
      %v3405 = vpop.f32.mrb[0].mxu0
      %3406 = vmatprep.mubr.bf16.mxu0 0
      %3407 = vmatmul.mubr.bf16.gmra.mrb[0].mxu0 %v3291
      %v3408 = vpop.f32.mrb[0].mxu0
      %v3409 = vadd.f32 0.0, %v3408
      %v3410 = vpop.f32.mrb[0].mxu0
      %v3411 = vpop.f32.mrb[0].mxu0
      %v3412 = vadd.f32 0.0, %v3411
      %v3413 = vpop.f32.mrb[0].mxu0
      %3414 = vmatprep.mubr.bf16.mxu0 0
      %3415 = vmatmul.mubr.bf16.gmra.mrb[0].mxu0 %v3293
      %v3416 = vpop.f32.mrb[0].mxu0
      %v3417 = vadd.f32 0.0, %v3416
      %v3418 = vpop.f32.mrb[0].mxu0
      %v3419 = vpop.f32.mrb[0].mxu0
      %v3420 = vadd.f32 0.0, %v3419
      %v3421 = vpop.f32.mrb[0].mxu0
      %3422 = vmatprep.mubr.bf16.mxu0 0
      %3423 = vmatmul.mubr.bf16.gmra.mrb[0].mxu0 %v3295
      %v3424 = vpop.f32.mrb[0].mxu0
      %v3425 = vadd.f32 0.0, %v3424
      %v3426 = vpop.f32.mrb[0].mxu0
      %v3427 = vpop.f32.mrb[0].mxu0
      %v3428 = vadd.f32 0.0, %v3427
      %v3429 = vpop.f32.mrb[0].mxu0
      %3430 = vmatprep.mubr.bf16.mxu0 0
      %3431 = vmatmul.mubr.bf16.gmra.mrb[0].mxu0 %v3297
      %v3432 = vpop.f32.mrb[0].mxu0
      %v3433 = vadd.f32 0.0, %v3432
      %v3434 = vpop.f32.mrb[0].mxu0
      %v3435 = vpop.f32.mrb[0].mxu0
      %v3436 = vadd.f32 0.0, %v3435
      %v3437 = vpop.f32.mrb[0].mxu0
      %3438 = vmatprep.mubr.bf16.mxu0 0
      %3439 = vmatmul.mubr.bf16.gmra.mrb[0].mxu0 %v3299
      %v3440 = vpop.f32.mrb[0].mxu0
      %v3441 = vadd.f32 0.0, %v3440
      %v3442 = vpop.f32.mrb[0].mxu0
      %v3443 = vpop.f32.mrb[0].mxu0
      %v3444 = vadd.f32 0.0, %v3443
      %v3445 = vpop.f32.mrb[0].mxu0
      %3446 = vmatprep.mubr.bf16.mxu0 0
      %3447 = vmatmul.mubr.bf16.gmra.mrb[0].mxu0 %v3301
      %v3448 = vpop.f32.mrb[0].mxu0
      %v3449 = vadd.f32 0.0, %v3448
      %v3450 = vpop.f32.mrb[0].mxu0
      %v3451 = vpop.f32.mrb[0].mxu0
      %v3452 = vadd.f32 0.0, %v3451
      %v3453 = vpop.f32.mrb[0].mxu0
      %3454 = vmatprep.mubr.bf16.mxu0 0
      %3455 = vmatmul.mubr.bf16.gmra.mrb[0].mxu0 %v3303
      %v3456 = vpop.f32.mrb[0].mxu0
      %v3457 = vadd.f32 0.0, %v3456
      %v3458 = vpop.f32.mrb[0].mxu0
      %v3459 = vpop.f32.mrb[0].mxu0
      %v3460 = vadd.f32 0.0, %v3459
      %v3461 = vpop.f32.mrb[0].mxu0
      %3462 = vmatprep.mubr.bf16.mxu0 0
      %3463 = vmatmul.mubr.bf16.gmra.mrb[0].mxu0 %v3305
      %v3464 = vpop.f32.mrb[0].mxu0
      %v3465 = vadd.f32 0.0, %v3464
      %v3466 = vpop.f32.mrb[0].mxu0
      %v3467 = vpop.f32.mrb[0].mxu0
      %v3468 = vadd.f32 0.0, %v3467
      %v3469 = vpop.f32.mrb[0].mxu0
      %3470 = vmatprep.mubr.bf16.mxu0 0
      %3471 = vmatmul.mubr.bf16.gmra.mrb[0].mxu0 %v3307
      %v3472 = vpop.f32.mrb[0].mxu0
      %v3473 = vadd.f32 0.0, %v3472
      %v3474 = vpop.f32.mrb[0].mxu0
      %v3475 = vpop.f32.mrb[0].mxu0
      %v3476 = vadd.f32 0.0, %v3475
      %v3477 = vpop.f32.mrb[0].mxu0
      %3478 = vmatprep.mubr.bf16.mxu0 0
      %3479 = vmatmul.mubr.bf16.gmra.mrb[0].mxu0 %v3309
      %v3480 = vpop.f32.mrb[0].mxu0
      %v3481 = vadd.f32 0.0, %v3480
      %v3482 = vpop.f32.mrb[0].mxu0
      %v3483 = vpop.f32.mrb[0].mxu0
      %v3484 = vadd.f32 0.0, %v3483
      %v3485 = vpop.f32.mrb[0].mxu0
      %3486 = vmatprep.mubr.bf16.mxu0 0
      %3487 = vmatmul.mubr.bf16.gmra.mrb[0].mxu0 %v3311
      %v3488 = vpop.f32.mrb[0].mxu0
      %v3489 = vadd.f32 0.0, %v3488
      %v3490 = vpop.f32.mrb[0].mxu0
      %v3491 = vpop.f32.mrb[0].mxu0
      %v3492 = vadd.f32 0.0, %v3491
      %v3493 = vpop.f32.mrb[0].mxu0
      %3494 = vmatprep.mubr.bf16.mxu0 0
      %3495 = vmatmul.mubr.bf16.gmra.mrb[0].mxu0 %v3313
      %v3496 = vpop.f32.mrb[0].mxu0
      %v3497 = vadd.f32 0.0, %v3496
      %v3498 = vpop.f32.mrb[0].mxu0
      %v3499 = vpop.f32.mrb[0].mxu0
      %v3500 = vadd.f32 0.0, %v3499
      %v3501 = vpop.f32.mrb[0].mxu0
      %3502 = vmatprep.mubr.bf16.mxu0 0
      %3503 = vmatmul.mubr.bf16.gmra.mrb[0].mxu0 %v3315
      %v3504 = vpop.f32.mrb[0].mxu0
      %v3505 = vadd.f32 0.0, %v3504
      %v3506 = vpop.f32.mrb[0].mxu0
      %v3507 = vpop.f32.mrb[0].mxu0
      %v3508 = vadd.f32 0.0, %v3507
      %v3509 = vpop.f32.mrb[0].mxu0
      %3510 = vmatprep.mubr.bf16.mxu0 0
      %3511 = vmatmul.mubr.bf16.gmra.mrb[0].mxu0 %v3317
      %v3512 = vpop.f32.mrb[0].mxu0
      %v3513 = vadd.f32 0.0, %v3512
      %v3514 = vpop.f32.mrb[0].mxu0
      %v3515 = vpop.f32.mrb[0].mxu0
      %v3516 = vadd.f32 0.0, %v3515
      %v3517 = vpop.f32.mrb[0].mxu0
      %3518 = vmatprep.mubr.bf16.mxu0 0
      %3519 = vmatmul.mubr.bf16.gmra.mrb[0].mxu0 %v3319
      %v3520 = vpop.f32.mrb[0].mxu0
      %v3521 = vadd.f32 0.0, %v3520
      %v3522 = vpop.f32.mrb[0].mxu0
      %v3523 = vpop.f32.mrb[0].mxu0
      %v3524 = vadd.f32 0.0, %v3523
      %v3525 = vpop.f32.mrb[0].mxu0
      %3526 = vmatprep.mubr.bf16.mxu0 0
      %3527 = vmatmul.mubr.bf16.gmra.mrb[0].mxu0 %v3321
      %v3528 = vpop.f32.mrb[0].mxu0
      %v3529 = vadd.f32 0.0, %v3528
      %v3530 = vpop.f32.mrb[0].mxu0
      %v3531 = vpop.f32.mrb[0].mxu0
      %v3532 = vadd.f32 0.0, %v3531
      %v3533 = vpop.f32.mrb[0].mxu0
      %3534 = vmatprep.mubr.bf16.mxu0 0
      %3535 = vmatmul.mubr.bf16.gmra.mrb[0].mxu0 %v3323
      %v3536 = vpop.f32.mrb[0].mxu0
      %v3537 = vadd.f32 0.0, %v3536
      %v3538 = vpop.f32.mrb[0].mxu0
      %v3539 = vpop.f32.mrb[0].mxu0
      %v3540 = vadd.f32 0.0, %v3539
      %v3541 = vpop.f32.mrb[0].mxu0
      %3542 = vmatprep.mubr.bf16.mxu0 0
      %3543 = vmatmul.mubr.bf16.gmra.mrb[0].mxu0 %v3326
      %v3544 = vpop.f32.mrb[0].mxu0
      %v3545 = vadd.f32 0.0, %v3544
      %v3546 = vpop.f32.mrb[0].mxu0
      %v3547 = vpop.f32.mrb[0].mxu0
      %v3548 = vadd.f32 0.0, %v3547
      %v3549 = vpop.f32.mrb[0].mxu0
      %3550 = vmatprep.mubr.bf16.mxu0 0
      %3551 = vmatmul.mubr.bf16.gmra.mrb[0].mxu0 %v3329
      %v3552 = vpop.f32.mrb[0].mxu0
      %v3553 = vadd.f32 0.0, %v3552
      %v3554 = vpop.f32.mrb[0].mxu0
      %v3555 = vpop.f32.mrb[0].mxu0
      %v3556 = vadd.f32 0.0, %v3555
      %v3557 = vpop.f32.mrb[0].mxu0
      %3558 = vdwg.mxu0
      %v3559 = vadd.f32 %v3229, %v3369
      %v3560 = vadd.f32 %v3230, %v3372
      %v3561 = vadd.f32 %v3231, %v3377
      %v3562 = vadd.f32 %v3232, %v3380
      %v3563 = vadd.f32 %v3233, %v3385
      %v3564 = vadd.f32 %v3234, %v3388
      %v3565 = vadd.f32 %v3235, %v3393
      %v3566 = vadd.f32 %v3236, %v3396
      %v3567 = vadd.f32 %v3237, %v3401
      %v3568 = vadd.f32 %v3238, %v3404
      %v3569 = vadd.f32 %v3239, %v3409
      %v3570 = vadd.f32 %v3240, %v3412
      %v3571 = vadd.f32 %v3241, %v3417
      %v3572 = vadd.f32 %v3242, %v3420
      %v3573 = vadd.f32 %v3243, %v3425
      %v3574 = vadd.f32 %v3244, %v3428
      %v3575 = vadd.f32 %v3245, %v3433
      %v3576 = vadd.f32 %v3246, %v3436
      %v3577 = vadd.f32 %v3247, %v3441
      %v3578 = vadd.f32 %v3248, %v3444
      %v3579 = vadd.f32 %v3249, %v3449
      %v3580 = vadd.f32 %v3250, %v3452
      %v3581 = vadd.f32 %v3251, %v3457
      %v3582 = vadd.f32 %v3252, %v3460
      %v3583 = vadd.f32 %v3253, %v3465
      %v3584 = vadd.f32 %v3254, %v3468
      %v3585 = vadd.f32 %v3255, %v3473
      %v3586 = vadd.f32 %v3256, %v3476
      %v3587 = vadd.f32 %v3257, %v3481
      %v3588 = vadd.f32 %v3258, %v3484
      %v3589 = vadd.f32 %v3259, %v3489
      %v3590 = vadd.f32 %v3260, %v3492
      %v3591 = vadd.f32 %v3261, %v3497
      %v3592 = vadd.f32 %v3262, %v3500
      %v3593 = vadd.f32 %v3263, %v3505
      %v3594 = vadd.f32 %v3264, %v3508
      %v3595 = vadd.f32 %v3265, %v3513
      %v3596 = vadd.f32 %v3266, %v3516
      %v3597 = vadd.f32 %v3267, %v3521
      %v3598 = vadd.f32 %v3268, %v3524
      %v3599 = vadd.f32 %v3269, %v3529
      %v3600 = vadd.f32 %v3270, %v3532
      %v3601 = vadd.f32 %v3271, %v3537
      %v3602 = vadd.f32 %v3272, %v3540
      %v3603 = vadd.f32 %v3273, %v3545
      %v3604 = vadd.f32 %v3274, %v3548
      %v3605 = vadd.f32 %v3275, %v3553
      %v3606 = vadd.f32 %v3276, %v3556
      %v3607 = vpack.c.bf16 %v1410, %v1410
      %s3608 = scalar_lea.vmem %s6, 10
      %v3609 = vld [vmem:[%s3608] sm:$0x3]
      %v3610 = vrot.slane %v1789, 1
      %v3611 = vor.u32 %v1786, %v3610
      %v3612 = vrot.slane %v1798, 1
      %v3613 = vsel %vm2295, %v3611, %v3612
      %v3614 = vor.u32 %v1795, %v3612
      %v3615 = vrot.slane %v1807, 1
      %v3616 = vsel %vm2295, %v3614, %v3615
      %v3617 = vor.u32 %v1804, %v3615
      %v3618 = vrot.slane %v1816, 1
      %v3619 = vsel %vm2295, %v3617, %v3618
      %v3620 = vor.u32 %v1813, %v3618
      %v3621 = vrot.slane %v1825, 1
      %v3622 = vsel %vm2295, %v3620, %v3621
      %v3623 = vor.u32 %v1822, %v3621
      %v3624 = vrot.slane %v1834, 1
      %v3625 = vsel %vm2295, %v3623, %v3624
      %v3626 = vor.u32 %v1831, %v3624
      %v3627 = vrot.slane %v1843, 1
      %v3628 = vsel %vm2295, %v3626, %v3627
      %v3629 = vor.u32 %v1840, %v3627
      %v3630 = vrot.slane %v1852, 1
      %v3631 = vsel %vm2295, %v3629, %v3630
      %v3632 = vor.u32 %v1849, %v3630
      %v3633 = vrot.slane %v1861, 1
      %v3634 = vsel %vm2295, %v3632, %v3633
      %v3635 = vor.u32 %v1858, %v3633
      %v3636 = vrot.slane %v1870, 1
      %v3637 = vsel %vm2295, %v3635, %v3636
      %v3638 = vor.u32 %v1867, %v3636
      %v3639 = vrot.slane %v1879, 1
      %v3640 = vsel %vm2295, %v3638, %v3639
      %v3641 = vor.u32 %v1876, %v3639
      %v3642 = vrot.slane %v1888, 1
      %v3643 = vsel %vm2295, %v3641, %v3642
      %v3644 = vor.u32 %v1885, %v3642
      %v3645 = vrot.slane %v1897, 1
      %v3646 = vsel %vm2295, %v3644, %v3645
      %v3647 = vor.u32 %v1894, %v3645
      %v3648 = vrot.slane %v1906, 1
      %v3649 = vsel %vm2295, %v3647, %v3648
      %v3650 = vor.u32 %v1903, %v3648
      %v3651 = vrot.slane %v1915, 1
      %v3652 = vsel %vm2295, %v3650, %v3651
      %v3653 = vor.u32 %v1912, %v3651
      %v3654 = vrot.slane %v1924, 1
      %v3655 = vsel %vm2295, %v3653, %v3654
      %v3656 = vor.u32 %v1921, %v3654
      %v3657 = vrot.slane %v1933, 1
      %v3658 = vsel %vm2295, %v3656, %v3657
      %v3659 = vor.u32 %v1930, %v3657
      %v3660 = vrot.slane %v1942, 1
      %v3661 = vsel %vm2295, %v3659, %v3660
      %v3662 = vor.u32 %v1939, %v3660
      %v3663 = vrot.slane %v1951, 1
      %v3664 = vsel %vm2295, %v3662, %v3663
      %v3665 = vor.u32 %v1948, %v3663
      %v3666 = vrot.slane %v1960, 1
      %v3667 = vsel %vm2295, %v3665, %v3666
      %v3668 = vor.u32 %v1957, %v3666
      %v3669 = vrot.slane %v1969, 1
      %v3670 = vsel %vm2295, %v3668, %v3669
      %v3671 = vor.u32 %v1966, %v3669
      %v3672 = vrot.slane %v1978, 1
      %v3673 = vsel %vm2295, %v3671, %v3672
      %v3674 = vor.u32 %v1975, %v3672
      %v3675 = vshll.u32 %v3277, 16
      %v3677 = vrot.slane %v3675, 1
      %v3678 = vsel %vm2295, %v3674, %v3677
      %v3679 = vshrl.u32 %v3277, 16
      %v3681 = vor.u32 %v3679, %v3677
      %v3682 = vshll.u32 %v3278, 16
      %v3684 = vrot.slane %v3682, 1
      %v3685 = vsel %vm2295, %v3681, %v3684
      %v3686 = vshrl.u32 %v3278, 16
      %v3688 = vor.u32 %v3686, %v3684
      %v3690 = vshll.u32 %v3607, 16
      %v3692 = vrot.slane %v3690, 1
      %v3693 = vsel %vm2295, %v3688, %v3692
      %v3695 = vsel %vm1465, %v3613, 0
      %v3698 = vsel %vm1465, %v3616, 0
      %v3701 = vsel %vm1465, %v3619, 0
      %v3704 = vsel %vm1465, %v3622, 0
      %v3707 = vsel %vm1465, %v3625, 0
      %v3710 = vsel %vm1465, %v3628, 0
      %v3713 = vsel %vm1465, %v3631, 0
      %v3716 = vsel %vm1465, %v3634, 0
      %v3719 = vsel %vm1465, %v3637, 0
      %v3722 = vsel %vm1465, %v3640, 0
      %v3725 = vsel %vm1465, %v3643, 0
      %v3728 = vsel %vm1465, %v3646, 0
      %v3731 = vsel %vm1465, %v3649, 0
      %v3734 = vsel %vm1465, %v3652, 0
      %v3737 = vsel %vm1465, %v3655, 0
      %v3740 = vsel %vm1465, %v3658, 0
      %v3743 = vsel %vm1465, %v3661, 0
      %v3746 = vsel %vm1465, %v3664, 0
      %v3749 = vsel %vm1465, %v3667, 0
      %v3752 = vsel %vm1465, %v3670, 0
      %v3755 = vsel %vm1465, %v3673, 0
      %v3758 = vsel %vm1465, %v3678, 0
      %v3761 = vsel %vm1465, %v3685, 0
      %v3764 = vsel %vm1465, %v3693, 0
      %v3767 = vsel %vm1538, %v3609, 0
      %3769 = vmatprep.subr.bf16.mxu0 0
      %3770 = vmatpush1.bf16.msra.mxu0 %v3767
      %3771 = vmatprep.subr.bf16.mxu0 0
      %3772 = vmatpush1.bf16.msra.mxu0 0
      %3773 = vmatprep.subr.bf16.mxu0 0
      %3774 = vmatpush1.bf16.msra.mxu0 0
      %3775 = vmatprep.subr.bf16.mxu0 0
      %3776 = vmatpush1.bf16.msra.mxu0 0
      %3777 = vmatprep.subr.bf16.mxu0 0
      %3778 = vmatpush1.bf16.msra.mxu0 0
      %3779 = vmatprep.subr.bf16.mxu0 0
      %3780 = vmatpush1.bf16.msra.mxu0 0
      %3781 = vmatprep.subr.bf16.mxu0 0
      %3782 = vmatpush1.bf16.msra.mxu0 0
      %3783 = vmatprep.subr.bf16.mxu0 0
      %3784 = vmatpush1.bf16.msra.mxu0 0
      %3785 = vmatprep.subr.bf16.mxu0 0
      %3786 = vmatpush1.bf16.msra.mxu0 0
      %3787 = vmatprep.subr.bf16.mxu0 0
      %3788 = vmatpush1.bf16.msra.mxu0 0
      %3789 = vmatprep.subr.bf16.mxu0 0
      %3790 = vmatpush1.bf16.msra.mxu0 0
      %3791 = vmatprep.subr.bf16.mxu0 0
      %3792 = vmatpush1.bf16.msra.mxu0 0
      %3793 = vmatprep.subr.bf16.mxu0 0
      %3794 = vmatpush1.bf16.msra.mxu0 0
      %3795 = vmatprep.subr.bf16.mxu0 0
      %3796 = vmatpush1.bf16.msra.mxu0 0
      %3797 = vmatprep.subr.bf16.mxu0 0
      %3798 = vmatpush1.bf16.msra.mxu0 0
      %3799 = vmatprep.subr.bf16.mxu0 0
      %3800 = vmatpush1.bf16.msra.mxu0 0
      %3801 = vmatprep.mubr.bf16.mxu0 0
      %3802 = vmatmul.mubr.bf16.gmra.mrb[0].mxu0 %v3695
      %v3803 = vpop.f32.mrb[0].mxu0
      %v3804 = vadd.f32 0.0, %v3803
      %v3805 = vpop.f32.mrb[0].mxu0
      %v3806 = vpop.f32.mrb[0].mxu0
      %v3807 = vadd.f32 0.0, %v3806
      %v3808 = vpop.f32.mrb[0].mxu0
      %3809 = vmatprep.mubr.bf16.mxu0 0
      %3810 = vmatmul.mubr.bf16.gmra.mrb[0].mxu0 %v3698
      %v3811 = vpop.f32.mrb[0].mxu0
      %v3812 = vadd.f32 0.0, %v3811
      %v3813 = vpop.f32.mrb[0].mxu0
      %v3814 = vpop.f32.mrb[0].mxu0
      %v3815 = vadd.f32 0.0, %v3814
      %v3816 = vpop.f32.mrb[0].mxu0
      %3817 = vmatprep.mubr.bf16.mxu0 0
      %3818 = vmatmul.mubr.bf16.gmra.mrb[0].mxu0 %v3701
      %v3819 = vpop.f32.mrb[0].mxu0
      %v3820 = vadd.f32 0.0, %v3819
      %v3821 = vpop.f32.mrb[0].mxu0
      %v3822 = vpop.f32.mrb[0].mxu0
      %v3823 = vadd.f32 0.0, %v3822
      %v3824 = vpop.f32.mrb[0].mxu0
      %3825 = vmatprep.mubr.bf16.mxu0 0
      %3826 = vmatmul.mubr.bf16.gmra.mrb[0].mxu0 %v3704
      %v3827 = vpop.f32.mrb[0].mxu0
      %v3828 = vadd.f32 0.0, %v3827
      %v3829 = vpop.f32.mrb[0].mxu0
      %v3830 = vpop.f32.mrb[0].mxu0
      %v3831 = vadd.f32 0.0, %v3830
      %v3832 = vpop.f32.mrb[0].mxu0
      %3833 = vmatprep.mubr.bf16.mxu0 0
      %3834 = vmatmul.mubr.bf16.gmra.mrb[0].mxu0 %v3707
      %v3835 = vpop.f32.mrb[0].mxu0
      %v3836 = vadd.f32 0.0, %v3835
      %v3837 = vpop.f32.mrb[0].mxu0
      %v3838 = vpop.f32.mrb[0].mxu0
      %v3839 = vadd.f32 0.0, %v3838
      %v3840 = vpop.f32.mrb[0].mxu0
      %3841 = vmatprep.mubr.bf16.mxu0 0
      %3842 = vmatmul.mubr.bf16.gmra.mrb[0].mxu0 %v3710
      %v3843 = vpop.f32.mrb[0].mxu0
      %v3844 = vadd.f32 0.0, %v3843
      %v3845 = vpop.f32.mrb[0].mxu0
      %v3846 = vpop.f32.mrb[0].mxu0
      %v3847 = vadd.f32 0.0, %v3846
      %v3848 = vpop.f32.mrb[0].mxu0
      %3849 = vmatprep.mubr.bf16.mxu0 0
      %3850 = vmatmul.mubr.bf16.gmra.mrb[0].mxu0 %v3713
      %v3851 = vpop.f32.mrb[0].mxu0
      %v3852 = vadd.f32 0.0, %v3851
      %v3853 = vpop.f32.mrb[0].mxu0
      %v3854 = vpop.f32.mrb[0].mxu0
      %v3855 = vadd.f32 0.0, %v3854
      %v3856 = vpop.f32.mrb[0].mxu0
      %3857 = vmatprep.mubr.bf16.mxu0 0
      %3858 = vmatmul.mubr.bf16.gmra.mrb[0].mxu0 %v3716
      %v3859 = vpop.f32.mrb[0].mxu0
      %v3860 = vadd.f32 0.0, %v3859
      %v3861 = vpop.f32.mrb[0].mxu0
      %v3862 = vpop.f32.mrb[0].mxu0
      %v3863 = vadd.f32 0.0, %v3862
      %v3864 = vpop.f32.mrb[0].mxu0
      %3865 = vmatprep.mubr.bf16.mxu0 0
      %3866 = vmatmul.mubr.bf16.gmra.mrb[0].mxu0 %v3719
      %v3867 = vpop.f32.mrb[0].mxu0
      %v3868 = vadd.f32 0.0, %v3867
      %v3869 = vpop.f32.mrb[0].mxu0
      %v3870 = vpop.f32.mrb[0].mxu0
      %v3871 = vadd.f32 0.0, %v3870
      %v3872 = vpop.f32.mrb[0].mxu0
      %3873 = vmatprep.mubr.bf16.mxu0 0
      %3874 = vmatmul.mubr.bf16.gmra.mrb[0].mxu0 %v3722
      %v3875 = vpop.f32.mrb[0].mxu0
      %v3876 = vadd.f32 0.0, %v3875
      %v3877 = vpop.f32.mrb[0].mxu0
      %v3878 = vpop.f32.mrb[0].mxu0
      %v3879 = vadd.f32 0.0, %v3878
      %v3880 = vpop.f32.mrb[0].mxu0
      %3881 = vmatprep.mubr.bf16.mxu0 0
      %3882 = vmatmul.mubr.bf16.gmra.mrb[0].mxu0 %v3725
      %v3883 = vpop.f32.mrb[0].mxu0
      %v3884 = vadd.f32 0.0, %v3883
      %v3885 = vpop.f32.mrb[0].mxu0
      %v3886 = vpop.f32.mrb[0].mxu0
      %v3887 = vadd.f32 0.0, %v3886
      %v3888 = vpop.f32.mrb[0].mxu0
      %3889 = vmatprep.mubr.bf16.mxu0 0
      %3890 = vmatmul.mubr.bf16.gmra.mrb[0].mxu0 %v3728
      %v3891 = vpop.f32.mrb[0].mxu0
      %v3892 = vadd.f32 0.0, %v3891
      %v3893 = vpop.f32.mrb[0].mxu0
      %v3894 = vpop.f32.mrb[0].mxu0
      %v3895 = vadd.f32 0.0, %v3894
      %v3896 = vpop.f32.mrb[0].mxu0
      %3897 = vmatprep.mubr.bf16.mxu0 0
      %3898 = vmatmul.mubr.bf16.gmra.mrb[0].mxu0 %v3731
      %v3899 = vpop.f32.mrb[0].mxu0
      %v3900 = vadd.f32 0.0, %v3899
      %v3901 = vpop.f32.mrb[0].mxu0
      %v3902 = vpop.f32.mrb[0].mxu0
      %v3903 = vadd.f32 0.0, %v3902
      %v3904 = vpop.f32.mrb[0].mxu0
      %3905 = vmatprep.mubr.bf16.mxu0 0
      %3906 = vmatmul.mubr.bf16.gmra.mrb[0].mxu0 %v3734
      %v3907 = vpop.f32.mrb[0].mxu0
      %v3908 = vadd.f32 0.0, %v3907
      %v3909 = vpop.f32.mrb[0].mxu0
      %v3910 = vpop.f32.mrb[0].mxu0
      %v3911 = vadd.f32 0.0, %v3910
      %v3912 = vpop.f32.mrb[0].mxu0
      %3913 = vmatprep.mubr.bf16.mxu0 0
      %3914 = vmatmul.mubr.bf16.gmra.mrb[0].mxu0 %v3737
      %v3915 = vpop.f32.mrb[0].mxu0
      %v3916 = vadd.f32 0.0, %v3915
      %v3917 = vpop.f32.mrb[0].mxu0
      %v3918 = vpop.f32.mrb[0].mxu0
      %v3919 = vadd.f32 0.0, %v3918
      %v3920 = vpop.f32.mrb[0].mxu0
      %3921 = vmatprep.mubr.bf16.mxu0 0
      %3922 = vmatmul.mubr.bf16.gmra.mrb[0].mxu0 %v3740
      %v3923 = vpop.f32.mrb[0].mxu0
      %v3924 = vadd.f32 0.0, %v3923
      %v3925 = vpop.f32.mrb[0].mxu0
      %v3926 = vpop.f32.mrb[0].mxu0
      %v3927 = vadd.f32 0.0, %v3926
      %v3928 = vpop.f32.mrb[0].mxu0
      %3929 = vmatprep.mubr.bf16.mxu0 0
      %3930 = vmatmul.mubr.bf16.gmra.mrb[0].mxu0 %v3743
      %v3931 = vpop.f32.mrb[0].mxu0
      %v3932 = vadd.f32 0.0, %v3931
      %v3933 = vpop.f32.mrb[0].mxu0
      %v3934 = vpop.f32.mrb[0].mxu0
      %v3935 = vadd.f32 0.0, %v3934
      %v3936 = vpop.f32.mrb[0].mxu0
      %3937 = vmatprep.mubr.bf16.mxu0 0
      %3938 = vmatmul.mubr.bf16.gmra.mrb[0].mxu0 %v3746
      %v3939 = vpop.f32.mrb[0].mxu0
      %v3940 = vadd.f32 0.0, %v3939
      %v3941 = vpop.f32.mrb[0].mxu0
      %v3942 = vpop.f32.mrb[0].mxu0
      %v3943 = vadd.f32 0.0, %v3942
      %v3944 = vpop.f32.mrb[0].mxu0
      %3945 = vmatprep.mubr.bf16.mxu0 0
      %3946 = vmatmul.mubr.bf16.gmra.mrb[0].mxu0 %v3749
      %v3947 = vpop.f32.mrb[0].mxu0
      %v3948 = vadd.f32 0.0, %v3947
      %v3949 = vpop.f32.mrb[0].mxu0
      %v3950 = vpop.f32.mrb[0].mxu0
      %v3951 = vadd.f32 0.0, %v3950
      %v3952 = vpop.f32.mrb[0].mxu0
      %3953 = vmatprep.mubr.bf16.mxu0 0
      %3954 = vmatmul.mubr.bf16.gmra.mrb[0].mxu0 %v3752
      %v3955 = vpop.f32.mrb[0].mxu0
      %v3956 = vadd.f32 0.0, %v3955
      %v3957 = vpop.f32.mrb[0].mxu0
      %v3958 = vpop.f32.mrb[0].mxu0
      %v3959 = vadd.f32 0.0, %v3958
      %v3960 = vpop.f32.mrb[0].mxu0
      %3961 = vmatprep.mubr.bf16.mxu0 0
      %3962 = vmatmul.mubr.bf16.gmra.mrb[0].mxu0 %v3755
      %v3963 = vpop.f32.mrb[0].mxu0
      %v3964 = vadd.f32 0.0, %v3963
      %v3965 = vpop.f32.mrb[0].mxu0
      %v3966 = vpop.f32.mrb[0].mxu0
      %v3967 = vadd.f32 0.0, %v3966
      %v3968 = vpop.f32.mrb[0].mxu0
      %3969 = vmatprep.mubr.bf16.mxu0 0
      %3970 = vmatmul.mubr.bf16.gmra.mrb[0].mxu0 %v3758
      %v3971 = vpop.f32.mrb[0].mxu0
      %v3972 = vadd.f32 0.0, %v3971
      %v3973 = vpop.f32.mrb[0].mxu0
      %v3974 = vpop.f32.mrb[0].mxu0
      %v3975 = vadd.f32 0.0, %v3974
      %v3976 = vpop.f32.mrb[0].mxu0
      %3977 = vmatprep.mubr.bf16.mxu0 0
      %3978 = vmatmul.mubr.bf16.gmra.mrb[0].mxu0 %v3761
      %v3979 = vpop.f32.mrb[0].mxu0
      %v3980 = vadd.f32 0.0, %v3979
      %v3981 = vpop.f32.mrb[0].mxu0
      %v3982 = vpop.f32.mrb[0].mxu0
      %v3983 = vadd.f32 0.0, %v3982
      %v3984 = vpop.f32.mrb[0].mxu0
      %3985 = vmatprep.mubr.bf16.mxu0 0
      %3986 = vmatmul.mubr.bf16.gmra.mrb[0].mxu0 %v3764
      %v3987 = vpop.f32.mrb[0].mxu0
      %v3988 = vadd.f32 0.0, %v3987
      %v3989 = vpop.f32.mrb[0].mxu0
      %v3990 = vpop.f32.mrb[0].mxu0
      %v3991 = vadd.f32 0.0, %v3990
      %v3992 = vpop.f32.mrb[0].mxu0
      %3993 = vdwg.mxu0
      %v3994 = vadd.f32 %v3559, %v3804
      %v3995 = vadd.f32 %v3560, %v3807
      %v3996 = vadd.f32 %v3561, %v3812
      %v3997 = vadd.f32 %v3562, %v3815
      %v3998 = vadd.f32 %v3563, %v3820
      %v3999 = vadd.f32 %v3564, %v3823
      %v4000 = vadd.f32 %v3565, %v3828
      %v4001 = vadd.f32 %v3566, %v3831
      %v4002 = vadd.f32 %v3567, %v3836
      %v4003 = vadd.f32 %v3568, %v3839
      %v4004 = vadd.f32 %v3569, %v3844
      %v4005 = vadd.f32 %v3570, %v3847
      %v4006 = vadd.f32 %v3571, %v3852
      %v4007 = vadd.f32 %v3572, %v3855
      %v4008 = vadd.f32 %v3573, %v3860
      %v4009 = vadd.f32 %v3574, %v3863
      %v4010 = vadd.f32 %v3575, %v3868
      %v4011 = vadd.f32 %v3576, %v3871
      %v4012 = vadd.f32 %v3577, %v3876
      %v4013 = vadd.f32 %v3578, %v3879
      %v4014 = vadd.f32 %v3579, %v3884
      %v4015 = vadd.f32 %v3580, %v3887
      %v4016 = vadd.f32 %v3581, %v3892
      %v4017 = vadd.f32 %v3582, %v3895
      %v4018 = vadd.f32 %v3583, %v3900
      %v4019 = vadd.f32 %v3584, %v3903
      %v4020 = vadd.f32 %v3585, %v3908
      %v4021 = vadd.f32 %v3586, %v3911
      %v4022 = vadd.f32 %v3587, %v3916
      %v4023 = vadd.f32 %v3588, %v3919
      %v4024 = vadd.f32 %v3589, %v3924
      %v4025 = vadd.f32 %v3590, %v3927
      %v4026 = vadd.f32 %v3591, %v3932
      %v4027 = vadd.f32 %v3592, %v3935
      %v4028 = vadd.f32 %v3593, %v3940
      %v4029 = vadd.f32 %v3594, %v3943
      %v4030 = vadd.f32 %v3595, %v3948
      %v4031 = vadd.f32 %v3596, %v3951
      %v4032 = vadd.f32 %v3597, %v3956
      %v4033 = vadd.f32 %v3598, %v3959
      %v4034 = vadd.f32 %v3599, %v3964
      %v4035 = vadd.f32 %v3600, %v3967
      %v4036 = vadd.f32 %v3601, %v3972
      %v4037 = vadd.f32 %v3602, %v3975
      %v4038 = vadd.f32 %v3603, %v3980
      %v4039 = vadd.f32 %v3604, %v3983
      %v4040 = vadd.f32 %v3605, %v3988
      %v4041 = vadd.f32 %v3606, %v3991
      %v4042 = vpack.c.bf16 %v1411, %v1410
      %v4043 = vpack.c.bf16 %v1412, %v1412
      %s4044 = scalar_lea.vmem %s6, 12
      %v4045 = vld [vmem:[%s4044] sm:$0x3]
      %v4046 = vrot.slane %v3679, 3
      %v4047 = vrot.slane %v3675, 4
      %v4048 = vor.u32 %v4046, %v4047
      %v4049 = vsel %vm1767, %v1981, %v4048
      %v4050 = vrot.slane %v3686, 3
      %v4051 = vrot.slane %v3682, 4
      %v4052 = vor.u32 %v4050, %v4051
      %v4053 = vsel %vm1767, %v4048, %v4052
      %v4055 = vshrl.u32 %v4042, 16
      %v4057 = vrot.slane %v4055, 3
      %v4058 = vshll.u32 %v4042, 16
      %v4060 = vrot.slane %v4058, 4
      %v4061 = vor.u32 %v4057, %v4060
      %v4062 = vsel %vm1767, %v4052, %v4061
      %v4064 = vshrl.u32 %v4043, 16
      %v4066 = vrot.slane %v4064, 3
      %v4067 = vshll.u32 %v4043, 16
      %v4069 = vrot.slane %v4067, 4
      %v4070 = vor.u32 %v4066, %v4069
      %v4071 = vsel %vm1767, %v4061, %v4070
      %v4073 = vsel %vm1465, %v4049, 0
      %v4076 = vsel %vm1465, %v4053, 0
      %v4079 = vsel %vm1465, %v4062, 0
      %v4082 = vsel %vm1465, %v4071, 0
      %v4085 = vsel %vm1538, %v4045, 0
      %4087 = vmatprep.subr.bf16.mxu0 0
      %4088 = vmatpush1.bf16.msra.mxu0 %v4085
      %4089 = vmatprep.subr.bf16.mxu0 0
      %4090 = vmatpush1.bf16.msra.mxu0 0
      %4091 = vmatprep.subr.bf16.mxu0 0
      %4092 = vmatpush1.bf16.msra.mxu0 0
      %4093 = vmatprep.subr.bf16.mxu0 0
      %4094 = vmatpush1.bf16.msra.mxu0 0
      %4095 = vmatprep.subr.bf16.mxu0 0
      %4096 = vmatpush1.bf16.msra.mxu0 0
      %4097 = vmatprep.subr.bf16.mxu0 0
      %4098 = vmatpush1.bf16.msra.mxu0 0
      %4099 = vmatprep.subr.bf16.mxu0 0
      %4100 = vmatpush1.bf16.msra.mxu0 0
      %4101 = vmatprep.subr.bf16.mxu0 0
      %4102 = vmatpush1.bf16.msra.mxu0 0
      %4103 = vmatprep.subr.bf16.mxu0 0
      %4104 = vmatpush1.bf16.msra.mxu0 0
      %4105 = vmatprep.subr.bf16.mxu0 0
      %4106 = vmatpush1.bf16.msra.mxu0 0
      %4107 = vmatprep.subr.bf16.mxu0 0
      %4108 = vmatpush1.bf16.msra.mxu0 0
      %4109 = vmatprep.subr.bf16.mxu0 0
      %4110 = vmatpush1.bf16.msra.mxu0 0
      %4111 = vmatprep.subr.bf16.mxu0 0
      %4112 = vmatpush1.bf16.msra.mxu0 0
      %4113 = vmatprep.subr.bf16.mxu0 0
      %4114 = vmatpush1.bf16.msra.mxu0 0
      %4115 = vmatprep.subr.bf16.mxu0 0
      %4116 = vmatpush1.bf16.msra.mxu0 0
      %4117 = vmatprep.subr.bf16.mxu0 0
      %4118 = vmatpush1.bf16.msra.mxu0 0
      %4119 = vmatprep.mubr.bf16.mxu0 0
      %4120 = vmatmul.mubr.bf16.gmra.mrb[0].mxu0 %v2002
      %v4121 = vpop.f32.mrb[0].mxu0
      %v4122 = vadd.f32 0.0, %v4121
      %v4123 = vpop.f32.mrb[0].mxu0
      %v4124 = vpop.f32.mrb[0].mxu0
      %v4125 = vadd.f32 0.0, %v4124
      %v4126 = vpop.f32.mrb[0].mxu0
      %4127 = vmatprep.mubr.bf16.mxu0 0
      %4128 = vmatmul.mubr.bf16.gmra.mrb[0].mxu0 %v2005
      %v4129 = vpop.f32.mrb[0].mxu0
      %v4130 = vadd.f32 0.0, %v4129
      %v4131 = vpop.f32.mrb[0].mxu0
      %v4132 = vpop.f32.mrb[0].mxu0
      %v4133 = vadd.f32 0.0, %v4132
      %v4134 = vpop.f32.mrb[0].mxu0
      %4135 = vmatprep.mubr.bf16.mxu0 0
      %4136 = vmatmul.mubr.bf16.gmra.mrb[0].mxu0 %v2008
      %v4137 = vpop.f32.mrb[0].mxu0
      %v4138 = vadd.f32 0.0, %v4137
      %v4139 = vpop.f32.mrb[0].mxu0
      %v4140 = vpop.f32.mrb[0].mxu0
      %v4141 = vadd.f32 0.0, %v4140
      %v4142 = vpop.f32.mrb[0].mxu0
      %4143 = vmatprep.mubr.bf16.mxu0 0
      %4144 = vmatmul.mubr.bf16.gmra.mrb[0].mxu0 %v2011
      %v4145 = vpop.f32.mrb[0].mxu0
      %v4146 = vadd.f32 0.0, %v4145
      %v4147 = vpop.f32.mrb[0].mxu0
      %v4148 = vpop.f32.mrb[0].mxu0
      %v4149 = vadd.f32 0.0, %v4148
      %v4150 = vpop.f32.mrb[0].mxu0
      %4151 = vmatprep.mubr.bf16.mxu0 0
      %4152 = vmatmul.mubr.bf16.gmra.mrb[0].mxu0 %v2014
      %v4153 = vpop.f32.mrb[0].mxu0
      %v4154 = vadd.f32 0.0, %v4153
      %v4155 = vpop.f32.mrb[0].mxu0
      %v4156 = vpop.f32.mrb[0].mxu0
      %v4157 = vadd.f32 0.0, %v4156
      %v4158 = vpop.f32.mrb[0].mxu0
      %4159 = vmatprep.mubr.bf16.mxu0 0
      %4160 = vmatmul.mubr.bf16.gmra.mrb[0].mxu0 %v2017
      %v4161 = vpop.f32.mrb[0].mxu0
      %v4162 = vadd.f32 0.0, %v4161
      %v4163 = vpop.f32.mrb[0].mxu0
      %v4164 = vpop.f32.mrb[0].mxu0
      %v4165 = vadd.f32 0.0, %v4164
      %v4166 = vpop.f32.mrb[0].mxu0
      %4167 = vmatprep.mubr.bf16.mxu0 0
      %4168 = vmatmul.mubr.bf16.gmra.mrb[0].mxu0 %v2020
      %v4169 = vpop.f32.mrb[0].mxu0
      %v4170 = vadd.f32 0.0, %v4169
      %v4171 = vpop.f32.mrb[0].mxu0
      %v4172 = vpop.f32.mrb[0].mxu0
      %v4173 = vadd.f32 0.0, %v4172
      %v4174 = vpop.f32.mrb[0].mxu0
      %4175 = vmatprep.mubr.bf16.mxu0 0
      %4176 = vmatmul.mubr.bf16.gmra.mrb[0].mxu0 %v2023
      %v4177 = vpop.f32.mrb[0].mxu0
      %v4178 = vadd.f32 0.0, %v4177
      %v4179 = vpop.f32.mrb[0].mxu0
      %v4180 = vpop.f32.mrb[0].mxu0
      %v4181 = vadd.f32 0.0, %v4180
      %v4182 = vpop.f32.mrb[0].mxu0
      %4183 = vmatprep.mubr.bf16.mxu0 0
      %4184 = vmatmul.mubr.bf16.gmra.mrb[0].mxu0 %v2026
      %v4185 = vpop.f32.mrb[0].mxu0
      %v4186 = vadd.f32 0.0, %v4185
      %v4187 = vpop.f32.mrb[0].mxu0
      %v4188 = vpop.f32.mrb[0].mxu0
      %v4189 = vadd.f32 0.0, %v4188
      %v4190 = vpop.f32.mrb[0].mxu0
      %4191 = vmatprep.mubr.bf16.mxu0 0
      %4192 = vmatmul.mubr.bf16.gmra.mrb[0].mxu0 %v2029
      %v4193 = vpop.f32.mrb[0].mxu0
      %v4194 = vadd.f32 0.0, %v4193
      %v4195 = vpop.f32.mrb[0].mxu0
      %v4196 = vpop.f32.mrb[0].mxu0
      %v4197 = vadd.f32 0.0, %v4196
      %v4198 = vpop.f32.mrb[0].mxu0
      %4199 = vmatprep.mubr.bf16.mxu0 0
      %4200 = vmatmul.mubr.bf16.gmra.mrb[0].mxu0 %v2032
      %v4201 = vpop.f32.mrb[0].mxu0
      %v4202 = vadd.f32 0.0, %v4201
      %v4203 = vpop.f32.mrb[0].mxu0
      %v4204 = vpop.f32.mrb[0].mxu0
      %v4205 = vadd.f32 0.0, %v4204
      %v4206 = vpop.f32.mrb[0].mxu0
      %4207 = vmatprep.mubr.bf16.mxu0 0
      %4208 = vmatmul.mubr.bf16.gmra.mrb[0].mxu0 %v2035
      %v4209 = vpop.f32.mrb[0].mxu0
      %v4210 = vadd.f32 0.0, %v4209
      %v4211 = vpop.f32.mrb[0].mxu0
      %v4212 = vpop.f32.mrb[0].mxu0
      %v4213 = vadd.f32 0.0, %v4212
      %v4214 = vpop.f32.mrb[0].mxu0
      %4215 = vmatprep.mubr.bf16.mxu0 0
      %4216 = vmatmul.mubr.bf16.gmra.mrb[0].mxu0 %v2038
      %v4217 = vpop.f32.mrb[0].mxu0
      %v4218 = vadd.f32 0.0, %v4217
      %v4219 = vpop.f32.mrb[0].mxu0
      %v4220 = vpop.f32.mrb[0].mxu0
      %v4221 = vadd.f32 0.0, %v4220
      %v4222 = vpop.f32.mrb[0].mxu0
      %4223 = vmatprep.mubr.bf16.mxu0 0
      %4224 = vmatmul.mubr.bf16.gmra.mrb[0].mxu0 %v2041
      %v4225 = vpop.f32.mrb[0].mxu0
      %v4226 = vadd.f32 0.0, %v4225
      %v4227 = vpop.f32.mrb[0].mxu0
      %v4228 = vpop.f32.mrb[0].mxu0
      %v4229 = vadd.f32 0.0, %v4228
      %v4230 = vpop.f32.mrb[0].mxu0
      %4231 = vmatprep.mubr.bf16.mxu0 0
      %4232 = vmatmul.mubr.bf16.gmra.mrb[0].mxu0 %v2044
      %v4233 = vpop.f32.mrb[0].mxu0
      %v4234 = vadd.f32 0.0, %v4233
      %v4235 = vpop.f32.mrb[0].mxu0
      %v4236 = vpop.f32.mrb[0].mxu0
      %v4237 = vadd.f32 0.0, %v4236
      %v4238 = vpop.f32.mrb[0].mxu0
      %4239 = vmatprep.mubr.bf16.mxu0 0
      %4240 = vmatmul.mubr.bf16.gmra.mrb[0].mxu0 %v2047
      %v4241 = vpop.f32.mrb[0].mxu0
      %v4242 = vadd.f32 0.0, %v4241
      %v4243 = vpop.f32.mrb[0].mxu0
      %v4244 = vpop.f32.mrb[0].mxu0
      %v4245 = vadd.f32 0.0, %v4244
      %v4246 = vpop.f32.mrb[0].mxu0
      %4247 = vmatprep.mubr.bf16.mxu0 0
      %4248 = vmatmul.mubr.bf16.gmra.mrb[0].mxu0 %v2050
      %v4249 = vpop.f32.mrb[0].mxu0
      %v4250 = vadd.f32 0.0, %v4249
      %v4251 = vpop.f32.mrb[0].mxu0
      %v4252 = vpop.f32.mrb[0].mxu0
      %v4253 = vadd.f32 0.0, %v4252
      %v4254 = vpop.f32.mrb[0].mxu0
      %4255 = vmatprep.mubr.bf16.mxu0 0
      %4256 = vmatmul.mubr.bf16.gmra.mrb[0].mxu0 %v2053
      %v4257 = vpop.f32.mrb[0].mxu0
      %v4258 = vadd.f32 0.0, %v4257
      %v4259 = vpop.f32.mrb[0].mxu0
      %v4260 = vpop.f32.mrb[0].mxu0
      %v4261 = vadd.f32 0.0, %v4260
      %v4262 = vpop.f32.mrb[0].mxu0
      %4263 = vmatprep.mubr.bf16.mxu0 0
      %4264 = vmatmul.mubr.bf16.gmra.mrb[0].mxu0 %v2056
      %v4265 = vpop.f32.mrb[0].mxu0
      %v4266 = vadd.f32 0.0, %v4265
      %v4267 = vpop.f32.mrb[0].mxu0
      %v4268 = vpop.f32.mrb[0].mxu0
      %v4269 = vadd.f32 0.0, %v4268
      %v4270 = vpop.f32.mrb[0].mxu0
      %4271 = vmatprep.mubr.bf16.mxu0 0
      %4272 = vmatmul.mubr.bf16.gmra.mrb[0].mxu0 %v2059
      %v4273 = vpop.f32.mrb[0].mxu0
      %v4274 = vadd.f32 0.0, %v4273
      %v4275 = vpop.f32.mrb[0].mxu0
      %v4276 = vpop.f32.mrb[0].mxu0
      %v4277 = vadd.f32 0.0, %v4276
      %v4278 = vpop.f32.mrb[0].mxu0
      %4279 = vmatprep.mubr.bf16.mxu0 0
      %4280 = vmatmul.mubr.bf16.gmra.mrb[0].mxu0 %v4073
      %v4281 = vpop.f32.mrb[0].mxu0
      %v4282 = vadd.f32 0.0, %v4281
      %v4283 = vpop.f32.mrb[0].mxu0
      %v4284 = vpop.f32.mrb[0].mxu0
      %v4285 = vadd.f32 0.0, %v4284
      %v4286 = vpop.f32.mrb[0].mxu0
      %4287 = vmatprep.mubr.bf16.mxu0 0
      %4288 = vmatmul.mubr.bf16.gmra.mrb[0].mxu0 %v4076
      %v4289 = vpop.f32.mrb[0].mxu0
      %v4290 = vadd.f32 0.0, %v4289
      %v4291 = vpop.f32.mrb[0].mxu0
      %v4292 = vpop.f32.mrb[0].mxu0
      %v4293 = vadd.f32 0.0, %v4292
      %v4294 = vpop.f32.mrb[0].mxu0
      %4295 = vmatprep.mubr.bf16.mxu0 0
      %4296 = vmatmul.mubr.bf16.gmra.mrb[0].mxu0 %v4079
      %v4297 = vpop.f32.mrb[0].mxu0
      %v4298 = vadd.f32 0.0, %v4297
      %v4299 = vpop.f32.mrb[0].mxu0
      %v4300 = vpop.f32.mrb[0].mxu0
      %v4301 = vadd.f32 0.0, %v4300
      %v4302 = vpop.f32.mrb[0].mxu0
      %4303 = vmatprep.mubr.bf16.mxu0 0
      %4304 = vmatmul.mubr.bf16.gmra.mrb[0].mxu0 %v4082
      %v4305 = vpop.f32.mrb[0].mxu0
      %v4306 = vadd.f32 0.0, %v4305
      %v4307 = vpop.f32.mrb[0].mxu0
      %v4308 = vpop.f32.mrb[0].mxu0
      %v4309 = vadd.f32 0.0, %v4308
      %v4310 = vpop.f32.mrb[0].mxu0
      %4311 = vdwg.mxu0
      %v4312 = vadd.f32 %v3994, %v4122
      %v4313 = vadd.f32 %v3995, %v4125
      %v4314 = vadd.f32 %v3996, %v4130
      %v4315 = vadd.f32 %v3997, %v4133
      %v4316 = vadd.f32 %v3998, %v4138
      %v4317 = vadd.f32 %v3999, %v4141
      %v4318 = vadd.f32 %v4000, %v4146
      %v4319 = vadd.f32 %v4001, %v4149
      %v4320 = vadd.f32 %v4002, %v4154
      %v4321 = vadd.f32 %v4003, %v4157
      %v4322 = vadd.f32 %v4004, %v4162
      %v4323 = vadd.f32 %v4005, %v4165
      %v4324 = vadd.f32 %v4006, %v4170
      %v4325 = vadd.f32 %v4007, %v4173
      %v4326 = vadd.f32 %v4008, %v4178
      %v4327 = vadd.f32 %v4009, %v4181
      %v4328 = vadd.f32 %v4010, %v4186
      %v4329 = vadd.f32 %v4011, %v4189
      %v4330 = vadd.f32 %v4012, %v4194
      %v4331 = vadd.f32 %v4013, %v4197
      %v4332 = vadd.f32 %v4014, %v4202
      %v4333 = vadd.f32 %v4015, %v4205
      %v4334 = vadd.f32 %v4016, %v4210
      %v4335 = vadd.f32 %v4017, %v4213
      %v4336 = vadd.f32 %v4018, %v4218
      %v4337 = vadd.f32 %v4019, %v4221
      %v4338 = vadd.f32 %v4020, %v4226
      %v4339 = vadd.f32 %v4021, %v4229
      %v4340 = vadd.f32 %v4022, %v4234
      %v4341 = vadd.f32 %v4023, %v4237
      %v4342 = vadd.f32 %v4024, %v4242
      %v4343 = vadd.f32 %v4025, %v4245
      %v4344 = vadd.f32 %v4026, %v4250
      %v4345 = vadd.f32 %v4027, %v4253
      %v4346 = vadd.f32 %v4028, %v4258
      %v4347 = vadd.f32 %v4029, %v4261
      %v4348 = vadd.f32 %v4030, %v4266
      %v4349 = vadd.f32 %v4031, %v4269
      %v4350 = vadd.f32 %v4032, %v4274
      %v4351 = vadd.f32 %v4033, %v4277
      %v4352 = vadd.f32 %v4034, %v4282
      %v4353 = vadd.f32 %v4035, %v4285
      %v4354 = vadd.f32 %v4036, %v4290
      %v4355 = vadd.f32 %v4037, %v4293
      %v4356 = vadd.f32 %v4038, %v4298
      %v4357 = vadd.f32 %v4039, %v4301
      %v4358 = vadd.f32 %v4040, %v4306
      %v4359 = vadd.f32 %v4041, %v4309
      %v4360 = vpack.c.bf16 %v1410, %v1409
      %v4361 = vpack.c.bf16 %v1412, %v1411
      %s4362 = scalar_lea.vmem %s6, 14
      %v4363 = vld [vmem:[%s4362] sm:$0x3]
      %v4364 = vsel %vm1465, %v2816, 0
      %v4367 = vsel %vm1465, %v4360, 0
      %v4370 = vsel %vm1465, %v4361, 0
      %v4373 = vsel %vm1538, %v4363, 0
      %4375 = vmatprep.subr.bf16.mxu0 0
      %4376 = vmatpush1.bf16.msra.mxu0 %v4373
      %4377 = vmatprep.subr.bf16.mxu0 0
      %4378 = vmatpush1.bf16.msra.mxu0 0
      %4379 = vmatprep.subr.bf16.mxu0 0
      %4380 = vmatpush1.bf16.msra.mxu0 0
      %4381 = vmatprep.subr.bf16.mxu0 0
      %4382 = vmatpush1.bf16.msra.mxu0 0
      %4383 = vmatprep.subr.bf16.mxu0 0
      %4384 = vmatpush1.bf16.msra.mxu0 0
      %4385 = vmatprep.subr.bf16.mxu0 0
      %4386 = vmatpush1.bf16.msra.mxu0 0
      %4387 = vmatprep.subr.bf16.mxu0 0
      %4388 = vmatpush1.bf16.msra.mxu0 0
      %4389 = vmatprep.subr.bf16.mxu0 0
      %4390 = vmatpush1.bf16.msra.mxu0 0
      %4391 = vmatprep.subr.bf16.mxu0 0
      %4392 = vmatpush1.bf16.msra.mxu0 0
      %4393 = vmatprep.subr.bf16.mxu0 0
      %4394 = vmatpush1.bf16.msra.mxu0 0
      %4395 = vmatprep.subr.bf16.mxu0 0
      %4396 = vmatpush1.bf16.msra.mxu0 0
      %4397 = vmatprep.subr.bf16.mxu0 0
      %4398 = vmatpush1.bf16.msra.mxu0 0
      %4399 = vmatprep.subr.bf16.mxu0 0
      %4400 = vmatpush1.bf16.msra.mxu0 0
      %4401 = vmatprep.subr.bf16.mxu0 0
      %4402 = vmatpush1.bf16.msra.mxu0 0
      %4403 = vmatprep.subr.bf16.mxu0 0
      %4404 = vmatpush1.bf16.msra.mxu0 0
      %4405 = vmatprep.subr.bf16.mxu0 0
      %4406 = vmatpush1.bf16.msra.mxu0 0
      %4407 = vmatprep.mubr.bf16.mxu0 0
      %4408 = vmatmul.mubr.bf16.gmra.mrb[0].mxu0 %v1476
      %v4409 = vpop.f32.mrb[0].mxu0
      %v4410 = vadd.f32 0.0, %v4409
      %v4411 = vpop.f32.mrb[0].mxu0
      %v4412 = vpop.f32.mrb[0].mxu0
      %v4413 = vadd.f32 0.0, %v4412
      %v4414 = vpop.f32.mrb[0].mxu0
      %4415 = vmatprep.mubr.bf16.mxu0 0
      %4416 = vmatmul.mubr.bf16.gmra.mrb[0].mxu0 %v1479
      %v4417 = vpop.f32.mrb[0].mxu0
      %v4418 = vadd.f32 0.0, %v4417
      %v4419 = vpop.f32.mrb[0].mxu0
      %v4420 = vpop.f32.mrb[0].mxu0
      %v4421 = vadd.f32 0.0, %v4420
      %v4422 = vpop.f32.mrb[0].mxu0
      %4423 = vmatprep.mubr.bf16.mxu0 0
      %4424 = vmatmul.mubr.bf16.gmra.mrb[0].mxu0 %v1482
      %v4425 = vpop.f32.mrb[0].mxu0
      %v4426 = vadd.f32 0.0, %v4425
      %v4427 = vpop.f32.mrb[0].mxu0
      %v4428 = vpop.f32.mrb[0].mxu0
      %v4429 = vadd.f32 0.0, %v4428
      %v4430 = vpop.f32.mrb[0].mxu0
      %4431 = vmatprep.mubr.bf16.mxu0 0
      %4432 = vmatmul.mubr.bf16.gmra.mrb[0].mxu0 %v1485
      %v4433 = vpop.f32.mrb[0].mxu0
      %v4434 = vadd.f32 0.0, %v4433
      %v4435 = vpop.f32.mrb[0].mxu0
      %v4436 = vpop.f32.mrb[0].mxu0
      %v4437 = vadd.f32 0.0, %v4436
      %v4438 = vpop.f32.mrb[0].mxu0
      %4439 = vmatprep.mubr.bf16.mxu0 0
      %4440 = vmatmul.mubr.bf16.gmra.mrb[0].mxu0 %v1488
      %v4441 = vpop.f32.mrb[0].mxu0
      %v4442 = vadd.f32 0.0, %v4441
      %v4443 = vpop.f32.mrb[0].mxu0
      %v4444 = vpop.f32.mrb[0].mxu0
      %v4445 = vadd.f32 0.0, %v4444
      %v4446 = vpop.f32.mrb[0].mxu0
      %4447 = vmatprep.mubr.bf16.mxu0 0
      %4448 = vmatmul.mubr.bf16.gmra.mrb[0].mxu0 %v1491
      %v4449 = vpop.f32.mrb[0].mxu0
      %v4450 = vadd.f32 0.0, %v4449
      %v4451 = vpop.f32.mrb[0].mxu0
      %v4452 = vpop.f32.mrb[0].mxu0
      %v4453 = vadd.f32 0.0, %v4452
      %v4454 = vpop.f32.mrb[0].mxu0
      %4455 = vmatprep.mubr.bf16.mxu0 0
      %4456 = vmatmul.mubr.bf16.gmra.mrb[0].mxu0 %v1494
      %v4457 = vpop.f32.mrb[0].mxu0
      %v4458 = vadd.f32 0.0, %v4457
      %v4459 = vpop.f32.mrb[0].mxu0
      %v4460 = vpop.f32.mrb[0].mxu0
      %v4461 = vadd.f32 0.0, %v4460
      %v4462 = vpop.f32.mrb[0].mxu0
      %4463 = vmatprep.mubr.bf16.mxu0 0
      %4464 = vmatmul.mubr.bf16.gmra.mrb[0].mxu0 %v1497
      %v4465 = vpop.f32.mrb[0].mxu0
      %v4466 = vadd.f32 0.0, %v4465
      %v4467 = vpop.f32.mrb[0].mxu0
      %v4468 = vpop.f32.mrb[0].mxu0
      %v4469 = vadd.f32 0.0, %v4468
      %v4470 = vpop.f32.mrb[0].mxu0
      %4471 = vmatprep.mubr.bf16.mxu0 0
      %4472 = vmatmul.mubr.bf16.gmra.mrb[0].mxu0 %v1500
      %v4473 = vpop.f32.mrb[0].mxu0
      %v4474 = vadd.f32 0.0, %v4473
      %v4475 = vpop.f32.mrb[0].mxu0
      %v4476 = vpop.f32.mrb[0].mxu0
      %v4477 = vadd.f32 0.0, %v4476
      %v4478 = vpop.f32.mrb[0].mxu0
      %4479 = vmatprep.mubr.bf16.mxu0 0
      %4480 = vmatmul.mubr.bf16.gmra.mrb[0].mxu0 %v1503
      %v4481 = vpop.f32.mrb[0].mxu0
      %v4482 = vadd.f32 0.0, %v4481
      %v4483 = vpop.f32.mrb[0].mxu0
      %v4484 = vpop.f32.mrb[0].mxu0
      %v4485 = vadd.f32 0.0, %v4484
      %v4486 = vpop.f32.mrb[0].mxu0
      %4487 = vmatprep.mubr.bf16.mxu0 0
      %4488 = vmatmul.mubr.bf16.gmra.mrb[0].mxu0 %v1506
      %v4489 = vpop.f32.mrb[0].mxu0
      %v4490 = vadd.f32 0.0, %v4489
      %v4491 = vpop.f32.mrb[0].mxu0
      %v4492 = vpop.f32.mrb[0].mxu0
      %v4493 = vadd.f32 0.0, %v4492
      %v4494 = vpop.f32.mrb[0].mxu0
      %4495 = vmatprep.mubr.bf16.mxu0 0
      %4496 = vmatmul.mubr.bf16.gmra.mrb[0].mxu0 %v1509
      %v4497 = vpop.f32.mrb[0].mxu0
      %v4498 = vadd.f32 0.0, %v4497
      %v4499 = vpop.f32.mrb[0].mxu0
      %v4500 = vpop.f32.mrb[0].mxu0
      %v4501 = vadd.f32 0.0, %v4500
      %v4502 = vpop.f32.mrb[0].mxu0
      %4503 = vmatprep.mubr.bf16.mxu0 0
      %4504 = vmatmul.mubr.bf16.gmra.mrb[0].mxu0 %v1512
      %v4505 = vpop.f32.mrb[0].mxu0
      %v4506 = vadd.f32 0.0, %v4505
      %v4507 = vpop.f32.mrb[0].mxu0
      %v4508 = vpop.f32.mrb[0].mxu0
      %v4509 = vadd.f32 0.0, %v4508
      %v4510 = vpop.f32.mrb[0].mxu0
      %4511 = vmatprep.mubr.bf16.mxu0 0
      %4512 = vmatmul.mubr.bf16.gmra.mrb[0].mxu0 %v1515
      %v4513 = vpop.f32.mrb[0].mxu0
      %v4514 = vadd.f32 0.0, %v4513
      %v4515 = vpop.f32.mrb[0].mxu0
      %v4516 = vpop.f32.mrb[0].mxu0
      %v4517 = vadd.f32 0.0, %v4516
      %v4518 = vpop.f32.mrb[0].mxu0
      %4519 = vmatprep.mubr.bf16.mxu0 0
      %4520 = vmatmul.mubr.bf16.gmra.mrb[0].mxu0 %v1518
      %v4521 = vpop.f32.mrb[0].mxu0
      %v4522 = vadd.f32 0.0, %v4521
      %v4523 = vpop.f32.mrb[0].mxu0
      %v4524 = vpop.f32.mrb[0].mxu0
      %v4525 = vadd.f32 0.0, %v4524
      %v4526 = vpop.f32.mrb[0].mxu0
      %4527 = vmatprep.mubr.bf16.mxu0 0
      %4528 = vmatmul.mubr.bf16.gmra.mrb[0].mxu0 %v1521
      %v4529 = vpop.f32.mrb[0].mxu0
      %v4530 = vadd.f32 0.0, %v4529
      %v4531 = vpop.f32.mrb[0].mxu0
      %v4532 = vpop.f32.mrb[0].mxu0
      %v4533 = vadd.f32 0.0, %v4532
      %v4534 = vpop.f32.mrb[0].mxu0
      %4535 = vmatprep.mubr.bf16.mxu0 0
      %4536 = vmatmul.mubr.bf16.gmra.mrb[0].mxu0 %v1524
      %v4537 = vpop.f32.mrb[0].mxu0
      %v4538 = vadd.f32 0.0, %v4537
      %v4539 = vpop.f32.mrb[0].mxu0
      %v4540 = vpop.f32.mrb[0].mxu0
      %v4541 = vadd.f32 0.0, %v4540
      %v4542 = vpop.f32.mrb[0].mxu0
      %4543 = vmatprep.mubr.bf16.mxu0 0
      %4544 = vmatmul.mubr.bf16.gmra.mrb[0].mxu0 %v1527
      %v4545 = vpop.f32.mrb[0].mxu0
      %v4546 = vadd.f32 0.0, %v4545
      %v4547 = vpop.f32.mrb[0].mxu0
      %v4548 = vpop.f32.mrb[0].mxu0
      %v4549 = vadd.f32 0.0, %v4548
      %v4550 = vpop.f32.mrb[0].mxu0
      %4551 = vmatprep.mubr.bf16.mxu0 0
      %4552 = vmatmul.mubr.bf16.gmra.mrb[0].mxu0 %v1530
      %v4553 = vpop.f32.mrb[0].mxu0
      %v4554 = vadd.f32 0.0, %v4553
      %v4555 = vpop.f32.mrb[0].mxu0
      %v4556 = vpop.f32.mrb[0].mxu0
      %v4557 = vadd.f32 0.0, %v4556
      %v4558 = vpop.f32.mrb[0].mxu0
      %4559 = vmatprep.mubr.bf16.mxu0 0
      %4560 = vmatmul.mubr.bf16.gmra.mrb[0].mxu0 %v1533
      %v4561 = vpop.f32.mrb[0].mxu0
      %v4562 = vadd.f32 0.0, %v4561
      %v4563 = vpop.f32.mrb[0].mxu0
      %v4564 = vpop.f32.mrb[0].mxu0
      %v4565 = vadd.f32 0.0, %v4564
      %v4566 = vpop.f32.mrb[0].mxu0
      %4567 = vmatprep.mubr.bf16.mxu0 0
      %4568 = vmatmul.mubr.bf16.gmra.mrb[0].mxu0 %v1536
      %v4569 = vpop.f32.mrb[0].mxu0
      %v4570 = vadd.f32 0.0, %v4569
      %v4571 = vpop.f32.mrb[0].mxu0
      %v4572 = vpop.f32.mrb[0].mxu0
      %v4573 = vadd.f32 0.0, %v4572
      %v4574 = vpop.f32.mrb[0].mxu0
      %4575 = vmatprep.mubr.bf16.mxu0 0
      %4576 = vmatmul.mubr.bf16.gmra.mrb[0].mxu0 %v4364
      %v4577 = vpop.f32.mrb[0].mxu0
      %v4578 = vadd.f32 0.0, %v4577
      %v4579 = vpop.f32.mrb[0].mxu0
      %v4580 = vpop.f32.mrb[0].mxu0
      %v4581 = vadd.f32 0.0, %v4580
      %v4582 = vpop.f32.mrb[0].mxu0
      %4583 = vmatprep.mubr.bf16.mxu0 0
      %4584 = vmatmul.mubr.bf16.gmra.mrb[0].mxu0 %v4367
      %v4585 = vpop.f32.mrb[0].mxu0
      %v4586 = vadd.f32 0.0, %v4585
      %v4587 = vpop.f32.mrb[0].mxu0
      %v4588 = vpop.f32.mrb[0].mxu0
      %v4589 = vadd.f32 0.0, %v4588
      %v4590 = vpop.f32.mrb[0].mxu0
      %4591 = vmatprep.mubr.bf16.mxu0 0
      %4592 = vmatmul.mubr.bf16.gmra.mrb[0].mxu0 %v4370
      %v4593 = vpop.f32.mrb[0].mxu0
      %v4594 = vadd.f32 0.0, %v4593
      %v4595 = vpop.f32.mrb[0].mxu0
      %v4596 = vpop.f32.mrb[0].mxu0
      %v4597 = vadd.f32 0.0, %v4596
      %v4598 = vpop.f32.mrb[0].mxu0
      %4599 = vdwg.mxu0
      %v4600 = vadd.f32 %v4312, %v4410
      %v4601 = vadd.f32 %v4313, %v4413
      %v4602 = vadd.f32 %v4314, %v4418
      %v4603 = vadd.f32 %v4315, %v4421
      %v4604 = vadd.f32 %v4316, %v4426
      %v4605 = vadd.f32 %v4317, %v4429
      %v4606 = vadd.f32 %v4318, %v4434
      %v4607 = vadd.f32 %v4319, %v4437
      %v4608 = vadd.f32 %v4320, %v4442
      %v4609 = vadd.f32 %v4321, %v4445
      %v4610 = vadd.f32 %v4322, %v4450
      %v4611 = vadd.f32 %v4323, %v4453
      %v4612 = vadd.f32 %v4324, %v4458
      %v4613 = vadd.f32 %v4325, %v4461
      %v4614 = vadd.f32 %v4326, %v4466
      %v4615 = vadd.f32 %v4327, %v4469
      %v4616 = vadd.f32 %v4328, %v4474
      %v4617 = vadd.f32 %v4329, %v4477
      %v4618 = vadd.f32 %v4330, %v4482
      %v4619 = vadd.f32 %v4331, %v4485
      %v4620 = vadd.f32 %v4332, %v4490
      %v4621 = vadd.f32 %v4333, %v4493
      %v4622 = vadd.f32 %v4334, %v4498
      %v4623 = vadd.f32 %v4335, %v4501
      %v4624 = vadd.f32 %v4336, %v4506
      %v4625 = vadd.f32 %v4337, %v4509
      %v4626 = vadd.f32 %v4338, %v4514
      %v4627 = vadd.f32 %v4339, %v4517
      %v4628 = vadd.f32 %v4340, %v4522
      %v4629 = vadd.f32 %v4341, %v4525
      %v4630 = vadd.f32 %v4342, %v4530
      %v4631 = vadd.f32 %v4343, %v4533
      %v4632 = vadd.f32 %v4344, %v4538
      %v4633 = vadd.f32 %v4345, %v4541
      %v4634 = vadd.f32 %v4346, %v4546
      %v4635 = vadd.f32 %v4347, %v4549
      %v4636 = vadd.f32 %v4348, %v4554
      %v4637 = vadd.f32 %v4349, %v4557
      %v4638 = vadd.f32 %v4350, %v4562
      %v4639 = vadd.f32 %v4351, %v4565
      %v4640 = vadd.f32 %v4352, %v4570
      %v4641 = vadd.f32 %v4353, %v4573
      %v4642 = vadd.f32 %v4354, %v4578
      %v4643 = vadd.f32 %v4355, %v4581
      %v4644 = vadd.f32 %v4356, %v4586
      %v4645 = vadd.f32 %v4357, %v4589
      %v4646 = vadd.f32 %v4358, %v4594
      %v4647 = vadd.f32 %v4359, %v4597
      %v4648 = vpack.c.bf16 0.0, 0.0
      %s4649 = scalar_lea.vmem %s6, 16
      %v4650 = vld [vmem:[%s4649] sm:$0x3]
      %v4651 = vrot.slane %v2915, 1
      %v4652 = vsel %vm2295, %v2462, %v4651
      %v4653 = vor.u32 %v2912, %v4651
      %v4654 = vshll.u32 %v4360, 16
      %v4656 = vrot.slane %v4654, 1
      %v4657 = vsel %vm2295, %v4653, %v4656
      %v4658 = vshrl.u32 %v4360, 16
      %v4660 = vor.u32 %v4658, %v4656
      %v4661 = vshll.u32 %v4361, 16
      %v4663 = vrot.slane %v4661, 1
      %v4664 = vsel %vm2295, %v4660, %v4663
      %v4665 = vshrl.u32 %v4361, 16
      %v4667 = vor.u32 %v4665, %v4663
      %v4669 = vshll.u32 %v4648, 16
      %v4671 = vrot.slane %v4669, 1
      %v4672 = vsel %vm2295, %v4667, %v4671
      %v4674 = vsel %vm1465, %v4652, 0
      %v4677 = vsel %vm1465, %v4657, 0
      %v4680 = vsel %vm1465, %v4664, 0
      %v4683 = vsel %vm1465, %v4672, 0
      %v4686 = vsel %vm1538, %v4650, 0
      %4688 = vmatprep.subr.bf16.mxu0 0
      %4689 = vmatpush1.bf16.msra.mxu0 %v4686
      %4690 = vmatprep.subr.bf16.mxu0 0
      %4691 = vmatpush1.bf16.msra.mxu0 0
      %4692 = vmatprep.subr.bf16.mxu0 0
      %4693 = vmatpush1.bf16.msra.mxu0 0
      %4694 = vmatprep.subr.bf16.mxu0 0
      %4695 = vmatpush1.bf16.msra.mxu0 0
      %4696 = vmatprep.subr.bf16.mxu0 0
      %4697 = vmatpush1.bf16.msra.mxu0 0
      %4698 = vmatprep.subr.bf16.mxu0 0
      %4699 = vmatpush1.bf16.msra.mxu0 0
      %4700 = vmatprep.subr.bf16.mxu0 0
      %4701 = vmatpush1.bf16.msra.mxu0 0
      %4702 = vmatprep.subr.bf16.mxu0 0
      %4703 = vmatpush1.bf16.msra.mxu0 0
      %4704 = vmatprep.subr.bf16.mxu0 0
      %4705 = vmatpush1.bf16.msra.mxu0 0
      %4706 = vmatprep.subr.bf16.mxu0 0
      %4707 = vmatpush1.bf16.msra.mxu0 0
      %4708 = vmatprep.subr.bf16.mxu0 0
      %4709 = vmatpush1.bf16.msra.mxu0 0
      %4710 = vmatprep.subr.bf16.mxu0 0
      %4711 = vmatpush1.bf16.msra.mxu0 0
      %4712 = vmatprep.subr.bf16.mxu0 0
      %4713 = vmatpush1.bf16.msra.mxu0 0
      %4714 = vmatprep.subr.bf16.mxu0 0
      %4715 = vmatpush1.bf16.msra.mxu0 0
      %4716 = vmatprep.subr.bf16.mxu0 0
      %4717 = vmatpush1.bf16.msra.mxu0 0
      %4718 = vmatprep.subr.bf16.mxu0 0
      %4719 = vmatpush1.bf16.msra.mxu0 0
      %4720 = vmatprep.mubr.bf16.mxu0 0
      %4721 = vmatmul.mubr.bf16.gmra.mrb[0].mxu0 %v2478
      %v4722 = vpop.f32.mrb[0].mxu0
      %v4723 = vadd.f32 0.0, %v4722
      %v4724 = vpop.f32.mrb[0].mxu0
      %v4725 = vpop.f32.mrb[0].mxu0
      %v4726 = vadd.f32 0.0, %v4725
      %v4727 = vpop.f32.mrb[0].mxu0
      %4728 = vmatprep.mubr.bf16.mxu0 0
      %4729 = vmatmul.mubr.bf16.gmra.mrb[0].mxu0 %v2481
      %v4730 = vpop.f32.mrb[0].mxu0
      %v4731 = vadd.f32 0.0, %v4730
      %v4732 = vpop.f32.mrb[0].mxu0
      %v4733 = vpop.f32.mrb[0].mxu0
      %v4734 = vadd.f32 0.0, %v4733
      %v4735 = vpop.f32.mrb[0].mxu0
      %4736 = vmatprep.mubr.bf16.mxu0 0
      %4737 = vmatmul.mubr.bf16.gmra.mrb[0].mxu0 %v2484
      %v4738 = vpop.f32.mrb[0].mxu0
      %v4739 = vadd.f32 0.0, %v4738
      %v4740 = vpop.f32.mrb[0].mxu0
      %v4741 = vpop.f32.mrb[0].mxu0
      %v4742 = vadd.f32 0.0, %v4741
      %v4743 = vpop.f32.mrb[0].mxu0
      %4744 = vmatprep.mubr.bf16.mxu0 0
      %4745 = vmatmul.mubr.bf16.gmra.mrb[0].mxu0 %v2487
      %v4746 = vpop.f32.mrb[0].mxu0
      %v4747 = vadd.f32 0.0, %v4746
      %v4748 = vpop.f32.mrb[0].mxu0
      %v4749 = vpop.f32.mrb[0].mxu0
      %v4750 = vadd.f32 0.0, %v4749
      %v4751 = vpop.f32.mrb[0].mxu0
      %4752 = vmatprep.mubr.bf16.mxu0 0
      %4753 = vmatmul.mubr.bf16.gmra.mrb[0].mxu0 %v2490
      %v4754 = vpop.f32.mrb[0].mxu0
      %v4755 = vadd.f32 0.0, %v4754
      %v4756 = vpop.f32.mrb[0].mxu0
      %v4757 = vpop.f32.mrb[0].mxu0
      %v4758 = vadd.f32 0.0, %v4757
      %v4759 = vpop.f32.mrb[0].mxu0
      %4760 = vmatprep.mubr.bf16.mxu0 0
      %4761 = vmatmul.mubr.bf16.gmra.mrb[0].mxu0 %v2493
      %v4762 = vpop.f32.mrb[0].mxu0
      %v4763 = vadd.f32 0.0, %v4762
      %v4764 = vpop.f32.mrb[0].mxu0
      %v4765 = vpop.f32.mrb[0].mxu0
      %v4766 = vadd.f32 0.0, %v4765
      %v4767 = vpop.f32.mrb[0].mxu0
      %4768 = vmatprep.mubr.bf16.mxu0 0
      %4769 = vmatmul.mubr.bf16.gmra.mrb[0].mxu0 %v2496
      %v4770 = vpop.f32.mrb[0].mxu0
      %v4771 = vadd.f32 0.0, %v4770
      %v4772 = vpop.f32.mrb[0].mxu0
      %v4773 = vpop.f32.mrb[0].mxu0
      %v4774 = vadd.f32 0.0, %v4773
      %v4775 = vpop.f32.mrb[0].mxu0
      %4776 = vmatprep.mubr.bf16.mxu0 0
      %4777 = vmatmul.mubr.bf16.gmra.mrb[0].mxu0 %v2499
      %v4778 = vpop.f32.mrb[0].mxu0
      %v4779 = vadd.f32 0.0, %v4778
      %v4780 = vpop.f32.mrb[0].mxu0
      %v4781 = vpop.f32.mrb[0].mxu0
      %v4782 = vadd.f32 0.0, %v4781
      %v4783 = vpop.f32.mrb[0].mxu0
      %4784 = vmatprep.mubr.bf16.mxu0 0
      %4785 = vmatmul.mubr.bf16.gmra.mrb[0].mxu0 %v2502
      %v4786 = vpop.f32.mrb[0].mxu0
      %v4787 = vadd.f32 0.0, %v4786
      %v4788 = vpop.f32.mrb[0].mxu0
      %v4789 = vpop.f32.mrb[0].mxu0
      %v4790 = vadd.f32 0.0, %v4789
      %v4791 = vpop.f32.mrb[0].mxu0
      %4792 = vmatprep.mubr.bf16.mxu0 0
      %4793 = vmatmul.mubr.bf16.gmra.mrb[0].mxu0 %v2505
      %v4794 = vpop.f32.mrb[0].mxu0
      %v4795 = vadd.f32 0.0, %v4794
      %v4796 = vpop.f32.mrb[0].mxu0
      %v4797 = vpop.f32.mrb[0].mxu0
      %v4798 = vadd.f32 0.0, %v4797
      %v4799 = vpop.f32.mrb[0].mxu0
      %4800 = vmatprep.mubr.bf16.mxu0 0
      %4801 = vmatmul.mubr.bf16.gmra.mrb[0].mxu0 %v2508
      %v4802 = vpop.f32.mrb[0].mxu0
      %v4803 = vadd.f32 0.0, %v4802
      %v4804 = vpop.f32.mrb[0].mxu0
      %v4805 = vpop.f32.mrb[0].mxu0
      %v4806 = vadd.f32 0.0, %v4805
      %v4807 = vpop.f32.mrb[0].mxu0
      %4808 = vmatprep.mubr.bf16.mxu0 0
      %4809 = vmatmul.mubr.bf16.gmra.mrb[0].mxu0 %v2511
      %v4810 = vpop.f32.mrb[0].mxu0
      %v4811 = vadd.f32 0.0, %v4810
      %v4812 = vpop.f32.mrb[0].mxu0
      %v4813 = vpop.f32.mrb[0].mxu0
      %v4814 = vadd.f32 0.0, %v4813
      %v4815 = vpop.f32.mrb[0].mxu0
      %4816 = vmatprep.mubr.bf16.mxu0 0
      %4817 = vmatmul.mubr.bf16.gmra.mrb[0].mxu0 %v2514
      %v4818 = vpop.f32.mrb[0].mxu0
      %v4819 = vadd.f32 0.0, %v4818
      %v4820 = vpop.f32.mrb[0].mxu0
      %v4821 = vpop.f32.mrb[0].mxu0
      %v4822 = vadd.f32 0.0, %v4821
      %v4823 = vpop.f32.mrb[0].mxu0
      %4824 = vmatprep.mubr.bf16.mxu0 0
      %4825 = vmatmul.mubr.bf16.gmra.mrb[0].mxu0 %v2517
      %v4826 = vpop.f32.mrb[0].mxu0
      %v4827 = vadd.f32 0.0, %v4826
      %v4828 = vpop.f32.mrb[0].mxu0
      %v4829 = vpop.f32.mrb[0].mxu0
      %v4830 = vadd.f32 0.0, %v4829
      %v4831 = vpop.f32.mrb[0].mxu0
      %4832 = vmatprep.mubr.bf16.mxu0 0
      %4833 = vmatmul.mubr.bf16.gmra.mrb[0].mxu0 %v2520
      %v4834 = vpop.f32.mrb[0].mxu0
      %v4835 = vadd.f32 0.0, %v4834
      %v4836 = vpop.f32.mrb[0].mxu0
      %v4837 = vpop.f32.mrb[0].mxu0
      %v4838 = vadd.f32 0.0, %v4837
      %v4839 = vpop.f32.mrb[0].mxu0
      %4840 = vmatprep.mubr.bf16.mxu0 0
      %4841 = vmatmul.mubr.bf16.gmra.mrb[0].mxu0 %v2523
      %v4842 = vpop.f32.mrb[0].mxu0
      %v4843 = vadd.f32 0.0, %v4842
      %v4844 = vpop.f32.mrb[0].mxu0
      %v4845 = vpop.f32.mrb[0].mxu0
      %v4846 = vadd.f32 0.0, %v4845
      %v4847 = vpop.f32.mrb[0].mxu0
      %4848 = vmatprep.mubr.bf16.mxu0 0
      %4849 = vmatmul.mubr.bf16.gmra.mrb[0].mxu0 %v2526
      %v4850 = vpop.f32.mrb[0].mxu0
      %v4851 = vadd.f32 0.0, %v4850
      %v4852 = vpop.f32.mrb[0].mxu0
      %v4853 = vpop.f32.mrb[0].mxu0
      %v4854 = vadd.f32 0.0, %v4853
      %v4855 = vpop.f32.mrb[0].mxu0
      %4856 = vmatprep.mubr.bf16.mxu0 0
      %4857 = vmatmul.mubr.bf16.gmra.mrb[0].mxu0 %v2529
      %v4858 = vpop.f32.mrb[0].mxu0
      %v4859 = vadd.f32 0.0, %v4858
      %v4860 = vpop.f32.mrb[0].mxu0
      %v4861 = vpop.f32.mrb[0].mxu0
      %v4862 = vadd.f32 0.0, %v4861
      %v4863 = vpop.f32.mrb[0].mxu0
      %4864 = vmatprep.mubr.bf16.mxu0 0
      %4865 = vmatmul.mubr.bf16.gmra.mrb[0].mxu0 %v2532
      %v4866 = vpop.f32.mrb[0].mxu0
      %v4867 = vadd.f32 0.0, %v4866
      %v4868 = vpop.f32.mrb[0].mxu0
      %v4869 = vpop.f32.mrb[0].mxu0
      %v4870 = vadd.f32 0.0, %v4869
      %v4871 = vpop.f32.mrb[0].mxu0
      %4872 = vmatprep.mubr.bf16.mxu0 0
      %4873 = vmatmul.mubr.bf16.gmra.mrb[0].mxu0 %v2535
      %v4874 = vpop.f32.mrb[0].mxu0
      %v4875 = vadd.f32 0.0, %v4874
      %v4876 = vpop.f32.mrb[0].mxu0
      %v4877 = vpop.f32.mrb[0].mxu0
      %v4878 = vadd.f32 0.0, %v4877
      %v4879 = vpop.f32.mrb[0].mxu0
      %4880 = vmatprep.mubr.bf16.mxu0 0
      %4881 = vmatmul.mubr.bf16.gmra.mrb[0].mxu0 %v4674
      %v4882 = vpop.f32.mrb[0].mxu0
      %v4883 = vadd.f32 0.0, %v4882
      %v4884 = vpop.f32.mrb[0].mxu0
      %v4885 = vpop.f32.mrb[0].mxu0
      %v4886 = vadd.f32 0.0, %v4885
      %v4887 = vpop.f32.mrb[0].mxu0
      %4888 = vmatprep.mubr.bf16.mxu0 0
      %4889 = vmatmul.mubr.bf16.gmra.mrb[0].mxu0 %v4677
      %v4890 = vpop.f32.mrb[0].mxu0
      %v4891 = vadd.f32 0.0, %v4890
      %v4892 = vpop.f32.mrb[0].mxu0
      %v4893 = vpop.f32.mrb[0].mxu0
      %v4894 = vadd.f32 0.0, %v4893
      %v4895 = vpop.f32.mrb[0].mxu0
      %4896 = vmatprep.mubr.bf16.mxu0 0
      %4897 = vmatmul.mubr.bf16.gmra.mrb[0].mxu0 %v4680
      %v4898 = vpop.f32.mrb[0].mxu0
      %v4899 = vadd.f32 0.0, %v4898
      %v4900 = vpop.f32.mrb[0].mxu0
      %v4901 = vpop.f32.mrb[0].mxu0
      %v4902 = vadd.f32 0.0, %v4901
      %v4903 = vpop.f32.mrb[0].mxu0
      %4904 = vmatprep.mubr.bf16.mxu0 0
      %4905 = vmatmul.mubr.bf16.gmra.mrb[0].mxu0 %v4683
      %v4906 = vpop.f32.mrb[0].mxu0
      %v4907 = vadd.f32 0.0, %v4906
      %v4908 = vpop.f32.mrb[0].mxu0
      %v4909 = vpop.f32.mrb[0].mxu0
      %v4910 = vadd.f32 0.0, %v4909
      %v4911 = vpop.f32.mrb[0].mxu0
      %4912 = vdwg.mxu0
      %v4913 = vadd.f32 %v4600, %v4723
      %v4914 = vadd.f32 %v4601, %v4726
      %v4915 = vadd.f32 %v4602, %v4731
      %v4916 = vadd.f32 %v4603, %v4734
      %v4917 = vadd.f32 %v4604, %v4739
      %v4918 = vadd.f32 %v4605, %v4742
      %v4919 = vadd.f32 %v4606, %v4747
      %v4920 = vadd.f32 %v4607, %v4750
      %v4921 = vadd.f32 %v4608, %v4755
      %v4922 = vadd.f32 %v4609, %v4758
      %v4923 = vadd.f32 %v4610, %v4763
      %v4924 = vadd.f32 %v4611, %v4766
      %v4925 = vadd.f32 %v4612, %v4771
      %v4926 = vadd.f32 %v4613, %v4774
      %v4927 = vadd.f32 %v4614, %v4779
      %v4928 = vadd.f32 %v4615, %v4782
      %v4929 = vadd.f32 %v4616, %v4787
      %v4930 = vadd.f32 %v4617, %v4790
      %v4931 = vadd.f32 %v4618, %v4795
      %v4932 = vadd.f32 %v4619, %v4798
      %v4933 = vadd.f32 %v4620, %v4803
      %v4934 = vadd.f32 %v4621, %v4806
      %v4935 = vadd.f32 %v4622, %v4811
      %v4936 = vadd.f32 %v4623, %v4814
      %v4937 = vadd.f32 %v4624, %v4819
      %v4938 = vadd.f32 %v4625, %v4822
      %v4939 = vadd.f32 %v4626, %v4827
      %v4940 = vadd.f32 %v4627, %v4830
      %v4941 = vadd.f32 %v4628, %v4835
      %v4942 = vadd.f32 %v4629, %v4838
      %v4943 = vadd.f32 %v4630, %v4843
      %v4944 = vadd.f32 %v4631, %v4846
      %v4945 = vadd.f32 %v4632, %v4851
      %v4946 = vadd.f32 %v4633, %v4854
      %v4947 = vadd.f32 %v4634, %v4859
      %v4948 = vadd.f32 %v4635, %v4862
      %v4949 = vadd.f32 %v4636, %v4867
      %v4950 = vadd.f32 %v4637, %v4870
      %v4951 = vadd.f32 %v4638, %v4875
      %v4952 = vadd.f32 %v4639, %v4878
      %v4953 = vadd.f32 %v4640, %v4883
      %v4954 = vadd.f32 %v4641, %v4886
      %v4955 = vadd.f32 %v4642, %v4891
      %v4956 = vadd.f32 %v4643, %v4894
      %v4957 = vadd.f32 %v4644, %v4899
      %v4958 = vadd.f32 %v4645, %v4902
      %v4959 = vadd.f32 %v4646, %v4907
      %v4960 = vadd.f32 %v4647, %v4910
      %v4961 = vld [vmem:[%s7] sm:$0x1]
      %v4963 = vlaneseq
      %v4964 = vshrl.u32 %v4963, 7
      %v4965 = vsub.s32 0, %v4964
      %v4966 = vrot.slane %v4961, %v4965
      %v4968 = vadd.f32 %v4913, %v4966
      %v4969 = vadd.f32 %v4914, %v4966
      %v4970 = vadd.f32 %v4915, %v4966
      %v4971 = vadd.f32 %v4916, %v4966
      %v4972 = vadd.f32 %v4917, %v4966
      %v4973 = vadd.f32 %v4918, %v4966
      %v4974 = vadd.f32 %v4919, %v4966
      %v4975 = vadd.f32 %v4920, %v4966
      %v4976 = vadd.f32 %v4921, %v4966
      %v4977 = vadd.f32 %v4922, %v4966
      %v4978 = vadd.f32 %v4923, %v4966
      %v4979 = vadd.f32 %v4924, %v4966
      %v4980 = vadd.f32 %v4925, %v4966
      %v4981 = vadd.f32 %v4926, %v4966
      %v4982 = vadd.f32 %v4927, %v4966
      %v4983 = vadd.f32 %v4928, %v4966
      %v4984 = vadd.f32 %v4929, %v4966
      %v4985 = vadd.f32 %v4930, %v4966
      %v4986 = vadd.f32 %v4931, %v4966
      %v4987 = vadd.f32 %v4932, %v4966
      %v4988 = vadd.f32 %v4933, %v4966
      %v4989 = vadd.f32 %v4934, %v4966
      %v4990 = vadd.f32 %v4935, %v4966
      %v4991 = vadd.f32 %v4936, %v4966
      %v4992 = vadd.f32 %v4937, %v4966
      %v4993 = vadd.f32 %v4938, %v4966
      %v4994 = vadd.f32 %v4939, %v4966
      %v4995 = vadd.f32 %v4940, %v4966
      %v4996 = vadd.f32 %v4941, %v4966
      %v4997 = vadd.f32 %v4942, %v4966
      %v4998 = vadd.f32 %v4943, %v4966
      %v4999 = vadd.f32 %v4944, %v4966
      %v5000 = vadd.f32 %v4945, %v4966
      %v5001 = vadd.f32 %v4946, %v4966
      %v5002 = vadd.f32 %v4947, %v4966
      %v5003 = vadd.f32 %v4948, %v4966
      %v5004 = vadd.f32 %v4949, %v4966
      %v5005 = vadd.f32 %v4950, %v4966
      %v5006 = vadd.f32 %v4951, %v4966
      %v5007 = vadd.f32 %v4952, %v4966
      %v5008 = vadd.f32 %v4953, %v4966
      %v5009 = vadd.f32 %v4954, %v4966
      %v5010 = vadd.f32 %v4955, %v4966
      %v5011 = vadd.f32 %v4956, %v4966
      %v5012 = vadd.f32 %v4957, %v4966
      %v5013 = vadd.f32 %v4958, %v4966
      %v5014 = vadd.f32 %v4959, %v4966
      %v5015 = vadd.f32 %v4960, %v4966
      %v5016 = vmax.f32 %v4968, 0.0
      %v5017 = vmax.f32 %v4969, 0.0
      %v5018 = vmax.f32 %v4970, 0.0
      %v5019 = vmax.f32 %v4971, 0.0
      %v5020 = vmax.f32 %v4972, 0.0
      %v5021 = vmax.f32 %v4973, 0.0
      %v5022 = vmax.f32 %v4974, 0.0
      %v5023 = vmax.f32 %v4975, 0.0
      %v5024 = vmax.f32 %v4976, 0.0
      %v5025 = vmax.f32 %v4977, 0.0
      %v5026 = vmax.f32 %v4978, 0.0
      %v5027 = vmax.f32 %v4979, 0.0
      %v5028 = vmax.f32 %v4980, 0.0
      %v5029 = vmax.f32 %v4981, 0.0
      %v5030 = vmax.f32 %v4982, 0.0
      %v5031 = vmax.f32 %v4983, 0.0
      %v5032 = vmax.f32 %v4984, 0.0
      %v5033 = vmax.f32 %v4985, 0.0
      %v5034 = vmax.f32 %v4986, 0.0
      %v5035 = vmax.f32 %v4987, 0.0
      %v5036 = vmax.f32 %v4988, 0.0
      %v5037 = vmax.f32 %v4989, 0.0
      %v5038 = vmax.f32 %v4990, 0.0
      %v5039 = vmax.f32 %v4991, 0.0
      %v5040 = vmax.f32 %v4992, 0.0
      %v5041 = vmax.f32 %v4993, 0.0
      %v5042 = vmax.f32 %v4994, 0.0
      %v5043 = vmax.f32 %v4995, 0.0
      %v5044 = vmax.f32 %v4996, 0.0
      %v5045 = vmax.f32 %v4997, 0.0
      %v5046 = vmax.f32 %v4998, 0.0
      %v5047 = vmax.f32 %v4999, 0.0
      %v5048 = vmax.f32 %v5000, 0.0
      %v5049 = vmax.f32 %v5001, 0.0
      %v5050 = vmax.f32 %v5002, 0.0
      %v5051 = vmax.f32 %v5003, 0.0
      %v5052 = vmax.f32 %v5004, 0.0
      %v5053 = vmax.f32 %v5005, 0.0
      %v5054 = vmax.f32 %v5006, 0.0
      %v5055 = vmax.f32 %v5007, 0.0
      %v5056 = vmax.f32 %v5008, 0.0
      %v5057 = vmax.f32 %v5009, 0.0
      %v5058 = vmax.f32 %v5010, 0.0
      %v5059 = vmax.f32 %v5011, 0.0
      %v5060 = vmax.f32 %v5012, 0.0
      %v5061 = vmax.f32 %v5013, 0.0
      %v5062 = vmax.f32 %v5014, 0.0
      %v5063 = vmax.f32 %v5015, 0.0
      %v5064 = vpack.c.bf16 %v5017, %v5016
      %v5065 = vpack.c.bf16 %v5019, %v5018
      %v5066 = vpack.c.bf16 %v5021, %v5020
      %v5067 = vpack.c.bf16 %v5023, %v5022
      %v5068 = vpack.c.bf16 %v5025, %v5024
      %v5069 = vpack.c.bf16 %v5027, %v5026
      %v5070 = vpack.c.bf16 %v5029, %v5028
      %v5071 = vpack.c.bf16 %v5031, %v5030
      %v5072 = vpack.c.bf16 %v5033, %v5032
      %v5073 = vpack.c.bf16 %v5035, %v5034
      %v5074 = vpack.c.bf16 %v5037, %v5036
      %v5075 = vpack.c.bf16 %v5039, %v5038
      %v5076 = vpack.c.bf16 %v5041, %v5040
      %v5077 = vpack.c.bf16 %v5043, %v5042
      %v5078 = vpack.c.bf16 %v5045, %v5044
      %v5079 = vpack.c.bf16 %v5047, %v5046
      %v5080 = vpack.c.bf16 %v5049, %v5048
      %v5081 = vpack.c.bf16 %v5051, %v5050
      %v5082 = vpack.c.bf16 %v5053, %v5052
      %v5083 = vpack.c.bf16 %v5055, %v5054
      %v5084 = vpack.c.bf16 %v5057, %v5056
      %v5085 = vpack.c.bf16 %v5059, %v5058
      %v5086 = vpack.c.bf16 %v5061, %v5060
      %v5087 = vpack.c.bf16 %v5063, %v5062
      %v5088 = vld [vmem:[%s8] sm:$0x3]
      %v5089 = vld [vmem:[%s9] sm:$0x1]
      %v5091 = vlaneseq
      %v5092 = vshrl.u32 %v5091, 7
      %v5093 = vsub.s32 0, %v5092
      %v5094 = vrot.slane %v5089, %v5093
      %v5097 = vsel %vm1465, %v5064, 0
      %v5100 = vsel %vm1465, %v5065, 0
      %v5103 = vsel %vm1465, %v5066, 0
      %v5106 = vsel %vm1465, %v5067, 0
      %v5109 = vsel %vm1465, %v5068, 0
      %v5112 = vsel %vm1465, %v5069, 0
      %v5115 = vsel %vm1465, %v5070, 0
      %v5118 = vsel %vm1465, %v5071, 0
      %v5121 = vsel %vm1465, %v5072, 0
      %v5124 = vsel %vm1465, %v5073, 0
      %v5127 = vsel %vm1465, %v5074, 0
      %v5130 = vsel %vm1465, %v5075, 0
      %v5133 = vsel %vm1465, %v5076, 0
      %v5136 = vsel %vm1465, %v5077, 0
      %v5139 = vsel %vm1465, %v5078, 0
      %v5142 = vsel %vm1465, %v5079, 0
      %v5145 = vsel %vm1465, %v5080, 0
      %v5148 = vsel %vm1465, %v5081, 0
      %v5151 = vsel %vm1465, %v5082, 0
      %v5154 = vsel %vm1465, %v5083, 0
      %v5157 = vsel %vm1465, %v5084, 0
      %v5160 = vsel %vm1465, %v5085, 0
      %v5163 = vsel %vm1465, %v5086, 0
      %v5166 = vsel %vm1465, %v5087, 0
      %v5169 = vsel %vm1538, %v5088, 0
      %5171 = vmatprep.subr.bf16.mxu0 0
      %5172 = vmatpush1.bf16.msra.mxu0 %v5169
      %5173 = vmatprep.subr.bf16.mxu0 0
      %5174 = vmatpush1.bf16.msra.mxu0 0
      %5175 = vmatprep.subr.bf16.mxu0 0
      %5176 = vmatpush1.bf16.msra.mxu0 0
      %5177 = vmatprep.subr.bf16.mxu0 0
      %5178 = vmatpush1.bf16.msra.mxu0 0
      %5179 = vmatprep.subr.bf16.mxu0 0
      %5180 = vmatpush1.bf16.msra.mxu0 0
      %5181 = vmatprep.subr.bf16.mxu0 0
      %5182 = vmatpush1.bf16.msra.mxu0 0
      %5183 = vmatprep.subr.bf16.mxu0 0
      %5184 = vmatpush1.bf16.msra.mxu0 0
      %5185 = vmatprep.subr.bf16.mxu0 0
      %5186 = vmatpush1.bf16.msra.mxu0 0
      %5187 = vmatprep.subr.bf16.mxu0 0
      %5188 = vmatpush1.bf16.msra.mxu0 0
      %5189 = vmatprep.subr.bf16.mxu0 0
      %5190 = vmatpush1.bf16.msra.mxu0 0
      %5191 = vmatprep.subr.bf16.mxu0 0
      %5192 = vmatpush1.bf16.msra.mxu0 0
      %5193 = vmatprep.subr.bf16.mxu0 0
      %5194 = vmatpush1.bf16.msra.mxu0 0
      %5195 = vmatprep.subr.bf16.mxu0 0
      %5196 = vmatpush1.bf16.msra.mxu0 0
      %5197 = vmatprep.subr.bf16.mxu0 0
      %5198 = vmatpush1.bf16.msra.mxu0 0
      %5199 = vmatprep.subr.bf16.mxu0 0
      %5200 = vmatpush1.bf16.msra.mxu0 0
      %5201 = vmatprep.subr.bf16.mxu0 0
      %5202 = vmatpush1.bf16.msra.mxu0 0
      %5203 = vmatprep.mubr.bf16.mxu0 0
      %5204 = vmatmul.mubr.bf16.gmra.mrb[0].mxu0 %v5097
      %v5205 = vpop.f32.mrb[0].mxu0
      %v5206 = vadd.f32 %v5094, %v5205
      %v5207 = vpop.f32.mrb[0].mxu0
      %v5208 = vpop.f32.mrb[0].mxu0
      %v5209 = vadd.f32 %v5094, %v5208
      %v5210 = vpop.f32.mrb[0].mxu0
      %5211 = vmatprep.mubr.bf16.mxu0 0
      %5212 = vmatmul.mubr.bf16.gmra.mrb[0].mxu0 %v5100
      %v5213 = vpop.f32.mrb[0].mxu0
      %v5214 = vadd.f32 %v5094, %v5213
      %v5215 = vpop.f32.mrb[0].mxu0
      %v5216 = vpop.f32.mrb[0].mxu0
      %v5217 = vadd.f32 %v5094, %v5216
      %v5218 = vpop.f32.mrb[0].mxu0
      %5219 = vmatprep.mubr.bf16.mxu0 0
      %5220 = vmatmul.mubr.bf16.gmra.mrb[0].mxu0 %v5103
      %v5221 = vpop.f32.mrb[0].mxu0
      %v5222 = vadd.f32 %v5094, %v5221
      %v5223 = vpop.f32.mrb[0].mxu0
      %v5224 = vpop.f32.mrb[0].mxu0
      %v5225 = vadd.f32 %v5094, %v5224
      %v5226 = vpop.f32.mrb[0].mxu0
      %5227 = vmatprep.mubr.bf16.mxu0 0
      %5228 = vmatmul.mubr.bf16.gmra.mrb[0].mxu0 %v5106
      %v5229 = vpop.f32.mrb[0].mxu0
      %v5230 = vadd.f32 %v5094, %v5229
      %v5231 = vpop.f32.mrb[0].mxu0
      %v5232 = vpop.f32.mrb[0].mxu0
      %v5233 = vadd.f32 %v5094, %v5232
      %v5234 = vpop.f32.mrb[0].mxu0
      %5235 = vmatprep.mubr.bf16.mxu0 0
      %5236 = vmatmul.mubr.bf16.gmra.mrb[0].mxu0 %v5109
      %v5237 = vpop.f32.mrb[0].mxu0
      %v5238 = vadd.f32 %v5094, %v5237
      %v5239 = vpop.f32.mrb[0].mxu0
      %v5240 = vpop.f32.mrb[0].mxu0
      %v5241 = vadd.f32 %v5094, %v5240
      %v5242 = vpop.f32.mrb[0].mxu0
      %5243 = vmatprep.mubr.bf16.mxu0 0
      %5244 = vmatmul.mubr.bf16.gmra.mrb[0].mxu0 %v5112
      %v5245 = vpop.f32.mrb[0].mxu0
      %v5246 = vadd.f32 %v5094, %v5245
      %v5247 = vpop.f32.mrb[0].mxu0
      %v5248 = vpop.f32.mrb[0].mxu0
      %v5249 = vadd.f32 %v5094, %v5248
      %v5250 = vpop.f32.mrb[0].mxu0
      %5251 = vmatprep.mubr.bf16.mxu0 0
      %5252 = vmatmul.mubr.bf16.gmra.mrb[0].mxu0 %v5115
      %v5253 = vpop.f32.mrb[0].mxu0
      %v5254 = vadd.f32 %v5094, %v5253
      %v5255 = vpop.f32.mrb[0].mxu0
      %v5256 = vpop.f32.mrb[0].mxu0
      %v5257 = vadd.f32 %v5094, %v5256
      %v5258 = vpop.f32.mrb[0].mxu0
      %5259 = vmatprep.mubr.bf16.mxu0 0
      %5260 = vmatmul.mubr.bf16.gmra.mrb[0].mxu0 %v5118
      %v5261 = vpop.f32.mrb[0].mxu0
      %v5262 = vadd.f32 %v5094, %v5261
      %v5263 = vpop.f32.mrb[0].mxu0
      %v5264 = vpop.f32.mrb[0].mxu0
      %v5265 = vadd.f32 %v5094, %v5264
      %v5266 = vpop.f32.mrb[0].mxu0
      %5267 = vmatprep.mubr.bf16.mxu0 0
      %5268 = vmatmul.mubr.bf16.gmra.mrb[0].mxu0 %v5121
      %v5269 = vpop.f32.mrb[0].mxu0
      %v5270 = vadd.f32 %v5094, %v5269
      %v5271 = vpop.f32.mrb[0].mxu0
      %v5272 = vpop.f32.mrb[0].mxu0
      %v5273 = vadd.f32 %v5094, %v5272
      %v5274 = vpop.f32.mrb[0].mxu0
      %5275 = vmatprep.mubr.bf16.mxu0 0
      %5276 = vmatmul.mubr.bf16.gmra.mrb[0].mxu0 %v5124
      %v5277 = vpop.f32.mrb[0].mxu0
      %v5278 = vadd.f32 %v5094, %v5277
      %v5279 = vpop.f32.mrb[0].mxu0
      %v5280 = vpop.f32.mrb[0].mxu0
      %v5281 = vadd.f32 %v5094, %v5280
      %v5282 = vpop.f32.mrb[0].mxu0
      %5283 = vmatprep.mubr.bf16.mxu0 0
      %5284 = vmatmul.mubr.bf16.gmra.mrb[0].mxu0 %v5127
      %v5285 = vpop.f32.mrb[0].mxu0
      %v5286 = vadd.f32 %v5094, %v5285
      %v5287 = vpop.f32.mrb[0].mxu0
      %v5288 = vpop.f32.mrb[0].mxu0
      %v5289 = vadd.f32 %v5094, %v5288
      %v5290 = vpop.f32.mrb[0].mxu0
      %5291 = vmatprep.mubr.bf16.mxu0 0
      %5292 = vmatmul.mubr.bf16.gmra.mrb[0].mxu0 %v5130
      %v5293 = vpop.f32.mrb[0].mxu0
      %v5294 = vadd.f32 %v5094, %v5293
      %v5295 = vpop.f32.mrb[0].mxu0
      %v5296 = vpop.f32.mrb[0].mxu0
      %v5297 = vadd.f32 %v5094, %v5296
      %v5298 = vpop.f32.mrb[0].mxu0
      %5299 = vmatprep.mubr.bf16.mxu0 0
      %5300 = vmatmul.mubr.bf16.gmra.mrb[0].mxu0 %v5133
      %v5301 = vpop.f32.mrb[0].mxu0
      %v5302 = vadd.f32 %v5094, %v5301
      %v5303 = vpop.f32.mrb[0].mxu0
      %v5304 = vpop.f32.mrb[0].mxu0
      %v5305 = vadd.f32 %v5094, %v5304
      %v5306 = vpop.f32.mrb[0].mxu0
      %5307 = vmatprep.mubr.bf16.mxu0 0
      %5308 = vmatmul.mubr.bf16.gmra.mrb[0].mxu0 %v5136
      %v5309 = vpop.f32.mrb[0].mxu0
      %v5310 = vadd.f32 %v5094, %v5309
      %v5311 = vpop.f32.mrb[0].mxu0
      %v5312 = vpop.f32.mrb[0].mxu0
      %v5313 = vadd.f32 %v5094, %v5312
      %v5314 = vpop.f32.mrb[0].mxu0
      %5315 = vmatprep.mubr.bf16.mxu0 0
      %5316 = vmatmul.mubr.bf16.gmra.mrb[0].mxu0 %v5139
      %v5317 = vpop.f32.mrb[0].mxu0
      %v5318 = vadd.f32 %v5094, %v5317
      %v5319 = vpop.f32.mrb[0].mxu0
      %v5320 = vpop.f32.mrb[0].mxu0
      %v5321 = vadd.f32 %v5094, %v5320
      %v5322 = vpop.f32.mrb[0].mxu0
      %5323 = vmatprep.mubr.bf16.mxu0 0
      %5324 = vmatmul.mubr.bf16.gmra.mrb[0].mxu0 %v5142
      %v5325 = vpop.f32.mrb[0].mxu0
      %v5326 = vadd.f32 %v5094, %v5325
      %v5327 = vpop.f32.mrb[0].mxu0
      %v5328 = vpop.f32.mrb[0].mxu0
      %v5329 = vadd.f32 %v5094, %v5328
      %v5330 = vpop.f32.mrb[0].mxu0
      %5331 = vmatprep.mubr.bf16.mxu0 0
      %5332 = vmatmul.mubr.bf16.gmra.mrb[0].mxu0 %v5145
      %v5333 = vpop.f32.mrb[0].mxu0
      %v5334 = vadd.f32 %v5094, %v5333
      %v5335 = vpop.f32.mrb[0].mxu0
      %v5336 = vpop.f32.mrb[0].mxu0
      %v5337 = vadd.f32 %v5094, %v5336
      %v5338 = vpop.f32.mrb[0].mxu0
      %5339 = vmatprep.mubr.bf16.mxu0 0
      %5340 = vmatmul.mubr.bf16.gmra.mrb[0].mxu0 %v5148
      %v5341 = vpop.f32.mrb[0].mxu0
      %v5342 = vadd.f32 %v5094, %v5341
      %v5343 = vpop.f32.mrb[0].mxu0
      %v5344 = vpop.f32.mrb[0].mxu0
      %v5345 = vadd.f32 %v5094, %v5344
      %v5346 = vpop.f32.mrb[0].mxu0
      %5347 = vmatprep.mubr.bf16.mxu0 0
      %5348 = vmatmul.mubr.bf16.gmra.mrb[0].mxu0 %v5151
      %v5349 = vpop.f32.mrb[0].mxu0
      %v5350 = vadd.f32 %v5094, %v5349
      %v5351 = vpop.f32.mrb[0].mxu0
      %v5352 = vpop.f32.mrb[0].mxu0
      %v5353 = vadd.f32 %v5094, %v5352
      %v5354 = vpop.f32.mrb[0].mxu0
      %5355 = vmatprep.mubr.bf16.mxu0 0
      %5356 = vmatmul.mubr.bf16.gmra.mrb[0].mxu0 %v5154
      %v5357 = vpop.f32.mrb[0].mxu0
      %v5358 = vadd.f32 %v5094, %v5357
      %v5359 = vpop.f32.mrb[0].mxu0
      %v5360 = vpop.f32.mrb[0].mxu0
      %v5361 = vadd.f32 %v5094, %v5360
      %v5362 = vpop.f32.mrb[0].mxu0
      %5363 = vmatprep.mubr.bf16.mxu0 0
      %5364 = vmatmul.mubr.bf16.gmra.mrb[0].mxu0 %v5157
      %v5365 = vpop.f32.mrb[0].mxu0
      %v5366 = vadd.f32 %v5094, %v5365
      %v5367 = vpop.f32.mrb[0].mxu0
      %v5368 = vpop.f32.mrb[0].mxu0
      %v5369 = vadd.f32 %v5094, %v5368
      %v5370 = vpop.f32.mrb[0].mxu0
      %5371 = vmatprep.mubr.bf16.mxu0 0
      %5372 = vmatmul.mubr.bf16.gmra.mrb[0].mxu0 %v5160
      %v5373 = vpop.f32.mrb[0].mxu0
      %v5374 = vadd.f32 %v5094, %v5373
      %v5375 = vpop.f32.mrb[0].mxu0
      %v5376 = vpop.f32.mrb[0].mxu0
      %v5377 = vadd.f32 %v5094, %v5376
      %v5378 = vpop.f32.mrb[0].mxu0
      %5379 = vmatprep.mubr.bf16.mxu0 0
      %5380 = vmatmul.mubr.bf16.gmra.mrb[0].mxu0 %v5163
      %v5381 = vpop.f32.mrb[0].mxu0
      %v5382 = vadd.f32 %v5094, %v5381
      %v5383 = vpop.f32.mrb[0].mxu0
      %v5384 = vpop.f32.mrb[0].mxu0
      %v5385 = vadd.f32 %v5094, %v5384
      %v5386 = vpop.f32.mrb[0].mxu0
      %5387 = vmatprep.mubr.bf16.mxu0 0
      %5388 = vmatmul.mubr.bf16.gmra.mrb[0].mxu0 %v5166
      %v5389 = vpop.f32.mrb[0].mxu0
      %v5390 = vadd.f32 %v5094, %v5389
      %v5391 = vpop.f32.mrb[0].mxu0
      %v5392 = vpop.f32.mrb[0].mxu0
      %v5393 = vadd.f32 %v5094, %v5392
      %v5394 = vpop.f32.mrb[0].mxu0
      %5395 = vdwg.mxu0
      %v5396 = vadd.f32 %v5206, %v572
      %v5397 = vadd.f32 %v5209, %v573
      %v5398 = vadd.f32 %v5214, %v574
      %v5399 = vadd.f32 %v5217, %v575
      %v5400 = vadd.f32 %v5222, %v576
      %v5401 = vadd.f32 %v5225, %v577
      %v5402 = vadd.f32 %v5230, %v578
      %v5403 = vadd.f32 %v5233, %v579
      %v5404 = vadd.f32 %v5238, %v580
      %v5405 = vadd.f32 %v5241, %v581
      %v5406 = vadd.f32 %v5246, %v582
      %v5407 = vadd.f32 %v5249, %v583
      %v5408 = vadd.f32 %v5254, %v584
      %v5409 = vadd.f32 %v5257, %v585
      %v5410 = vadd.f32 %v5262, %v586
      %v5411 = vadd.f32 %v5265, %v587
      %v5412 = vadd.f32 %v5270, %v588
      %v5413 = vadd.f32 %v5273, %v589
      %v5414 = vadd.f32 %v5278, %v590
      %v5415 = vadd.f32 %v5281, %v591
      %v5416 = vadd.f32 %v5286, %v592
      %v5417 = vadd.f32 %v5289, %v593
      %v5418 = vadd.f32 %v5294, %v594
      %v5419 = vadd.f32 %v5297, %v595
      %v5420 = vadd.f32 %v5302, %v596
      %v5421 = vadd.f32 %v5305, %v597
      %v5422 = vadd.f32 %v5310, %v598
      %v5423 = vadd.f32 %v5313, %v599
      %v5424 = vadd.f32 %v5318, %v600
      %v5425 = vadd.f32 %v5321, %v601
      %v5426 = vadd.f32 %v5326, %v602
      %v5427 = vadd.f32 %v5329, %v603
      %v5428 = vadd.f32 %v5334, %v604
      %v5429 = vadd.f32 %v5337, %v605
      %v5430 = vadd.f32 %v5342, %v606
      %v5431 = vadd.f32 %v5345, %v607
      %v5432 = vadd.f32 %v5350, %v608
      %v5433 = vadd.f32 %v5353, %v609
      %v5434 = vadd.f32 %v5358, %v610
      %v5435 = vadd.f32 %v5361, %v611
      %v5436 = vadd.f32 %v5366, %v612
      %v5437 = vadd.f32 %v5369, %v613
      %v5438 = vadd.f32 %v5374, %v614
      %v5439 = vadd.f32 %v5377, %v615
      %v5440 = vadd.f32 %v5382, %v616
      %v5441 = vadd.f32 %v5385, %v617
      %v5442 = vadd.f32 %v5390, %v618
      %v5443 = vadd.f32 %v5393, %v619
      %v5444 = vmax.f32 %v5396, 0.0
      %v5445 = vmax.f32 %v5397, 0.0
      %v5446 = vmax.f32 %v5398, 0.0
      %v5447 = vmax.f32 %v5399, 0.0
      %v5448 = vmax.f32 %v5400, 0.0
      %v5449 = vmax.f32 %v5401, 0.0
      %v5450 = vmax.f32 %v5402, 0.0
      %v5451 = vmax.f32 %v5403, 0.0
      %v5452 = vmax.f32 %v5404, 0.0
      %v5453 = vmax.f32 %v5405, 0.0
      %v5454 = vmax.f32 %v5406, 0.0
      %v5455 = vmax.f32 %v5407, 0.0
      %v5456 = vmax.f32 %v5408, 0.0
      %v5457 = vmax.f32 %v5409, 0.0
      %v5458 = vmax.f32 %v5410, 0.0
      %v5459 = vmax.f32 %v5411, 0.0
      %v5460 = vmax.f32 %v5412, 0.0
      %v5461 = vmax.f32 %v5413, 0.0
      %v5462 = vmax.f32 %v5414, 0.0
      %v5463 = vmax.f32 %v5415, 0.0
      %v5464 = vmax.f32 %v5416, 0.0
      %v5465 = vmax.f32 %v5417, 0.0
      %v5466 = vmax.f32 %v5418, 0.0
      %v5467 = vmax.f32 %v5419, 0.0
      %v5468 = vmax.f32 %v5420, 0.0
      %v5469 = vmax.f32 %v5421, 0.0
      %v5470 = vmax.f32 %v5422, 0.0
      %v5471 = vmax.f32 %v5423, 0.0
      %v5472 = vmax.f32 %v5424, 0.0
      %v5473 = vmax.f32 %v5425, 0.0
      %v5474 = vmax.f32 %v5426, 0.0
      %v5475 = vmax.f32 %v5427, 0.0
      %v5476 = vmax.f32 %v5428, 0.0
      %v5477 = vmax.f32 %v5429, 0.0
      %v5478 = vmax.f32 %v5430, 0.0
      %v5479 = vmax.f32 %v5431, 0.0
      %v5480 = vmax.f32 %v5432, 0.0
      %v5481 = vmax.f32 %v5433, 0.0
      %v5482 = vmax.f32 %v5434, 0.0
      %v5483 = vmax.f32 %v5435, 0.0
      %v5484 = vmax.f32 %v5436, 0.0
      %v5485 = vmax.f32 %v5437, 0.0
      %v5486 = vmax.f32 %v5438, 0.0
      %v5487 = vmax.f32 %v5439, 0.0
      %v5488 = vmax.f32 %v5440, 0.0
      %v5489 = vmax.f32 %v5441, 0.0
      %v5490 = vmax.f32 %v5442, 0.0
      %v5491 = vmax.f32 %v5443, 0.0
      %5492 = vst.msk [vmem:[%s566] sm:$0xff] %vm719, %v5444
      %5493 = vst.msk [vmem:[%s566 + $0x8] sm:$0xff] %vm719, %v5445
      %5494 = vst.msk [vmem:[%s566 + $0x10] sm:$0xff] %vm719, %v5446
      %5495 = vst.msk [vmem:[%s566 + $0x18] sm:$0xff] %vm719, %v5447
      %5496 = vst.msk [vmem:[%s566 + $0x20] sm:$0xff] %vm719, %v5448
      %5497 = vst.msk [vmem:[%s566 + $0x28] sm:$0xff] %vm719, %v5449
      %5498 = vst.msk [vmem:[%s566 + $0x30] sm:$0xff] %vm719, %v5450
      %5499 = vst.msk [vmem:[%s566 + $0x38] sm:$0xff] %vm719, %v5451
      %5500 = vst.msk [vmem:[%s566 + $0x40] sm:$0xff] %vm719, %v5452
      %5501 = vst.msk [vmem:[%s566 + $0x48] sm:$0xff] %vm719, %v5453
      %5502 = vst.msk [vmem:[%s566 + $0x50] sm:$0xff] %vm719, %v5454
      %5503 = vst.msk [vmem:[%s566 + $0x58] sm:$0xff] %vm719, %v5455
      %5504 = vst.msk [vmem:[%s566 + $0x60] sm:$0xff] %vm719, %v5456
      %5505 = vst.msk [vmem:[%s566 + $0x68] sm:$0xff] %vm719, %v5457
      %5506 = vst.msk [vmem:[%s566 + $0x70] sm:$0xff] %vm719, %v5458
      %5507 = vst.msk [vmem:[%s566 + $0x78] sm:$0xff] %vm719, %v5459
      %5508 = vst.msk [vmem:[%s566 + $0x80] sm:$0xff] %vm719, %v5460
      %5509 = vst.msk [vmem:[%s566 + $0x88] sm:$0xff] %vm719, %v5461
      %5510 = vst.msk [vmem:[%s566 + $0x90] sm:$0xff] %vm719, %v5462
      %5511 = vst.msk [vmem:[%s566 + $0x98] sm:$0xff] %vm719, %v5463
      %5512 = vst.msk [vmem:[%s566 + $0xa0] sm:$0xff] %vm719, %v5464
      %5513 = vst.msk [vmem:[%s566 + $0xa8] sm:$0xff] %vm719, %v5465
      %5514 = vst.msk [vmem:[%s566 + $0xb0] sm:$0xff] %vm719, %v5466
      %5515 = vst.msk [vmem:[%s566 + $0xb8] sm:$0xff] %vm719, %v5467
      %5516 = vst.msk [vmem:[%s566 + $0xc0] sm:$0xff] %vm719, %v5468
      %5517 = vst.msk [vmem:[%s566 + $0xc8] sm:$0xff] %vm719, %v5469
      %5518 = vst.msk [vmem:[%s566 + $0xd0] sm:$0xff] %vm719, %v5470
      %5519 = vst.msk [vmem:[%s566 + $0xd8] sm:$0xff] %vm719, %v5471
      %5520 = vst.msk [vmem:[%s566 + $0xe0] sm:$0xff] %vm719, %v5472
      %5521 = vst.msk [vmem:[%s566 + $0xe8] sm:$0xff] %vm719, %v5473
      %5522 = vst.msk [vmem:[%s566 + $0xf0] sm:$0xff] %vm719, %v5474
      %5523 = vst.msk [vmem:[%s566 + $0xf8] sm:$0xff] %vm719, %v5475
      %5524 = vst.msk [vmem:[%s566 + $0x100] sm:$0xff] %vm719, %v5476
      %5525 = vst.msk [vmem:[%s566 + $0x108] sm:$0xff] %vm719, %v5477
      %5526 = vst.msk [vmem:[%s566 + $0x110] sm:$0xff] %vm719, %v5478
      %5527 = vst.msk [vmem:[%s566 + $0x118] sm:$0xff] %vm719, %v5479
      %5528 = vst.msk [vmem:[%s566 + $0x120] sm:$0xff] %vm719, %v5480
      %5529 = vst.msk [vmem:[%s566 + $0x128] sm:$0xff] %vm719, %v5481
      %5530 = vst.msk [vmem:[%s566 + $0x130] sm:$0xff] %vm719, %v5482
      %5531 = vst.msk [vmem:[%s566 + $0x138] sm:$0xff] %vm719, %v5483
      %5532 = vst.msk [vmem:[%s566 + $0x140] sm:$0xff] %vm719, %v5484
      %5533 = vst.msk [vmem:[%s566 + $0x148] sm:$0xff] %vm719, %v5485
      %5534 = vst.msk [vmem:[%s566 + $0x150] sm:$0xff] %vm719, %v5486
      %5535 = vst.msk [vmem:[%s566 + $0x158] sm:$0xff] %vm719, %v5487
      %5536 = vst.msk [vmem:[%s566 + $0x160] sm:$0xff] %vm719, %v5488
      %5537 = vst.msk [vmem:[%s566 + $0x168] sm:$0xff] %vm719, %v5489
      %5538 = vst.msk [vmem:[%s566 + $0x170] sm:$0xff] %vm719, %v5490
      %5539 = vst.msk [vmem:[%s566 + $0x178] sm:$0xff] %vm719, %v5491
      %s5540 = smul.u32 48, %s26
      %p5541 = scmp.lt.s32.totalorder %s25, 1
      %s5542 = scalar_select %p5541, %s25, 1
      %p5543 = scmp.lt.s32.totalorder %s5540, 47
      %s5544 = scalar_select %p5543, %s5540, 47
      %s5545 = smul.addr %s5542, 48
      %s5546 = sadd.s32 %s5544, %s5545
      %s5547 = smul.addr %s5546, 8
      %s5548 = scalar_lea.vmem %s10, %s5547
      // Predicated region
      $region61: #{bottleneck_forward.1} parent=59 // pred_check
        %p5549 = pneg %p299
      $region62: #{bottleneck_forward.1} parent=59 // pred_check_branch
        %5551 = sbr.rel (%p5549) target = $region64
      $region63: #{bottleneck_forward.1} parent=59 // pred_region
        %s5552 = smul.u32 48, %s26
      $region64: #{bottleneck_forward.1} parent=59 // pred_fallthru
        _
    $region60: #{bottleneck_forward.1} parent=5 // pred_fallthru
      _
    %p5553 = scmp.le.s32.totalorder 2, %s16
    // Predicated region
    $region65: #{bottleneck_forward.1} parent=5 // pred_check
      %p5554 = pneg %p5553
    $region66: #{bottleneck_forward.1} parent=5 // pred_check_branch
      %5556 = sbr.rel (%p5554) target = $region68
    $region67: #{bottleneck_forward.1} parent=5 // pred_region
      %s5557 = ssub.s32 %s16, 2
      // Predicated region
      $region69: #{bottleneck_forward.1} parent=67 // pred_check
        %p5558 = pneg %p305
      $region70: #{bottleneck_forward.1} parent=67 // pred_check_branch
        %5560 = sbr.rel (%p5558) target = $region72
      $region71: #{bottleneck_forward.1} parent=67 // pred_region
        %s5561 = smul.u32 48, %s28
        %p5562 = scmp.lt.s32.totalorder %s27, 1
        %s5563 = scalar_select %p5562, %s27, 1
        %p5564 = scmp.lt.s32.totalorder %s5561, 47
        %s5565 = scalar_select %p5564, %s5561, 47
        %s5566 = smul.addr %s5563, 48
        %s5567 = sadd.s32 %s5565, %s5566
        %s5568 = smul.addr %s5567, 8
        %s5569 = scalar_lea.vmem %s10, %s5568
      $region72: #{bottleneck_forward.1} parent=67 // pred_fallthru
        _
    $region68: #{bottleneck_forward.1} parent=5 // pred_fallthru
      _
  $region6: #{bottleneck_forward.1} parent=0 // loop_footer
    %s20 = sadd.s32 1, %s16
  $region7: #{bottleneck_forward.1} parent=0 // loop_footer_branch
    %15 = sbr.rel target = $region3
  $region8: #{bottleneck_forward.1} parent=0 // loop_exit
    _

</llo_original>
